<compile_context>
chip_gen: v6e
topology: v6e:2x2x1
jax: 0.10.0
libtpu: 0.0.40
codegen_flags: <defaults>
</compile_context>

<pallas_src>
import functools

import jax
import jax.numpy as jnp
import numpy as np
from jax.experimental import pallas as pl
from jax.experimental.pallas import tpu as pltpu

K = 7            # conv kernel size
PAD = K // 2     # spatial padding


def _sam_kernel(w_ref, x_ref, o_ref, avg_pad, max_pad, *, H, W):
    # w_ref   : SMEM f32[2*K*K]        flattened conv weight, layout (cin, ky, kx)
    # x_ref   : VMEM f32[Nb, C, H, W]  unpadded input block
    # o_ref   : VMEM f32[Nb, H, W]
    # avg_pad : VMEM f32[Nb, H+2*PAD, W+2*PAD] scratch (zero halo)
    # max_pad : VMEM f32[Nb, H+2*PAD, W+2*PAD] scratch (zero halo)
    x = x_ref[...]                              # (Nb, C, H, W)

    # Channel reductions over interior pixels only.
    avg = jnp.mean(x, axis=1)                   # (Nb, H, W)
    mx = jnp.max(x, axis=1)                     # (Nb, H, W)

    # Zero halo + interior write.  Zeroed every step: it is tiny, and stays
    # correct even if the parallel grid axis is sharded across TensorCores
    # (each core owns its own scratch instance).
    avg_pad[...] = jnp.zeros_like(avg_pad)
    max_pad[...] = jnp.zeros_like(max_pad)
    avg_pad[:, PAD:PAD + H, PAD:PAD + W] = avg
    max_pad[:, PAD:PAD + H, PAD:PAD + W] = mx

    a_full = avg_pad[...]                       # (Nb, Hp, Wp)
    m_full = max_pad[...]

    nb = x.shape[0]
    acc = jnp.zeros((nb, H, W), jnp.float32)    # register-resident accumulator
    # 7x7 conv over the 2 "channels" (avg, max), fully unrolled.
    # Lane-direction (kx) shift hoisted out of the inner (ky) loop.
    for kx in range(K):
        a_col = a_full[:, :, kx:kx + W]         # (Nb, Hp, W)
        m_col = m_full[:, :, kx:kx + W]
        for ky in range(K):
            w_avg = w_ref[ky * K + kx]
            w_max = w_ref[K * K + ky * K + kx]
            acc = (acc
                   + w_avg * a_col[:, ky:ky + H, :]
                   + w_max * m_col[:, ky:ky + H, :])

    o_ref[...] = jax.nn.sigmoid(acc)


def _pick_batch_block(N, C, H, W, max_bytes=4 << 20, max_nb=8):
    """Largest divisor of N (<= max_nb) whose input block stays under max_bytes."""
    per_image = C * H * W * 4
    nb = 1
    for d in range(1, min(N, max_nb) + 1):
        if N % d == 0 and d * per_image <= max_bytes:
            nb = d
    return nb


def spatial_attention(x, weight):
    """x: f32[N, C, H, W];  weight: f32[1, 2, K, K] (PyTorch conv layout)."""
    N, C, H, W = x.shape
    Hp, Wp = H + 2 * PAD, W + 2 * PAD
    Nb = _pick_batch_block(N, C, H, W)
    w_flat = weight.reshape(-1).astype(jnp.float32)          # (2*K*K,)

    kernel = functools.partial(_sam_kernel, H=H, W=W)
    out = pl.pallas_call(
        kernel,
        out_shape=jax.ShapeDtypeStruct((N, H, W), jnp.float32),
        grid=(N // Nb,),
        in_specs=[
            # Invariant 392-byte weight, whole array staged to SMEM for cheap
            # scalar reads.
            pl.BlockSpec(memory_space=pltpu.MemorySpace.SMEM),
            # Unpadded input block; last two dims == full array dims.
            pl.BlockSpec((Nb, C, H, W), lambda n: (n, 0, 0, 0)),
        ],
        out_specs=pl.BlockSpec((Nb, H, W), lambda n: (n, 0, 0)),
        scratch_shapes=[
            pltpu.VMEM((Nb, Hp, Wp), jnp.float32),   # padded avg plane
            pltpu.VMEM((Nb, Hp, Wp), jnp.float32),   # padded max plane
        ],
        compiler_params=pltpu.CompilerParams(
            dimension_semantics=("parallel",)),
    )(w_flat, x)
    return out[:, None, :, :]                                 # (N, 1, H, W)


def _reference(x, weight):
    avg = jnp.mean(x, axis=1, keepdims=True)
    mx = jnp.max(x, axis=1, keepdims=True)
    feat = jnp.concatenate([avg, mx], axis=1)
    y = jax.lax.conv_general_dilated(
        feat, weight, window_strides=(1, 1), padding=((PAD, PAD), (PAD, PAD)),
        dimension_numbers=("NCHW", "OIHW", "NCHW"))
    return jax.nn.sigmoid(y)


if __name__ == "__main__":
    key = jax.random.PRNGKey(0)
    key_x, key_w = jax.random.split(key)

    N, C, H, W = 2, 4, 16, 16
    x = jax.random.normal(key_x, (N, C, H, W), dtype=jnp.float32)

    # Deterministic init mimicking PyTorch default Conv2d (uniform, bound = 1/sqrt(fan_in)).
    fan_in = 2 * K * K
    bound = 1.0 / np.sqrt(fan_in)
    weight = jax.random.uniform(key_w, (1, 2, K, K), minval=-bound, maxval=bound,
                                dtype=jnp.float32)

    out = spatial_attention(x, weight)
    out = jax.block_until_ready(out)

    ref = _reference(x, weight)
    np.testing.assert_allclose(np.asarray(out), np.asarray(ref),
                               rtol=1e-4, atol=1e-5)
    print("KERNEL_OK")
</pallas_src>

<mosaic_0001>
module attributes {stable_mosaic.version = 11 : i64} {
  func.func @_sam_kernel(%arg0: i32, %arg1: memref<98xf32, #tpu.memory_space<smem>>, %arg2: memref<2x4x16x16xf32, #tpu.memory_space<vmem>>, %arg3: memref<2x16x16xf32, #tpu.memory_space<vmem>>, %arg4: memref<2x22x22xf32, #tpu.memory_space<vmem>>, %arg5: memref<2x22x22xf32, #tpu.memory_space<vmem>>) attributes {dimension_semantics = [#tpu.dimension_semantics<parallel>], iteration_bounds = array<i64: 1>, scalar_prefetch = 0 : i64, scratch_operands = 2 : i64, tpu.core_type = #tpu.core_type<tc>, window_params = [{transform_indices = @transform_0, window_bounds = array<i64: 98>}, {transform_indices = @transform_1, window_bounds = array<i64: 2, 4, 16, 16>}, {transform_indices = @transform_2, window_bounds = array<i64: 2, 16, 16>}]} {
    %c0 = arith.constant 0 : index
    %c0_0 = arith.constant 0 : index
    %c0_1 = arith.constant 0 : index
    %c0_2 = arith.constant 0 : index
    %0 = vector.load %arg2[%c0, %c0_0, %c0_1, %c0_2] : memref<2x4x16x16xf32, #tpu.memory_space<vmem>>, vector<2x4x16x16xf32>
    %cst = arith.constant dense<0.000000e+00> : vector<2x16x16xf32>
    %1 = vector.multi_reduction <add>, %0, %cst [1] : vector<2x4x16x16xf32> to vector<2x16x16xf32>
    %cst_3 = arith.constant 4.000000e+00 : f32
    %2 = vector.broadcast %cst_3 : f32 to vector<2x16x16xf32>
    %3 = arith.divf %1, %2 : vector<2x16x16xf32>
    %cst_4 = arith.constant dense<0xFF800000> : vector<2x16x16xf32>
    %4 = vector.multi_reduction <maximumf>, %0, %cst_4 [1] : vector<2x4x16x16xf32> to vector<2x16x16xf32>
    %cst_5 = arith.constant 0.000000e+00 : f32
    %5 = vector.broadcast %cst_5 : f32 to vector<2x22x22xf32>
    %c0_6 = arith.constant 0 : index
    %c0_7 = arith.constant 0 : index
    %c0_8 = arith.constant 0 : index
    %6 = vector.load %arg4[%c0_6, %c0_7, %c0_8] : memref<2x22x22xf32, #tpu.memory_space<vmem>>, vector<2x22x22xf32>
    tpu.vector_store %arg4[%c0_6, %c0_7, %c0_8], %5 {strides = array<i32>} : memref<2x22x22xf32, #tpu.memory_space<vmem>>, vector<2x22x22xf32>,
    %cst_9 = arith.constant 0.000000e+00 : f32
    %7 = vector.broadcast %cst_9 : f32 to vector<2x22x22xf32>
    %c0_10 = arith.constant 0 : index
    %c0_11 = arith.constant 0 : index
    %c0_12 = arith.constant 0 : index
    %8 = vector.load %arg5[%c0_10, %c0_11, %c0_12] : memref<2x22x22xf32, #tpu.memory_space<vmem>>, vector<2x22x22xf32>
    tpu.vector_store %arg5[%c0_10, %c0_11, %c0_12], %7 {strides = array<i32>} : memref<2x22x22xf32, #tpu.memory_space<vmem>>, vector<2x22x22xf32>,
    %c0_13 = arith.constant 0 : index
    %c3 = arith.constant 3 : index
    %c3_14 = arith.constant 3 : index
    %9 = vector.load %arg4[%c0_13, %c3, %c3_14] : memref<2x22x22xf32, #tpu.memory_space<vmem>>, vector<2x16x16xf32>
    tpu.vector_store %arg4[%c0_13, %c3, %c3_14], %3 {strides = array<i32>} : memref<2x22x22xf32, #tpu.memory_space<vmem>>, vector<2x16x16xf32>,
    %c0_15 = arith.constant 0 : index
    %c3_16 = arith.constant 3 : index
    %c3_17 = arith.constant 3 : index
    %10 = vector.load %arg5[%c0_15, %c3_16, %c3_17] : memref<2x22x22xf32, #tpu.memory_space<vmem>>, vector<2x16x16xf32>
    tpu.vector_store %arg5[%c0_15, %c3_16, %c3_17], %4 {strides = array<i32>} : memref<2x22x22xf32, #tpu.memory_space<vmem>>, vector<2x16x16xf32>,
    %c0_18 = arith.constant 0 : index
    %c0_19 = arith.constant 0 : index
    %c0_20 = arith.constant 0 : index
    %11 = vector.load %arg4[%c0_18, %c0_19, %c0_20] : memref<2x22x22xf32, #tpu.memory_space<vmem>>, vector<2x22x22xf32>
    %c0_21 = arith.constant 0 : index
    %c0_22 = arith.constant 0 : index
    %c0_23 = arith.constant 0 : index
    %12 = vector.load %arg5[%c0_21, %c0_22, %c0_23] : memref<2x22x22xf32, #tpu.memory_space<vmem>>, vector<2x22x22xf32>
    %cst_24 = arith.constant 0.000000e+00 : f32
    %13 = vector.broadcast %cst_24 : f32 to vector<2x16x16xf32>
    %14 = vector.extract_strided_slice %11 {offsets = [0, 0, 0], sizes = [2, 22, 16], strides = [1, 1, 1]} : vector<2x22x22xf32> to vector<2x22x16xf32>
    %15 = vector.extract_strided_slice %12 {offsets = [0, 0, 0], sizes = [2, 22, 16], strides = [1, 1, 1]} : vector<2x22x22xf32> to vector<2x22x16xf32>
    %c0_25 = arith.constant 0 : index
    %16 = memref.load %arg1[%c0_25] : memref<98xf32, #tpu.memory_space<smem>>
    %c49 = arith.constant 49 : index
    %17 = memref.load %arg1[%c49] : memref<98xf32, #tpu.memory_space<smem>>
    %18 = vector.extract_strided_slice %14 {offsets = [0, 0, 0], sizes = [2, 16, 16], strides = [1, 1, 1]} : vector<2x22x16xf32> to vector<2x16x16xf32>
    %19 = vector.broadcast %16 : f32 to vector<2x16x16xf32>
    %20 = arith.mulf %19, %18 : vector<2x16x16xf32>
    %21 = arith.addf %13, %20 : vector<2x16x16xf32>
    %22 = vector.extract_strided_slice %15 {offsets = [0, 0, 0], sizes = [2, 16, 16], strides = [1, 1, 1]} : vector<2x22x16xf32> to vector<2x16x16xf32>
    %23 = vector.broadcast %17 : f32 to vector<2x16x16xf32>
    %24 = arith.mulf %23, %22 : vector<2x16x16xf32>
    %25 = arith.addf %21, %24 : vector<2x16x16xf32>
    %c7 = arith.constant 7 : index
    %26 = memref.load %arg1[%c7] : memref<98xf32, #tpu.memory_space<smem>>
    %c56 = arith.constant 56 : index
    %27 = memref.load %arg1[%c56] : memref<98xf32, #tpu.memory_space<smem>>
    %28 = vector.extract_strided_slice %14 {offsets = [0, 1, 0], sizes = [2, 16, 16], strides = [1, 1, 1]} : vector<2x22x16xf32> to vector<2x16x16xf32>
    %29 = vector.broadcast %26 : f32 to vector<2x16x16xf32>
    %30 = arith.mulf %29, %28 : vector<2x16x16xf32>
    %31 = arith.addf %25, %30 : vector<2x16x16xf32>
    %32 = vector.extract_strided_slice %15 {offsets = [0, 1, 0], sizes = [2, 16, 16], strides = [1, 1, 1]} : vector<2x22x16xf32> to vector<2x16x16xf32>
    %33 = vector.broadcast %27 : f32 to vector<2x16x16xf32>
    %34 = arith.mulf %33, %32 : vector<2x16x16xf32>
    %35 = arith.addf %31, %34 : vector<2x16x16xf32>
    %c14 = arith.constant 14 : index
    %36 = memref.load %arg1[%c14] : memref<98xf32, #tpu.memory_space<smem>>
    %c63 = arith.constant 63 : index
    %37 = memref.load %arg1[%c63] : memref<98xf32, #tpu.memory_space<smem>>
    %38 = vector.extract_strided_slice %14 {offsets = [0, 2, 0], sizes = [2, 16, 16], strides = [1, 1, 1]} : vector<2x22x16xf32> to vector<2x16x16xf32>
    %39 = vector.broadcast %36 : f32 to vector<2x16x16xf32>
    %40 = arith.mulf %39, %38 : vector<2x16x16xf32>
    %41 = arith.addf %35, %40 : vector<2x16x16xf32>
    %42 = vector.extract_strided_slice %15 {offsets = [0, 2, 0], sizes = [2, 16, 16], strides = [1, 1, 1]} : vector<2x22x16xf32> to vector<2x16x16xf32>
    %43 = vector.broadcast %37 : f32 to vector<2x16x16xf32>
    %44 = arith.mulf %43, %42 : vector<2x16x16xf32>
    %45 = arith.addf %41, %44 : vector<2x16x16xf32>
    %c21 = arith.constant 21 : index
    %46 = memref.load %arg1[%c21] : memref<98xf32, #tpu.memory_space<smem>>
    %c70 = arith.constant 70 : index
    %47 = memref.load %arg1[%c70] : memref<98xf32, #tpu.memory_space<smem>>
    %48 = vector.extract_strided_slice %14 {offsets = [0, 3, 0], sizes = [2, 16, 16], strides = [1, 1, 1]} : vector<2x22x16xf32> to vector<2x16x16xf32>
    %49 = vector.broadcast %46 : f32 to vector<2x16x16xf32>
    %50 = arith.mulf %49, %48 : vector<2x16x16xf32>
    %51 = arith.addf %45, %50 : vector<2x16x16xf32>
    %52 = vector.extract_strided_slice %15 {offsets = [0, 3, 0], sizes = [2, 16, 16], strides = [1, 1, 1]} : vector<2x22x16xf32> to vector<2x16x16xf32>
    %53 = vector.broadcast %47 : f32 to vector<2x16x16xf32>
    %54 = arith.mulf %53, %52 : vector<2x16x16xf32>
    %55 = arith.addf %51, %54 : vector<2x16x16xf32>
    %c28 = arith.constant 28 : index
    %56 = memref.load %arg1[%c28] : memref<98xf32, #tpu.memory_space<smem>>
    %c77 = arith.constant 77 : index
    %57 = memref.load %arg1[%c77] : memref<98xf32, #tpu.memory_space<smem>>
    %58 = vector.extract_strided_slice %14 {offsets = [0, 4, 0], sizes = [2, 16, 16], strides = [1, 1, 1]} : vector<2x22x16xf32> to vector<2x16x16xf32>
    %59 = vector.broadcast %56 : f32 to vector<2x16x16xf32>
    %60 = arith.mulf %59, %58 : vector<2x16x16xf32>
    %61 = arith.addf %55, %60 : vector<2x16x16xf32>
    %62 = vector.extract_strided_slice %15 {offsets = [0, 4, 0], sizes = [2, 16, 16], strides = [1, 1, 1]} : vector<2x22x16xf32> to vector<2x16x16xf32>
    %63 = vector.broadcast %57 : f32 to vector<2x16x16xf32>
    %64 = arith.mulf %63, %62 : vector<2x16x16xf32>
    %65 = arith.addf %61, %64 : vector<2x16x16xf32>
    %c35 = arith.constant 35 : index
    %66 = memref.load %arg1[%c35] : memref<98xf32, #tpu.memory_space<smem>>
    %c84 = arith.constant 84 : index
    %67 = memref.load %arg1[%c84] : memref<98xf32, #tpu.memory_space<smem>>
    %68 = vector.extract_strided_slice %14 {offsets = [0, 5, 0], sizes = [2, 16, 16], strides = [1, 1, 1]} : vector<2x22x16xf32> to vector<2x16x16xf32>
    %69 = vector.broadcast %66 : f32 to vector<2x16x16xf32>
    %70 = arith.mulf %69, %68 : vector<2x16x16xf32>
    %71 = arith.addf %65, %70 : vector<2x16x16xf32>
    %72 = vector.extract_strided_slice %15 {offsets = [0, 5, 0], sizes = [2, 16, 16], strides = [1, 1, 1]} : vector<2x22x16xf32> to vector<2x16x16xf32>
    %73 = vector.broadcast %67 : f32 to vector<2x16x16xf32>
    %74 = arith.mulf %73, %72 : vector<2x16x16xf32>
    %75 = arith.addf %71, %74 : vector<2x16x16xf32>
    %c42 = arith.constant 42 : index
    %76 = memref.load %arg1[%c42] : memref<98xf32, #tpu.memory_space<smem>>
    %c91 = arith.constant 91 : index
    %77 = memref.load %arg1[%c91] : memref<98xf32, #tpu.memory_space<smem>>
    %78 = vector.extract_strided_slice %14 {offsets = [0, 6, 0], sizes = [2, 16, 16], strides = [1, 1, 1]} : vector<2x22x16xf32> to vector<2x16x16xf32>
    %79 = vector.broadcast %76 : f32 to vector<2x16x16xf32>
    %80 = arith.mulf %79, %78 : vector<2x16x16xf32>
    %81 = arith.addf %75, %80 : vector<2x16x16xf32>
    %82 = vector.extract_strided_slice %15 {offsets = [0, 6, 0], sizes = [2, 16, 16], strides = [1, 1, 1]} : vector<2x22x16xf32> to vector<2x16x16xf32>
    %83 = vector.broadcast %77 : f32 to vector<2x16x16xf32>
    %84 = arith.mulf %83, %82 : vector<2x16x16xf32>
    %85 = arith.addf %81, %84 : vector<2x16x16xf32>
    %86 = vector.extract_strided_slice %11 {offsets = [0, 0, 1], sizes = [2, 22, 16], strides = [1, 1, 1]} : vector<2x22x22xf32> to vector<2x22x16xf32>
    %87 = vector.extract_strided_slice %12 {offsets = [0, 0, 1], sizes = [2, 22, 16], strides = [1, 1, 1]} : vector<2x22x22xf32> to vector<2x22x16xf32>
    %c1 = arith.constant 1 : index
    %88 = memref.load %arg1[%c1] : memref<98xf32, #tpu.memory_space<smem>>
    %c50 = arith.constant 50 : index
    %89 = memref.load %arg1[%c50] : memref<98xf32, #tpu.memory_space<smem>>
    %90 = vector.extract_strided_slice %86 {offsets = [0, 0, 0], sizes = [2, 16, 16], strides = [1, 1, 1]} : vector<2x22x16xf32> to vector<2x16x16xf32>
    %91 = vector.broadcast %88 : f32 to vector<2x16x16xf32>
    %92 = arith.mulf %91, %90 : vector<2x16x16xf32>
    %93 = arith.addf %85, %92 : vector<2x16x16xf32>
    %94 = vector.extract_strided_slice %87 {offsets = [0, 0, 0], sizes = [2, 16, 16], strides = [1, 1, 1]} : vector<2x22x16xf32> to vector<2x16x16xf32>
    %95 = vector.broadcast %89 : f32 to vector<2x16x16xf32>
    %96 = arith.mulf %95, %94 : vector<2x16x16xf32>
    %97 = arith.addf %93, %96 : vector<2x16x16xf32>
    %c8 = arith.constant 8 : index
    %98 = memref.load %arg1[%c8] : memref<98xf32, #tpu.memory_space<smem>>
    %c57 = arith.constant 57 : index
    %99 = memref.load %arg1[%c57] : memref<98xf32, #tpu.memory_space<smem>>
    %100 = vector.extract_strided_slice %86 {offsets = [0, 1, 0], sizes = [2, 16, 16], strides = [1, 1, 1]} : vector<2x22x16xf32> to vector<2x16x16xf32>
    %101 = vector.broadcast %98 : f32 to vector<2x16x16xf32>
    %102 = arith.mulf %101, %100 : vector<2x16x16xf32>
    %103 = arith.addf %97, %102 : vector<2x16x16xf32>
    %104 = vector.extract_strided_slice %87 {offsets = [0, 1, 0], sizes = [2, 16, 16], strides = [1, 1, 1]} : vector<2x22x16xf32> to vector<2x16x16xf32>
    %105 = vector.broadcast %99 : f32 to vector<2x16x16xf32>
    %106 = arith.mulf %105, %104 : vector<2x16x16xf32>
    %107 = arith.addf %103, %106 : vector<2x16x16xf32>
    %c15 = arith.constant 15 : index
    %108 = memref.load %arg1[%c15] : memref<98xf32, #tpu.memory_space<smem>>
    %c64 = arith.constant 64 : index
    %109 = memref.load %arg1[%c64] : memref<98xf32, #tpu.memory_space<smem>>
    %110 = vector.extract_strided_slice %86 {offsets = [0, 2, 0], sizes = [2, 16, 16], strides = [1, 1, 1]} : vector<2x22x16xf32> to vector<2x16x16xf32>
    %111 = vector.broadcast %108 : f32 to vector<2x16x16xf32>
    %112 = arith.mulf %111, %110 : vector<2x16x16xf32>
    %113 = arith.addf %107, %112 : vector<2x16x16xf32>
    %114 = vector.extract_strided_slice %87 {offsets = [0, 2, 0], sizes = [2, 16, 16], strides = [1, 1, 1]} : vector<2x22x16xf32> to vector<2x16x16xf32>
    %115 = vector.broadcast %109 : f32 to vector<2x16x16xf32>
    %116 = arith.mulf %115, %114 : vector<2x16x16xf32>
    %117 = arith.addf %113, %116 : vector<2x16x16xf32>
    %c22 = arith.constant 22 : index
    %118 = memref.load %arg1[%c22] : memref<98xf32, #tpu.memory_space<smem>>
    %c71 = arith.constant 71 : index
    %119 = memref.load %arg1[%c71] : memref<98xf32, #tpu.memory_space<smem>>
    %120 = vector.extract_strided_slice %86 {offsets = [0, 3, 0], sizes = [2, 16, 16], strides = [1, 1, 1]} : vector<2x22x16xf32> to vector<2x16x16xf32>
    %121 = vector.broadcast %118 : f32 to vector<2x16x16xf32>
    %122 = arith.mulf %121, %120 : vector<2x16x16xf32>
    %123 = arith.addf %117, %122 : vector<2x16x16xf32>
    %124 = vector.extract_strided_slice %87 {offsets = [0, 3, 0], sizes = [2, 16, 16], strides = [1, 1, 1]} : vector<2x22x16xf32> to vector<2x16x16xf32>
    %125 = vector.broadcast %119 : f32 to vector<2x16x16xf32>
    %126 = arith.mulf %125, %124 : vector<2x16x16xf32>
    %127 = arith.addf %123, %126 : vector<2x16x16xf32>
    %c29 = arith.constant 29 : index
    %128 = memref.load %arg1[%c29] : memref<98xf32, #tpu.memory_space<smem>>
    %c78 = arith.constant 78 : index
    %129 = memref.load %arg1[%c78] : memref<98xf32, #tpu.memory_space<smem>>
    %130 = vector.extract_strided_slice %86 {offsets = [0, 4, 0], sizes = [2, 16, 16], strides = [1, 1, 1]} : vector<2x22x16xf32> to vector<2x16x16xf32>
    %131 = vector.broadcast %128 : f32 to vector<2x16x16xf32>
    %132 = arith.mulf %131, %130 : vector<2x16x16xf32>
    %133 = arith.addf %127, %132 : vector<2x16x16xf32>
    %134 = vector.extract_strided_slice %87 {offsets = [0, 4, 0], sizes = [2, 16, 16], strides = [1, 1, 1]} : vector<2x22x16xf32> to vector<2x16x16xf32>
    %135 = vector.broadcast %129 : f32 to vector<2x16x16xf32>
    %136 = arith.mulf %135, %134 : vector<2x16x16xf32>
    %137 = arith.addf %133, %136 : vector<2x16x16xf32>
    %c36 = arith.constant 36 : index
    %138 = memref.load %arg1[%c36] : memref<98xf32, #tpu.memory_space<smem>>
    %c85 = arith.constant 85 : index
    %139 = memref.load %arg1[%c85] : memref<98xf32, #tpu.memory_space<smem>>
    %140 = vector.extract_strided_slice %86 {offsets = [0, 5, 0], sizes = [2, 16, 16], strides = [1, 1, 1]} : vector<2x22x16xf32> to vector<2x16x16xf32>
    %141 = vector.broadcast %138 : f32 to vector<2x16x16xf32>
    %142 = arith.mulf %141, %140 : vector<2x16x16xf32>
    %143 = arith.addf %137, %142 : vector<2x16x16xf32>
    %144 = vector.extract_strided_slice %87 {offsets = [0, 5, 0], sizes = [2, 16, 16], strides = [1, 1, 1]} : vector<2x22x16xf32> to vector<2x16x16xf32>
    %145 = vector.broadcast %139 : f32 to vector<2x16x16xf32>
    %146 = arith.mulf %145, %144 : vector<2x16x16xf32>
    %147 = arith.addf %143, %146 : vector<2x16x16xf32>
    %c43 = arith.constant 43 : index
    %148 = memref.load %arg1[%c43] : memref<98xf32, #tpu.memory_space<smem>>
    %c92 = arith.constant 92 : index
    %149 = memref.load %arg1[%c92] : memref<98xf32, #tpu.memory_space<smem>>
    %150 = vector.extract_strided_slice %86 {offsets = [0, 6, 0], sizes = [2, 16, 16], strides = [1, 1, 1]} : vector<2x22x16xf32> to vector<2x16x16xf32>
    %151 = vector.broadcast %148 : f32 to vector<2x16x16xf32>
    %152 = arith.mulf %151, %150 : vector<2x16x16xf32>
    %153 = arith.addf %147, %152 : vector<2x16x16xf32>
    %154 = vector.extract_strided_slice %87 {offsets = [0, 6, 0], sizes = [2, 16, 16], strides = [1, 1, 1]} : vector<2x22x16xf32> to vector<2x16x16xf32>
    %155 = vector.broadcast %149 : f32 to vector<2x16x16xf32>
    %156 = arith.mulf %155, %154 : vector<2x16x16xf32>
    %157 = arith.addf %153, %156 : vector<2x16x16xf32>
    %158 = vector.extract_strided_slice %11 {offsets = [0, 0, 2], sizes = [2, 22, 16], strides = [1, 1, 1]} : vector<2x22x22xf32> to vector<2x22x16xf32>
    %159 = vector.extract_strided_slice %12 {offsets = [0, 0, 2], sizes = [2, 22, 16], strides = [1, 1, 1]} : vector<2x22x22xf32> to vector<2x22x16xf32>
    %c2 = arith.constant 2 : index
    %160 = memref.load %arg1[%c2] : memref<98xf32, #tpu.memory_space<smem>>
    %c51 = arith.constant 51 : index
    %161 = memref.load %arg1[%c51] : memref<98xf32, #tpu.memory_space<smem>>
    %162 = vector.extract_strided_slice %158 {offsets = [0, 0, 0], sizes = [2, 16, 16], strides = [1, 1, 1]} : vector<2x22x16xf32> to vector<2x16x16xf32>
    %163 = vector.broadcast %160 : f32 to vector<2x16x16xf32>
    %164 = arith.mulf %163, %162 : vector<2x16x16xf32>
    %165 = arith.addf %157, %164 : vector<2x16x16xf32>
    %166 = vector.extract_strided_slice %159 {offsets = [0, 0, 0], sizes = [2, 16, 16], strides = [1, 1, 1]} : vector<2x22x16xf32> to vector<2x16x16xf32>
    %167 = vector.broadcast %161 : f32 to vector<2x16x16xf32>
    %168 = arith.mulf %167, %166 : vector<2x16x16xf32>
    %169 = arith.addf %165, %168 : vector<2x16x16xf32>
    %c9 = arith.constant 9 : index
    %170 = memref.load %arg1[%c9] : memref<98xf32, #tpu.memory_space<smem>>
    %c58 = arith.constant 58 : index
    %171 = memref.load %arg1[%c58] : memref<98xf32, #tpu.memory_space<smem>>
    %172 = vector.extract_strided_slice %158 {offsets = [0, 1, 0], sizes = [2, 16, 16], strides = [1, 1, 1]} : vector<2x22x16xf32> to vector<2x16x16xf32>
    %173 = vector.broadcast %170 : f32 to vector<2x16x16xf32>
    %174 = arith.mulf %173, %172 : vector<2x16x16xf32>
    %175 = arith.addf %169, %174 : vector<2x16x16xf32>
    %176 = vector.extract_strided_slice %159 {offsets = [0, 1, 0], sizes = [2, 16, 16], strides = [1, 1, 1]} : vector<2x22x16xf32> to vector<2x16x16xf32>
    %177 = vector.broadcast %171 : f32 to vector<2x16x16xf32>
    %178 = arith.mulf %177, %176 : vector<2x16x16xf32>
    %179 = arith.addf %175, %178 : vector<2x16x16xf32>
    %c16 = arith.constant 16 : index
    %180 = memref.load %arg1[%c16] : memref<98xf32, #tpu.memory_space<smem>>
    %c65 = arith.constant 65 : index
    %181 = memref.load %arg1[%c65] : memref<98xf32, #tpu.memory_space<smem>>
    %182 = vector.extract_strided_slice %158 {offsets = [0, 2, 0], sizes = [2, 16, 16], strides = [1, 1, 1]} : vector<2x22x16xf32> to vector<2x16x16xf32>
    %183 = vector.broadcast %180 : f32 to vector<2x16x16xf32>
    %184 = arith.mulf %183, %182 : vector<2x16x16xf32>
    %185 = arith.addf %179, %184 : vector<2x16x16xf32>
    %186 = vector.extract_strided_slice %159 {offsets = [0, 2, 0], sizes = [2, 16, 16], strides = [1, 1, 1]} : vector<2x22x16xf32> to vector<2x16x16xf32>
    %187 = vector.broadcast %181 : f32 to vector<2x16x16xf32>
    %188 = arith.mulf %187, %186 : vector<2x16x16xf32>
    %189 = arith.addf %185, %188 : vector<2x16x16xf32>
    %c23 = arith.constant 23 : index
    %190 = memref.load %arg1[%c23] : memref<98xf32, #tpu.memory_space<smem>>
    %c72 = arith.constant 72 : index
    %191 = memref.load %arg1[%c72] : memref<98xf32, #tpu.memory_space<smem>>
    %192 = vector.extract_strided_slice %158 {offsets = [0, 3, 0], sizes = [2, 16, 16], strides = [1, 1, 1]} : vector<2x22x16xf32> to vector<2x16x16xf32>
    %193 = vector.broadcast %190 : f32 to vector<2x16x16xf32>
    %194 = arith.mulf %193, %192 : vector<2x16x16xf32>
    %195 = arith.addf %189, %194 : vector<2x16x16xf32>
    %196 = vector.extract_strided_slice %159 {offsets = [0, 3, 0], sizes = [2, 16, 16], strides = [1, 1, 1]} : vector<2x22x16xf32> to vector<2x16x16xf32>
    %197 = vector.broadcast %191 : f32 to vector<2x16x16xf32>
    %198 = arith.mulf %197, %196 : vector<2x16x16xf32>
    %199 = arith.addf %195, %198 : vector<2x16x16xf32>
    %c30 = arith.constant 30 : index
    %200 = memref.load %arg1[%c30] : memref<98xf32, #tpu.memory_space<smem>>
    %c79 = arith.constant 79 : index
    %201 = memref.load %arg1[%c79] : memref<98xf32, #tpu.memory_space<smem>>
    %202 = vector.extract_strided_slice %158 {offsets = [0, 4, 0], sizes = [2, 16, 16], strides = [1, 1, 1]} : vector<2x22x16xf32> to vector<2x16x16xf32>
    %203 = vector.broadcast %200 : f32 to vector<2x16x16xf32>
    %204 = arith.mulf %203, %202 : vector<2x16x16xf32>
    %205 = arith.addf %199, %204 : vector<2x16x16xf32>
    %206 = vector.extract_strided_slice %159 {offsets = [0, 4, 0], sizes = [2, 16, 16], strides = [1, 1, 1]} : vector<2x22x16xf32> to vector<2x16x16xf32>
    %207 = vector.broadcast %201 : f32 to vector<2x16x16xf32>
    %208 = arith.mulf %207, %206 : vector<2x16x16xf32>
    %209 = arith.addf %205, %208 : vector<2x16x16xf32>
    %c37 = arith.constant 37 : index
    %210 = memref.load %arg1[%c37] : memref<98xf32, #tpu.memory_space<smem>>
    %c86 = arith.constant 86 : index
    %211 = memref.load %arg1[%c86] : memref<98xf32, #tpu.memory_space<smem>>
    %212 = vector.extract_strided_slice %158 {offsets = [0, 5, 0], sizes = [2, 16, 16], strides = [1, 1, 1]} : vector<2x22x16xf32> to vector<2x16x16xf32>
    %213 = vector.broadcast %210 : f32 to vector<2x16x16xf32>
    %214 = arith.mulf %213, %212 : vector<2x16x16xf32>
    %215 = arith.addf %209, %214 : vector<2x16x16xf32>
    %216 = vector.extract_strided_slice %159 {offsets = [0, 5, 0], sizes = [2, 16, 16], strides = [1, 1, 1]} : vector<2x22x16xf32> to vector<2x16x16xf32>
    %217 = vector.broadcast %211 : f32 to vector<2x16x16xf32>
    %218 = arith.mulf %217, %216 : vector<2x16x16xf32>
    %219 = arith.addf %215, %218 : vector<2x16x16xf32>
    %c44 = arith.constant 44 : index
    %220 = memref.load %arg1[%c44] : memref<98xf32, #tpu.memory_space<smem>>
    %c93 = arith.constant 93 : index
    %221 = memref.load %arg1[%c93] : memref<98xf32, #tpu.memory_space<smem>>
    %222 = vector.extract_strided_slice %158 {offsets = [0, 6, 0], sizes = [2, 16, 16], strides = [1, 1, 1]} : vector<2x22x16xf32> to vector<2x16x16xf32>
    %223 = vector.broadcast %220 : f32 to vector<2x16x16xf32>
    %224 = arith.mulf %223, %222 : vector<2x16x16xf32>
    %225 = arith.addf %219, %224 : vector<2x16x16xf32>
    %226 = vector.extract_strided_slice %159 {offsets = [0, 6, 0], sizes = [2, 16, 16], strides = [1, 1, 1]} : vector<2x22x16xf32> to vector<2x16x16xf32>
    %227 = vector.broadcast %221 : f32 to vector<2x16x16xf32>
    %228 = arith.mulf %227, %226 : vector<2x16x16xf32>
    %229 = arith.addf %225, %228 : vector<2x16x16xf32>
    %230 = vector.extract_strided_slice %11 {offsets = [0, 0, 3], sizes = [2, 22, 16], strides = [1, 1, 1]} : vector<2x22x22xf32> to vector<2x22x16xf32>
    %231 = vector.extract_strided_slice %12 {offsets = [0, 0, 3], sizes = [2, 22, 16], strides = [1, 1, 1]} : vector<2x22x22xf32> to vector<2x22x16xf32>
    %c3_26 = arith.constant 3 : index
    %232 = memref.load %arg1[%c3_26] : memref<98xf32, #tpu.memory_space<smem>>
    %c52 = arith.constant 52 : index
    %233 = memref.load %arg1[%c52] : memref<98xf32, #tpu.memory_space<smem>>
    %234 = vector.extract_strided_slice %230 {offsets = [0, 0, 0], sizes = [2, 16, 16], strides = [1, 1, 1]} : vector<2x22x16xf32> to vector<2x16x16xf32>
    %235 = vector.broadcast %232 : f32 to vector<2x16x16xf32>
    %236 = arith.mulf %235, %234 : vector<2x16x16xf32>
    %237 = arith.addf %229, %236 : vector<2x16x16xf32>
    %238 = vector.extract_strided_slice %231 {offsets = [0, 0, 0], sizes = [2, 16, 16], strides = [1, 1, 1]} : vector<2x22x16xf32> to vector<2x16x16xf32>
    %239 = vector.broadcast %233 : f32 to vector<2x16x16xf32>
    %240 = arith.mulf %239, %238 : vector<2x16x16xf32>
    %241 = arith.addf %237, %240 : vector<2x16x16xf32>
    %c10 = arith.constant 10 : index
    %242 = memref.load %arg1[%c10] : memref<98xf32, #tpu.memory_space<smem>>
    %c59 = arith.constant 59 : index
    %243 = memref.load %arg1[%c59] : memref<98xf32, #tpu.memory_space<smem>>
    %244 = vector.extract_strided_slice %230 {offsets = [0, 1, 0], sizes = [2, 16, 16], strides = [1, 1, 1]} : vector<2x22x16xf32> to vector<2x16x16xf32>
    %245 = vector.broadcast %242 : f32 to vector<2x16x16xf32>
    %246 = arith.mulf %245, %244 : vector<2x16x16xf32>
    %247 = arith.addf %241, %246 : vector<2x16x16xf32>
    %248 = vector.extract_strided_slice %231 {offsets = [0, 1, 0], sizes = [2, 16, 16], strides = [1, 1, 1]} : vector<2x22x16xf32> to vector<2x16x16xf32>
    %249 = vector.broadcast %243 : f32 to vector<2x16x16xf32>
    %250 = arith.mulf %249, %248 : vector<2x16x16xf32>
    %251 = arith.addf %247, %250 : vector<2x16x16xf32>
    %c17 = arith.constant 17 : index
    %252 = memref.load %arg1[%c17] : memref<98xf32, #tpu.memory_space<smem>>
    %c66 = arith.constant 66 : index
    %253 = memref.load %arg1[%c66] : memref<98xf32, #tpu.memory_space<smem>>
    %254 = vector.extract_strided_slice %230 {offsets = [0, 2, 0], sizes = [2, 16, 16], strides = [1, 1, 1]} : vector<2x22x16xf32> to vector<2x16x16xf32>
    %255 = vector.broadcast %252 : f32 to vector<2x16x16xf32>
    %256 = arith.mulf %255, %254 : vector<2x16x16xf32>
    %257 = arith.addf %251, %256 : vector<2x16x16xf32>
    %258 = vector.extract_strided_slice %231 {offsets = [0, 2, 0], sizes = [2, 16, 16], strides = [1, 1, 1]} : vector<2x22x16xf32> to vector<2x16x16xf32>
    %259 = vector.broadcast %253 : f32 to vector<2x16x16xf32>
    %260 = arith.mulf %259, %258 : vector<2x16x16xf32>
    %261 = arith.addf %257, %260 : vector<2x16x16xf32>
    %c24 = arith.constant 24 : index
    %262 = memref.load %arg1[%c24] : memref<98xf32, #tpu.memory_space<smem>>
    %c73 = arith.constant 73 : index
    %263 = memref.load %arg1[%c73] : memref<98xf32, #tpu.memory_space<smem>>
    %264 = vector.extract_strided_slice %230 {offsets = [0, 3, 0], sizes = [2, 16, 16], strides = [1, 1, 1]} : vector<2x22x16xf32> to vector<2x16x16xf32>
    %265 = vector.broadcast %262 : f32 to vector<2x16x16xf32>
    %266 = arith.mulf %265, %264 : vector<2x16x16xf32>
    %267 = arith.addf %261, %266 : vector<2x16x16xf32>
    %268 = vector.extract_strided_slice %231 {offsets = [0, 3, 0], sizes = [2, 16, 16], strides = [1, 1, 1]} : vector<2x22x16xf32> to vector<2x16x16xf32>
    %269 = vector.broadcast %263 : f32 to vector<2x16x16xf32>
    %270 = arith.mulf %269, %268 : vector<2x16x16xf32>
    %271 = arith.addf %267, %270 : vector<2x16x16xf32>
    %c31 = arith.constant 31 : index
    %272 = memref.load %arg1[%c31] : memref<98xf32, #tpu.memory_space<smem>>
    %c80 = arith.constant 80 : index
    %273 = memref.load %arg1[%c80] : memref<98xf32, #tpu.memory_space<smem>>
    %274 = vector.extract_strided_slice %230 {offsets = [0, 4, 0], sizes = [2, 16, 16], strides = [1, 1, 1]} : vector<2x22x16xf32> to vector<2x16x16xf32>
    %275 = vector.broadcast %272 : f32 to vector<2x16x16xf32>
    %276 = arith.mulf %275, %274 : vector<2x16x16xf32>
    %277 = arith.addf %271, %276 : vector<2x16x16xf32>
    %278 = vector.extract_strided_slice %231 {offsets = [0, 4, 0], sizes = [2, 16, 16], strides = [1, 1, 1]} : vector<2x22x16xf32> to vector<2x16x16xf32>
    %279 = vector.broadcast %273 : f32 to vector<2x16x16xf32>
    %280 = arith.mulf %279, %278 : vector<2x16x16xf32>
    %281 = arith.addf %277, %280 : vector<2x16x16xf32>
    %c38 = arith.constant 38 : index
    %282 = memref.load %arg1[%c38] : memref<98xf32, #tpu.memory_space<smem>>
    %c87 = arith.constant 87 : index
    %283 = memref.load %arg1[%c87] : memref<98xf32, #tpu.memory_space<smem>>
    %284 = vector.extract_strided_slice %230 {offsets = [0, 5, 0], sizes = [2, 16, 16], strides = [1, 1, 1]} : vector<2x22x16xf32> to vector<2x16x16xf32>
    %285 = vector.broadcast %282 : f32 to vector<2x16x16xf32>
    %286 = arith.mulf %285, %284 : vector<2x16x16xf32>
    %287 = arith.addf %281, %286 : vector<2x16x16xf32>
    %288 = vector.extract_strided_slice %231 {offsets = [0, 5, 0], sizes = [2, 16, 16], strides = [1, 1, 1]} : vector<2x22x16xf32> to vector<2x16x16xf32>
    %289 = vector.broadcast %283 : f32 to vector<2x16x16xf32>
    %290 = arith.mulf %289, %288 : vector<2x16x16xf32>
    %291 = arith.addf %287, %290 : vector<2x16x16xf32>
    %c45 = arith.constant 45 : index
    %292 = memref.load %arg1[%c45] : memref<98xf32, #tpu.memory_space<smem>>
    %c94 = arith.constant 94 : index
    %293 = memref.load %arg1[%c94] : memref<98xf32, #tpu.memory_space<smem>>
    %294 = vector.extract_strided_slice %230 {offsets = [0, 6, 0], sizes = [2, 16, 16], strides = [1, 1, 1]} : vector<2x22x16xf32> to vector<2x16x16xf32>
    %295 = vector.broadcast %292 : f32 to vector<2x16x16xf32>
    %296 = arith.mulf %295, %294 : vector<2x16x16xf32>
    %297 = arith.addf %291, %296 : vector<2x16x16xf32>
    %298 = vector.extract_strided_slice %231 {offsets = [0, 6, 0], sizes = [2, 16, 16], strides = [1, 1, 1]} : vector<2x22x16xf32> to vector<2x16x16xf32>
    %299 = vector.broadcast %293 : f32 to vector<2x16x16xf32>
    %300 = arith.mulf %299, %298 : vector<2x16x16xf32>
    %301 = arith.addf %297, %300 : vector<2x16x16xf32>
    %302 = vector.extract_strided_slice %11 {offsets = [0, 0, 4], sizes = [2, 22, 16], strides = [1, 1, 1]} : vector<2x22x22xf32> to vector<2x22x16xf32>
    %303 = vector.extract_strided_slice %12 {offsets = [0, 0, 4], sizes = [2, 22, 16], strides = [1, 1, 1]} : vector<2x22x22xf32> to vector<2x22x16xf32>
    %c4 = arith.constant 4 : index
    %304 = memref.load %arg1[%c4] : memref<98xf32, #tpu.memory_space<smem>>
    %c53 = arith.constant 53 : index
    %305 = memref.load %arg1[%c53] : memref<98xf32, #tpu.memory_space<smem>>
    %306 = vector.extract_strided_slice %302 {offsets = [0, 0, 0], sizes = [2, 16, 16], strides = [1, 1, 1]} : vector<2x22x16xf32> to vector<2x16x16xf32>
    %307 = vector.broadcast %304 : f32 to vector<2x16x16xf32>
    %308 = arith.mulf %307, %306 : vector<2x16x16xf32>
    %309 = arith.addf %301, %308 : vector<2x16x16xf32>
    %310 = vector.extract_strided_slice %303 {offsets = [0, 0, 0], sizes = [2, 16, 16], strides = [1, 1, 1]} : vector<2x22x16xf32> to vector<2x16x16xf32>
    %311 = vector.broadcast %305 : f32 to vector<2x16x16xf32>
    %312 = arith.mulf %311, %310 : vector<2x16x16xf32>
    %313 = arith.addf %309, %312 : vector<2x16x16xf32>
    %c11 = arith.constant 11 : index
    %314 = memref.load %arg1[%c11] : memref<98xf32, #tpu.memory_space<smem>>
    %c60 = arith.constant 60 : index
    %315 = memref.load %arg1[%c60] : memref<98xf32, #tpu.memory_space<smem>>
    %316 = vector.extract_strided_slice %302 {offsets = [0, 1, 0], sizes = [2, 16, 16], strides = [1, 1, 1]} : vector<2x22x16xf32> to vector<2x16x16xf32>
    %317 = vector.broadcast %314 : f32 to vector<2x16x16xf32>
    %318 = arith.mulf %317, %316 : vector<2x16x16xf32>
    %319 = arith.addf %313, %318 : vector<2x16x16xf32>
    %320 = vector.extract_strided_slice %303 {offsets = [0, 1, 0], sizes = [2, 16, 16], strides = [1, 1, 1]} : vector<2x22x16xf32> to vector<2x16x16xf32>
    %321 = vector.broadcast %315 : f32 to vector<2x16x16xf32>
    %322 = arith.mulf %321, %320 : vector<2x16x16xf32>
    %323 = arith.addf %319, %322 : vector<2x16x16xf32>
    %c18 = arith.constant 18 : index
    %324 = memref.load %arg1[%c18] : memref<98xf32, #tpu.memory_space<smem>>
    %c67 = arith.constant 67 : index
    %325 = memref.load %arg1[%c67] : memref<98xf32, #tpu.memory_space<smem>>
    %326 = vector.extract_strided_slice %302 {offsets = [0, 2, 0], sizes = [2, 16, 16], strides = [1, 1, 1]} : vector<2x22x16xf32> to vector<2x16x16xf32>
    %327 = vector.broadcast %324 : f32 to vector<2x16x16xf32>
    %328 = arith.mulf %327, %326 : vector<2x16x16xf32>
    %329 = arith.addf %323, %328 : vector<2x16x16xf32>
    %330 = vector.extract_strided_slice %303 {offsets = [0, 2, 0], sizes = [2, 16, 16], strides = [1, 1, 1]} : vector<2x22x16xf32> to vector<2x16x16xf32>
    %331 = vector.broadcast %325 : f32 to vector<2x16x16xf32>
    %332 = arith.mulf %331, %330 : vector<2x16x16xf32>
    %333 = arith.addf %329, %332 : vector<2x16x16xf32>
    %c25 = arith.constant 25 : index
    %334 = memref.load %arg1[%c25] : memref<98xf32, #tpu.memory_space<smem>>
    %c74 = arith.constant 74 : index
    %335 = memref.load %arg1[%c74] : memref<98xf32, #tpu.memory_space<smem>>
    %336 = vector.extract_strided_slice %302 {offsets = [0, 3, 0], sizes = [2, 16, 16], strides = [1, 1, 1]} : vector<2x22x16xf32> to vector<2x16x16xf32>
    %337 = vector.broadcast %334 : f32 to vector<2x16x16xf32>
    %338 = arith.mulf %337, %336 : vector<2x16x16xf32>
    %339 = arith.addf %333, %338 : vector<2x16x16xf32>
    %340 = vector.extract_strided_slice %303 {offsets = [0, 3, 0], sizes = [2, 16, 16], strides = [1, 1, 1]} : vector<2x22x16xf32> to vector<2x16x16xf32>
    %341 = vector.broadcast %335 : f32 to vector<2x16x16xf32>
    %342 = arith.mulf %341, %340 : vector<2x16x16xf32>
    %343 = arith.addf %339, %342 : vector<2x16x16xf32>
    %c32 = arith.constant 32 : index
    %344 = memref.load %arg1[%c32] : memref<98xf32, #tpu.memory_space<smem>>
    %c81 = arith.constant 81 : index
    %345 = memref.load %arg1[%c81] : memref<98xf32, #tpu.memory_space<smem>>
    %346 = vector.extract_strided_slice %302 {offsets = [0, 4, 0], sizes = [2, 16, 16], strides = [1, 1, 1]} : vector<2x22x16xf32> to vector<2x16x16xf32>
    %347 = vector.broadcast %344 : f32 to vector<2x16x16xf32>
    %348 = arith.mulf %347, %346 : vector<2x16x16xf32>
    %349 = arith.addf %343, %348 : vector<2x16x16xf32>
    %350 = vector.extract_strided_slice %303 {offsets = [0, 4, 0], sizes = [2, 16, 16], strides = [1, 1, 1]} : vector<2x22x16xf32> to vector<2x16x16xf32>
    %351 = vector.broadcast %345 : f32 to vector<2x16x16xf32>
    %352 = arith.mulf %351, %350 : vector<2x16x16xf32>
    %353 = arith.addf %349, %352 : vector<2x16x16xf32>
    %c39 = arith.constant 39 : index
    %354 = memref.load %arg1[%c39] : memref<98xf32, #tpu.memory_space<smem>>
    %c88 = arith.constant 88 : index
    %355 = memref.load %arg1[%c88] : memref<98xf32, #tpu.memory_space<smem>>
    %356 = vector.extract_strided_slice %302 {offsets = [0, 5, 0], sizes = [2, 16, 16], strides = [1, 1, 1]} : vector<2x22x16xf32> to vector<2x16x16xf32>
    %357 = vector.broadcast %354 : f32 to vector<2x16x16xf32>
    %358 = arith.mulf %357, %356 : vector<2x16x16xf32>
    %359 = arith.addf %353, %358 : vector<2x16x16xf32>
    %360 = vector.extract_strided_slice %303 {offsets = [0, 5, 0], sizes = [2, 16, 16], strides = [1, 1, 1]} : vector<2x22x16xf32> to vector<2x16x16xf32>
    %361 = vector.broadcast %355 : f32 to vector<2x16x16xf32>
    %362 = arith.mulf %361, %360 : vector<2x16x16xf32>
    %363 = arith.addf %359, %362 : vector<2x16x16xf32>
    %c46 = arith.constant 46 : index
    %364 = memref.load %arg1[%c46] : memref<98xf32, #tpu.memory_space<smem>>
    %c95 = arith.constant 95 : index
    %365 = memref.load %arg1[%c95] : memref<98xf32, #tpu.memory_space<smem>>
    %366 = vector.extract_strided_slice %302 {offsets = [0, 6, 0], sizes = [2, 16, 16], strides = [1, 1, 1]} : vector<2x22x16xf32> to vector<2x16x16xf32>
    %367 = vector.broadcast %364 : f32 to vector<2x16x16xf32>
    %368 = arith.mulf %367, %366 : vector<2x16x16xf32>
    %369 = arith.addf %363, %368 : vector<2x16x16xf32>
    %370 = vector.extract_strided_slice %303 {offsets = [0, 6, 0], sizes = [2, 16, 16], strides = [1, 1, 1]} : vector<2x22x16xf32> to vector<2x16x16xf32>
    %371 = vector.broadcast %365 : f32 to vector<2x16x16xf32>
    %372 = arith.mulf %371, %370 : vector<2x16x16xf32>
    %373 = arith.addf %369, %372 : vector<2x16x16xf32>
    %374 = vector.extract_strided_slice %11 {offsets = [0, 0, 5], sizes = [2, 22, 16], strides = [1, 1, 1]} : vector<2x22x22xf32> to vector<2x22x16xf32>
    %375 = vector.extract_strided_slice %12 {offsets = [0, 0, 5], sizes = [2, 22, 16], strides = [1, 1, 1]} : vector<2x22x22xf32> to vector<2x22x16xf32>
    %c5 = arith.constant 5 : index
    %376 = memref.load %arg1[%c5] : memref<98xf32, #tpu.memory_space<smem>>
    %c54 = arith.constant 54 : index
    %377 = memref.load %arg1[%c54] : memref<98xf32, #tpu.memory_space<smem>>
    %378 = vector.extract_strided_slice %374 {offsets = [0, 0, 0], sizes = [2, 16, 16], strides = [1, 1, 1]} : vector<2x22x16xf32> to vector<2x16x16xf32>
    %379 = vector.broadcast %376 : f32 to vector<2x16x16xf32>
    %380 = arith.mulf %379, %378 : vector<2x16x16xf32>
    %381 = arith.addf %373, %380 : vector<2x16x16xf32>
    %382 = vector.extract_strided_slice %375 {offsets = [0, 0, 0], sizes = [2, 16, 16], strides = [1, 1, 1]} : vector<2x22x16xf32> to vector<2x16x16xf32>
    %383 = vector.broadcast %377 : f32 to vector<2x16x16xf32>
    %384 = arith.mulf %383, %382 : vector<2x16x16xf32>
    %385 = arith.addf %381, %384 : vector<2x16x16xf32>
    %c12 = arith.constant 12 : index
    %386 = memref.load %arg1[%c12] : memref<98xf32, #tpu.memory_space<smem>>
    %c61 = arith.constant 61 : index
    %387 = memref.load %arg1[%c61] : memref<98xf32, #tpu.memory_space<smem>>
    %388 = vector.extract_strided_slice %374 {offsets = [0, 1, 0], sizes = [2, 16, 16], strides = [1, 1, 1]} : vector<2x22x16xf32> to vector<2x16x16xf32>
    %389 = vector.broadcast %386 : f32 to vector<2x16x16xf32>
    %390 = arith.mulf %389, %388 : vector<2x16x16xf32>
    %391 = arith.addf %385, %390 : vector<2x16x16xf32>
    %392 = vector.extract_strided_slice %375 {offsets = [0, 1, 0], sizes = [2, 16, 16], strides = [1, 1, 1]} : vector<2x22x16xf32> to vector<2x16x16xf32>
    %393 = vector.broadcast %387 : f32 to vector<2x16x16xf32>
    %394 = arith.mulf %393, %392 : vector<2x16x16xf32>
    %395 = arith.addf %391, %394 : vector<2x16x16xf32>
    %c19 = arith.constant 19 : index
    %396 = memref.load %arg1[%c19] : memref<98xf32, #tpu.memory_space<smem>>
    %c68 = arith.constant 68 : index
    %397 = memref.load %arg1[%c68] : memref<98xf32, #tpu.memory_space<smem>>
    %398 = vector.extract_strided_slice %374 {offsets = [0, 2, 0], sizes = [2, 16, 16], strides = [1, 1, 1]} : vector<2x22x16xf32> to vector<2x16x16xf32>
    %399 = vector.broadcast %396 : f32 to vector<2x16x16xf32>
    %400 = arith.mulf %399, %398 : vector<2x16x16xf32>
    %401 = arith.addf %395, %400 : vector<2x16x16xf32>
    %402 = vector.extract_strided_slice %375 {offsets = [0, 2, 0], sizes = [2, 16, 16], strides = [1, 1, 1]} : vector<2x22x16xf32> to vector<2x16x16xf32>
    %403 = vector.broadcast %397 : f32 to vector<2x16x16xf32>
    %404 = arith.mulf %403, %402 : vector<2x16x16xf32>
    %405 = arith.addf %401, %404 : vector<2x16x16xf32>
    %c26 = arith.constant 26 : index
    %406 = memref.load %arg1[%c26] : memref<98xf32, #tpu.memory_space<smem>>
    %c75 = arith.constant 75 : index
    %407 = memref.load %arg1[%c75] : memref<98xf32, #tpu.memory_space<smem>>
    %408 = vector.extract_strided_slice %374 {offsets = [0, 3, 0], sizes = [2, 16, 16], strides = [1, 1, 1]} : vector<2x22x16xf32> to vector<2x16x16xf32>
    %409 = vector.broadcast %406 : f32 to vector<2x16x16xf32>
    %410 = arith.mulf %409, %408 : vector<2x16x16xf32>
    %411 = arith.addf %405, %410 : vector<2x16x16xf32>
    %412 = vector.extract_strided_slice %375 {offsets = [0, 3, 0], sizes = [2, 16, 16], strides = [1, 1, 1]} : vector<2x22x16xf32> to vector<2x16x16xf32>
    %413 = vector.broadcast %407 : f32 to vector<2x16x16xf32>
    %414 = arith.mulf %413, %412 : vector<2x16x16xf32>
    %415 = arith.addf %411, %414 : vector<2x16x16xf32>
    %c33 = arith.constant 33 : index
    %416 = memref.load %arg1[%c33] : memref<98xf32, #tpu.memory_space<smem>>
    %c82 = arith.constant 82 : index
    %417 = memref.load %arg1[%c82] : memref<98xf32, #tpu.memory_space<smem>>
    %418 = vector.extract_strided_slice %374 {offsets = [0, 4, 0], sizes = [2, 16, 16], strides = [1, 1, 1]} : vector<2x22x16xf32> to vector<2x16x16xf32>
    %419 = vector.broadcast %416 : f32 to vector<2x16x16xf32>
    %420 = arith.mulf %419, %418 : vector<2x16x16xf32>
    %421 = arith.addf %415, %420 : vector<2x16x16xf32>
    %422 = vector.extract_strided_slice %375 {offsets = [0, 4, 0], sizes = [2, 16, 16], strides = [1, 1, 1]} : vector<2x22x16xf32> to vector<2x16x16xf32>
    %423 = vector.broadcast %417 : f32 to vector<2x16x16xf32>
    %424 = arith.mulf %423, %422 : vector<2x16x16xf32>
    %425 = arith.addf %421, %424 : vector<2x16x16xf32>
    %c40 = arith.constant 40 : index
    %426 = memref.load %arg1[%c40] : memref<98xf32, #tpu.memory_space<smem>>
    %c89 = arith.constant 89 : index
    %427 = memref.load %arg1[%c89] : memref<98xf32, #tpu.memory_space<smem>>
    %428 = vector.extract_strided_slice %374 {offsets = [0, 5, 0], sizes = [2, 16, 16], strides = [1, 1, 1]} : vector<2x22x16xf32> to vector<2x16x16xf32>
    %429 = vector.broadcast %426 : f32 to vector<2x16x16xf32>
    %430 = arith.mulf %429, %428 : vector<2x16x16xf32>
    %431 = arith.addf %425, %430 : vector<2x16x16xf32>
    %432 = vector.extract_strided_slice %375 {offsets = [0, 5, 0], sizes = [2, 16, 16], strides = [1, 1, 1]} : vector<2x22x16xf32> to vector<2x16x16xf32>
    %433 = vector.broadcast %427 : f32 to vector<2x16x16xf32>
    %434 = arith.mulf %433, %432 : vector<2x16x16xf32>
    %435 = arith.addf %431, %434 : vector<2x16x16xf32>
    %c47 = arith.constant 47 : index
    %436 = memref.load %arg1[%c47] : memref<98xf32, #tpu.memory_space<smem>>
    %c96 = arith.constant 96 : index
    %437 = memref.load %arg1[%c96] : memref<98xf32, #tpu.memory_space<smem>>
    %438 = vector.extract_strided_slice %374 {offsets = [0, 6, 0], sizes = [2, 16, 16], strides = [1, 1, 1]} : vector<2x22x16xf32> to vector<2x16x16xf32>
    %439 = vector.broadcast %436 : f32 to vector<2x16x16xf32>
    %440 = arith.mulf %439, %438 : vector<2x16x16xf32>
    %441 = arith.addf %435, %440 : vector<2x16x16xf32>
    %442 = vector.extract_strided_slice %375 {offsets = [0, 6, 0], sizes = [2, 16, 16], strides = [1, 1, 1]} : vector<2x22x16xf32> to vector<2x16x16xf32>
    %443 = vector.broadcast %437 : f32 to vector<2x16x16xf32>
    %444 = arith.mulf %443, %442 : vector<2x16x16xf32>
    %445 = arith.addf %441, %444 : vector<2x16x16xf32>
    %446 = vector.extract_strided_slice %11 {offsets = [0, 0, 6], sizes = [2, 22, 16], strides = [1, 1, 1]} : vector<2x22x22xf32> to vector<2x22x16xf32>
    %447 = vector.extract_strided_slice %12 {offsets = [0, 0, 6], sizes = [2, 22, 16], strides = [1, 1, 1]} : vector<2x22x22xf32> to vector<2x22x16xf32>
    %c6 = arith.constant 6 : index
    %448 = memref.load %arg1[%c6] : memref<98xf32, #tpu.memory_space<smem>>
    %c55 = arith.constant 55 : index
    %449 = memref.load %arg1[%c55] : memref<98xf32, #tpu.memory_space<smem>>
    %450 = vector.extract_strided_slice %446 {offsets = [0, 0, 0], sizes = [2, 16, 16], strides = [1, 1, 1]} : vector<2x22x16xf32> to vector<2x16x16xf32>
    %451 = vector.broadcast %448 : f32 to vector<2x16x16xf32>
    %452 = arith.mulf %451, %450 : vector<2x16x16xf32>
    %453 = arith.addf %445, %452 : vector<2x16x16xf32>
    %454 = vector.extract_strided_slice %447 {offsets = [0, 0, 0], sizes = [2, 16, 16], strides = [1, 1, 1]} : vector<2x22x16xf32> to vector<2x16x16xf32>
    %455 = vector.broadcast %449 : f32 to vector<2x16x16xf32>
    %456 = arith.mulf %455, %454 : vector<2x16x16xf32>
    %457 = arith.addf %453, %456 : vector<2x16x16xf32>
    %c13 = arith.constant 13 : index
    %458 = memref.load %arg1[%c13] : memref<98xf32, #tpu.memory_space<smem>>
    %c62 = arith.constant 62 : index
    %459 = memref.load %arg1[%c62] : memref<98xf32, #tpu.memory_space<smem>>
    %460 = vector.extract_strided_slice %446 {offsets = [0, 1, 0], sizes = [2, 16, 16], strides = [1, 1, 1]} : vector<2x22x16xf32> to vector<2x16x16xf32>
    %461 = vector.broadcast %458 : f32 to vector<2x16x16xf32>
    %462 = arith.mulf %461, %460 : vector<2x16x16xf32>
    %463 = arith.addf %457, %462 : vector<2x16x16xf32>
    %464 = vector.extract_strided_slice %447 {offsets = [0, 1, 0], sizes = [2, 16, 16], strides = [1, 1, 1]} : vector<2x22x16xf32> to vector<2x16x16xf32>
    %465 = vector.broadcast %459 : f32 to vector<2x16x16xf32>
    %466 = arith.mulf %465, %464 : vector<2x16x16xf32>
    %467 = arith.addf %463, %466 : vector<2x16x16xf32>
    %c20 = arith.constant 20 : index
    %468 = memref.load %arg1[%c20] : memref<98xf32, #tpu.memory_space<smem>>
    %c69 = arith.constant 69 : index
    %469 = memref.load %arg1[%c69] : memref<98xf32, #tpu.memory_space<smem>>
    %470 = vector.extract_strided_slice %446 {offsets = [0, 2, 0], sizes = [2, 16, 16], strides = [1, 1, 1]} : vector<2x22x16xf32> to vector<2x16x16xf32>
    %471 = vector.broadcast %468 : f32 to vector<2x16x16xf32>
    %472 = arith.mulf %471, %470 : vector<2x16x16xf32>
    %473 = arith.addf %467, %472 : vector<2x16x16xf32>
    %474 = vector.extract_strided_slice %447 {offsets = [0, 2, 0], sizes = [2, 16, 16], strides = [1, 1, 1]} : vector<2x22x16xf32> to vector<2x16x16xf32>
    %475 = vector.broadcast %469 : f32 to vector<2x16x16xf32>
    %476 = arith.mulf %475, %474 : vector<2x16x16xf32>
    %477 = arith.addf %473, %476 : vector<2x16x16xf32>
    %c27 = arith.constant 27 : index
    %478 = memref.load %arg1[%c27] : memref<98xf32, #tpu.memory_space<smem>>
    %c76 = arith.constant 76 : index
    %479 = memref.load %arg1[%c76] : memref<98xf32, #tpu.memory_space<smem>>
    %480 = vector.extract_strided_slice %446 {offsets = [0, 3, 0], sizes = [2, 16, 16], strides = [1, 1, 1]} : vector<2x22x16xf32> to vector<2x16x16xf32>
    %481 = vector.broadcast %478 : f32 to vector<2x16x16xf32>
    %482 = arith.mulf %481, %480 : vector<2x16x16xf32>
    %483 = arith.addf %477, %482 : vector<2x16x16xf32>
    %484 = vector.extract_strided_slice %447 {offsets = [0, 3, 0], sizes = [2, 16, 16], strides = [1, 1, 1]} : vector<2x22x16xf32> to vector<2x16x16xf32>
    %485 = vector.broadcast %479 : f32 to vector<2x16x16xf32>
    %486 = arith.mulf %485, %484 : vector<2x16x16xf32>
    %487 = arith.addf %483, %486 : vector<2x16x16xf32>
    %c34 = arith.constant 34 : index
    %488 = memref.load %arg1[%c34] : memref<98xf32, #tpu.memory_space<smem>>
    %c83 = arith.constant 83 : index
    %489 = memref.load %arg1[%c83] : memref<98xf32, #tpu.memory_space<smem>>
    %490 = vector.extract_strided_slice %446 {offsets = [0, 4, 0], sizes = [2, 16, 16], strides = [1, 1, 1]} : vector<2x22x16xf32> to vector<2x16x16xf32>
    %491 = vector.broadcast %488 : f32 to vector<2x16x16xf32>
    %492 = arith.mulf %491, %490 : vector<2x16x16xf32>
    %493 = arith.addf %487, %492 : vector<2x16x16xf32>
    %494 = vector.extract_strided_slice %447 {offsets = [0, 4, 0], sizes = [2, 16, 16], strides = [1, 1, 1]} : vector<2x22x16xf32> to vector<2x16x16xf32>
    %495 = vector.broadcast %489 : f32 to vector<2x16x16xf32>
    %496 = arith.mulf %495, %494 : vector<2x16x16xf32>
    %497 = arith.addf %493, %496 : vector<2x16x16xf32>
    %c41 = arith.constant 41 : index
    %498 = memref.load %arg1[%c41] : memref<98xf32, #tpu.memory_space<smem>>
    %c90 = arith.constant 90 : index
    %499 = memref.load %arg1[%c90] : memref<98xf32, #tpu.memory_space<smem>>
    %500 = vector.extract_strided_slice %446 {offsets = [0, 5, 0], sizes = [2, 16, 16], strides = [1, 1, 1]} : vector<2x22x16xf32> to vector<2x16x16xf32>
    %501 = vector.broadcast %498 : f32 to vector<2x16x16xf32>
    %502 = arith.mulf %501, %500 : vector<2x16x16xf32>
    %503 = arith.addf %497, %502 : vector<2x16x16xf32>
    %504 = vector.extract_strided_slice %447 {offsets = [0, 5, 0], sizes = [2, 16, 16], strides = [1, 1, 1]} : vector<2x22x16xf32> to vector<2x16x16xf32>
    %505 = vector.broadcast %499 : f32 to vector<2x16x16xf32>
    %506 = arith.mulf %505, %504 : vector<2x16x16xf32>
    %507 = arith.addf %503, %506 : vector<2x16x16xf32>
    %c48 = arith.constant 48 : index
    %508 = memref.load %arg1[%c48] : memref<98xf32, #tpu.memory_space<smem>>
    %c97 = arith.constant 97 : index
    %509 = memref.load %arg1[%c97] : memref<98xf32, #tpu.memory_space<smem>>
    %510 = vector.extract_strided_slice %446 {offsets = [0, 6, 0], sizes = [2, 16, 16], strides = [1, 1, 1]} : vector<2x22x16xf32> to vector<2x16x16xf32>
    %511 = vector.broadcast %508 : f32 to vector<2x16x16xf32>
    %512 = arith.mulf %511, %510 : vector<2x16x16xf32>
    %513 = arith.addf %507, %512 : vector<2x16x16xf32>
    %514 = vector.extract_strided_slice %447 {offsets = [0, 6, 0], sizes = [2, 16, 16], strides = [1, 1, 1]} : vector<2x22x16xf32> to vector<2x16x16xf32>
    %515 = vector.broadcast %509 : f32 to vector<2x16x16xf32>
    %516 = arith.mulf %515, %514 : vector<2x16x16xf32>
    %517 = arith.addf %513, %516 : vector<2x16x16xf32>
    %518 = arith.negf %517 : vector<2x16x16xf32>
    %519 = math.exp %518 : vector<2x16x16xf32>
    %cst_27 = arith.constant 1.000000e+00 : f32
    %520 = vector.broadcast %cst_27 : f32 to vector<2x16x16xf32>
    %521 = arith.addf %520, %519 : vector<2x16x16xf32>
    %522 = arith.divf %520, %521 : vector<2x16x16xf32>
    %c0_28 = arith.constant 0 : index
    %c0_29 = arith.constant 0 : index
    %c0_30 = arith.constant 0 : index
    %523 = vector.load %arg3[%c0_28, %c0_29, %c0_30] : memref<2x16x16xf32, #tpu.memory_space<vmem>>, vector<2x16x16xf32>
    tpu.vector_store %arg3[%c0_28, %c0_29, %c0_30], %522 {strides = array<i32>} : memref<2x16x16xf32, #tpu.memory_space<vmem>>, vector<2x16x16xf32>,
    return
  }
  func.func @transform_0(%arg0: i32) -> i32 {
    %c0_i32 = arith.constant 0 : i32
    %c0_i32_0 = arith.constant 0 : i32
    return %c0_i32 : i32
  }
  func.func @transform_1(%arg0: i32) -> (i32, i32, i32, i32) {
    %c0_i32 = arith.constant 0 : i32
    %c0_i32_0 = arith.constant 0 : i32
    %c0_i32_1 = arith.constant 0 : i32
    %c0_i32_2 = arith.constant 0 : i32
    return %arg0, %c0_i32, %c0_i32_0, %c0_i32_1 : i32, i32, i32, i32
  }
  func.func @transform_2(%arg0: i32) -> (i32, i32, i32) {
    %c0_i32 = arith.constant 0 : i32
    %c0_i32_0 = arith.constant 0 : i32
    %c0_i32_1 = arith.constant 0 : i32
    return %arg0, %c0_i32, %c0_i32_0 : i32, i32, i32
  }
}

</mosaic_0001>

<llo_original>
// kernel: tpu_custom_call.1
$region0: #{tpu_custom_call.1}
  #allocation0 [shape = 'u32[]', space=smem, size = 0x4, offset = 0x4, fixed_abs, tag = 'smem constant byte address 0x4 - core index']
  #allocation1 [shape = 'u32[144,128]{1,0:T(1,128)}', space=vmem, size = 0x12000, scoped, tag = 'internal scratch']
  #allocation2 [shape = 'f32[2,22,22]{2,1,0:T(8,128)}', space=vmem, size = 0x6000, scoped, tag = 'scratch operand']
  #allocation3 [shape = 'f32[2,22,22]{2,1,0:T(8,128)}', space=vmem, size = 0x6000, scoped, tag = 'scratch operand']
  %s0 = inlined_call_operand.hbm [shape: f32[98], index: 0, kind: input, shape index: {}]
  %s1 = inlined_call_operand.hbm [shape: f32[2,4,16,16], index: 1, kind: input, shape index: {}]
  %s2 = inlined_call_operand.hbm [shape: f32[2,16,16], index: 2, kind: output, shape index: {}]
  %s3 = sld [smem:[#allocation0]]
  $region26: #{tpu_custom_call.1} parent=0
    _
  %s5 = ssub.s32 1, %s3
  %s6 = scalar_select 0, %s5, %s3
  $region1: #{tpu_custom_call.1} parent=0
    #allocation4 [shape = 'u8[512]{0}', space=smem, size = 0x200, scoped, tag = 'input window, operand 0, single buffered']
    #allocation5 [shape = 's32[1]{0}', space=sflag, size = 0x4, scoped, tag = 'scoped memory for tpu_custom_call.1']
    #allocation6 [shape = 's32[1]{0}', space=sflag, size = 0x4, scoped, tag = 'scoped memory for tpu_custom_call.1']
    #allocation7 [shape = 's32[1]{0}', space=sflag, size = 0x4, scoped, tag = 'scoped memory for tpu_custom_call.1']
    #allocation8 [shape = 'u8[65536]{0}', space=vmem, size = 0x10000, scoped, tag = 'input window, operand 1, single buffered']
    #allocation9 [shape = 'u8[16384]{0}', space=vmem, size = 0x4000, scoped, tag = 'output window, operand 0, single buffered']
    %7 = vsyncpa [#allocation7], 0
    %8 = vsyncpa [#allocation5], 0
    %9 = vsyncpa [#allocation6], 0
    // Predicated region
    $region2: #{tpu_custom_call.1} parent=1 // pred_check
      _
    $region3: #{tpu_custom_call.1} parent=1 // pred_check_branch
      %11 = sbr.rel (0) target = $region5
    $region4: #{tpu_custom_call.1} parent=1 // pred_region
      %s13 = ssub.s32 16, 16
      %14 = vsyncadd [#allocation7], %s13
      %17 = dma.hbm_to_smem %s0, 16, [#allocation4], [#allocation7]
    $region5: #{tpu_custom_call.1} parent=1 // pred_fallthru
      _
    // Predicated region
    $region6: #{tpu_custom_call.1} parent=1 // pred_check
      _
    $region7: #{tpu_custom_call.1} parent=1 // pred_check_branch
      %19 = sbr.rel (0) target = $region9
    $region8: #{tpu_custom_call.1} parent=1 // pred_region
      %s21 = ssub.s32 2048, 2048
      %22 = vsyncadd [#allocation5], %s21
      %s23 = sshll.u32 [#allocation8], 4
      %s24 = int_to_ptr.vmem [resolvable:$true] %s23
      %29 = dma.hbm_to_vmem [thread:$0]  %s1, 2048, %s24, [#allocation5], 128, 128, 8
    $region9: #{tpu_custom_call.1} parent=1 // pred_fallthru
      _
    // Predicated region
    $region10: #{tpu_custom_call.1} parent=1 // pred_check
      _
    $region11: #{tpu_custom_call.1} parent=1 // pred_check_branch
      %31 = sbr.rel (0) target = $region13
    $region12: #{tpu_custom_call.1} parent=1 // pred_region
      %32 = dma.done [#allocation7], 16
    $region13: #{tpu_custom_call.1} parent=1 // pred_fallthru
      _
    // Predicated region
    $region14: #{tpu_custom_call.1} parent=1 // pred_check
      _
    $region15: #{tpu_custom_call.1} parent=1 // pred_check_branch
      %34 = sbr.rel (0) target = $region17
    $region16: #{tpu_custom_call.1} parent=1 // pred_region
      %35 = dma.done [#allocation5], 2048
    $region17: #{tpu_custom_call.1} parent=1 // pred_fallthru
      _
    %36 = sfence
    %v37 = vld [vmem:[#allocation8] sm:$0xff]
    %v38 = vld [vmem:[#allocation8 + $0x8] sm:$0xff]
    %v39 = vld [vmem:[#allocation8 + $0x10] sm:$0xff]
    %v40 = vld [vmem:[#allocation8 + $0x18] sm:$0xff]
    %v41 = vld [vmem:[#allocation8 + $0x20] sm:$0xff]
    %v42 = vld [vmem:[#allocation8 + $0x28] sm:$0xff]
    %v43 = vld [vmem:[#allocation8 + $0x30] sm:$0xff]
    %v44 = vld [vmem:[#allocation8 + $0x38] sm:$0xff]
    %v45 = vld [vmem:[#allocation8 + $0x40] sm:$0xff]
    %v46 = vld [vmem:[#allocation8 + $0x48] sm:$0xff]
    %v47 = vld [vmem:[#allocation8 + $0x50] sm:$0xff]
    %v48 = vld [vmem:[#allocation8 + $0x58] sm:$0xff]
    %v49 = vld [vmem:[#allocation8 + $0x60] sm:$0xff]
    %v50 = vld [vmem:[#allocation8 + $0x68] sm:$0xff]
    %v51 = vld [vmem:[#allocation8 + $0x70] sm:$0xff]
    %v52 = vld [vmem:[#allocation8 + $0x78] sm:$0xff]
    %vm53 = vcmask 130048
    %v54 = vsel %vm53, %v37, 0.0
    %v55 = vsel %vm53, %v39, 0.0
    %v56 = vadd.f32 %v54, %v55
    %v57 = vsel %vm53, %v41, 0.0
    %v58 = vadd.f32 %v56, %v57
    %v59 = vsel %vm53, %v43, 0.0
    %v60 = vadd.f32 %v58, %v59
    %v61 = vsel %vm53, %v38, 0.0
    %v62 = vsel %vm53, %v40, 0.0
    %v63 = vadd.f32 %v61, %v62
    %v64 = vsel %vm53, %v42, 0.0
    %v65 = vadd.f32 %v63, %v64
    %v66 = vsel %vm53, %v44, 0.0
    %v67 = vadd.f32 %v65, %v66
    %v68 = vsel %vm53, %v45, 0.0
    %v69 = vsel %vm53, %v47, 0.0
    %v70 = vadd.f32 %v68, %v69
    %v71 = vsel %vm53, %v49, 0.0
    %v72 = vadd.f32 %v70, %v71
    %v73 = vsel %vm53, %v51, 0.0
    %v74 = vadd.f32 %v72, %v73
    %v75 = vsel %vm53, %v46, 0.0
    %v76 = vsel %vm53, %v48, 0.0
    %v77 = vadd.f32 %v75, %v76
    %v78 = vsel %vm53, %v50, 0.0
    %v79 = vadd.f32 %v77, %v78
    %v80 = vsel %vm53, %v52, 0.0
    %v81 = vadd.f32 %v79, %v80
    %v82 = vrcp.pop 4.0
    %v83 = vmul.f32 %v60, %v82
    %v84 = vmul.f32 %v67, %v82
    %v85 = vmul.f32 %v74, %v82
    %v86 = vmul.f32 %v81, %v82
    %v87 = vsel %vm53, %v37, -inf
    %v88 = vsel %vm53, %v39, -inf
    %v89 = vmax.f32 %v87, %v88
    %v90 = vsel %vm53, %v41, -inf
    %v91 = vmax.f32 %v89, %v90
    %v92 = vsel %vm53, %v43, -inf
    %v93 = vmax.f32 %v91, %v92
    %v94 = vsel %vm53, %v38, -inf
    %v95 = vsel %vm53, %v40, -inf
    %v96 = vmax.f32 %v94, %v95
    %v97 = vsel %vm53, %v42, -inf
    %v98 = vmax.f32 %v96, %v97
    %v99 = vsel %vm53, %v44, -inf
    %v100 = vmax.f32 %v98, %v99
    %v101 = vsel %vm53, %v45, -inf
    %v102 = vsel %vm53, %v47, -inf
    %v103 = vmax.f32 %v101, %v102
    %v104 = vsel %vm53, %v49, -inf
    %v105 = vmax.f32 %v103, %v104
    %v106 = vsel %vm53, %v51, -inf
    %v107 = vmax.f32 %v105, %v106
    %v108 = vsel %vm53, %v46, -inf
    %v109 = vsel %vm53, %v48, -inf
    %v110 = vmax.f32 %v108, %v109
    %v111 = vsel %vm53, %v50, -inf
    %v112 = vmax.f32 %v110, %v111
    %v113 = vsel %vm53, %v52, -inf
    %v114 = vmax.f32 %v112, %v113
    %vm115 = vcmask 179200
    %116 = vst.msk [vmem:[#allocation2] sm:$0xff] %vm115, 0.0
    %117 = vst.msk [vmem:[#allocation2 + $0x8] sm:$0xff] %vm115, 0.0
    %vm118 = vcmask 177152
    %119 = vst.msk [vmem:[#allocation2 + $0x10] sm:$0x3f] %vm118, 0.0
    %120 = vst.msk [vmem:[#allocation2 + $0x18] sm:$0xff] %vm115, 0.0
    %121 = vst.msk [vmem:[#allocation2 + $0x20] sm:$0xff] %vm115, 0.0
    %122 = vst.msk [vmem:[#allocation2 + $0x28] sm:$0x3f] %vm118, 0.0
    %123 = vst.msk [vmem:[#allocation3] sm:$0xff] %vm115, 0.0
    %124 = vst.msk [vmem:[#allocation3 + $0x8] sm:$0xff] %vm115, 0.0
    %125 = vst.msk [vmem:[#allocation3 + $0x10] sm:$0x3f] %vm118, 0.0
    %126 = vst.msk [vmem:[#allocation3 + $0x18] sm:$0xff] %vm115, 0.0
    %127 = vst.msk [vmem:[#allocation3 + $0x20] sm:$0xff] %vm115, 0.0
    %128 = vst.msk [vmem:[#allocation3 + $0x28] sm:$0x3f] %vm118, 0.0
    %133 = vrot.lane.b32.xlu0 %v83, 3
    %v134 = vpop.permute.xlu0 %133
    %135 = vrot.lane.b32.xlu0 %v84, 3
    %v136 = vpop.permute.xlu0 %135
    %137 = vrot.lane.b32.xlu0 %v85, 3
    %v138 = vpop.permute.xlu0 %137
    %139 = vrot.lane.b32.xlu0 %v86, 3
    %v140 = vpop.permute.xlu0 %139
    %vm145 = vcmask 154648
    %146 = vst.msk [vmem:[#allocation2 + $0x3] sm:$0xff] %vm145, %v134
    %147 = vst.msk [vmem:[#allocation2 + $0xb] sm:$0xff] %vm145, %v136
    %148 = vst.msk [vmem:[#allocation2 + $0x1b] sm:$0xff] %vm145, %v138
    %149 = vst.msk [vmem:[#allocation2 + $0x23] sm:$0xff] %vm145, %v140
    %154 = vrot.lane.b32.xlu0 %v93, 3
    %v155 = vpop.permute.xlu0 %154
    %156 = vrot.lane.b32.xlu0 %v100, 3
    %v157 = vpop.permute.xlu0 %156
    %158 = vrot.lane.b32.xlu0 %v107, 3
    %v159 = vpop.permute.xlu0 %158
    %160 = vrot.lane.b32.xlu0 %v114, 3
    %v161 = vpop.permute.xlu0 %160
    %166 = vst.msk [vmem:[#allocation3 + $0x3] sm:$0xff] %vm145, %v155
    %167 = vst.msk [vmem:[#allocation3 + $0xb] sm:$0xff] %vm145, %v157
    %168 = vst.msk [vmem:[#allocation3 + $0x1b] sm:$0xff] %vm145, %v159
    %169 = vst.msk [vmem:[#allocation3 + $0x23] sm:$0xff] %vm145, %v161
    %v170 = vld [vmem:[#allocation2] sm:$0xff]
    %v171 = vld [vmem:[#allocation2 + $0x8] sm:$0xff]
    %v172 = vld [vmem:[#allocation2 + $0x10] sm:$0x3f]
    %v173 = vld [vmem:[#allocation2 + $0x18] sm:$0xff]
    %v174 = vld [vmem:[#allocation2 + $0x20] sm:$0xff]
    %v175 = vld [vmem:[#allocation2 + $0x28] sm:$0x3f]
    %v176 = vld [vmem:[#allocation3] sm:$0xff]
    %v177 = vld [vmem:[#allocation3 + $0x8] sm:$0xff]
    %v178 = vld [vmem:[#allocation3 + $0x10] sm:$0x3f]
    %v179 = vld [vmem:[#allocation3 + $0x18] sm:$0xff]
    %v180 = vld [vmem:[#allocation3 + $0x20] sm:$0xff]
    %v181 = vld [vmem:[#allocation3 + $0x28] sm:$0x3f]
    %s182 = sld [smem:[#allocation4]]
    %s183 = sld [smem:[#allocation4 + $0x31]]
    %v184 = vstv %s182
    %v185 = vmul.f32 %v184, %v170
    %v186 = vmul.f32 %v184, %v171
    %v187 = vmul.f32 %v184, %v173
    %v188 = vmul.f32 %v184, %v174
    %v189 = vadd.f32 %v185, 0.0
    %v190 = vadd.f32 %v186, 0.0
    %v191 = vadd.f32 %v187, 0.0
    %v192 = vadd.f32 %v188, 0.0
    %v193 = vstv %s183
    %v194 = vmul.f32 %v193, %v176
    %v195 = vmul.f32 %v193, %v177
    %v196 = vmul.f32 %v193, %v179
    %v197 = vmul.f32 %v193, %v180
    %v198 = vadd.f32 %v189, %v194
    %v199 = vadd.f32 %v190, %v195
    %v200 = vadd.f32 %v191, %v196
    %v201 = vadd.f32 %v192, %v197
    %s202 = sld [smem:[#allocation4 + $0x7]]
    %s203 = sld [smem:[#allocation4 + $0x38]]
    %v204 = vstv %s202
    %v205 = vmul.f32 %v204, %v170
    %v206 = vmul.f32 %v204, %v171
    %v207 = vmul.f32 %v204, %v172
    %v208 = vmul.f32 %v204, %v173
    %v209 = vmul.f32 %v204, %v174
    %v210 = vmul.f32 %v204, %v175
    %vm217 = vcmask 1046528
    %v218 = vrot.slane %v205, 1
    %v219 = vrot.slane %v206, 1
    %v220 = vsel %vm217, %v218, %v219
    %v221 = vrot.slane %v207, 1
    %v222 = vsel %vm217, %v219, %v221
    %v223 = vrot.slane %v208, 1
    %v224 = vrot.slane %v209, 1
    %v225 = vsel %vm217, %v223, %v224
    %v226 = vrot.slane %v210, 1
    %v227 = vsel %vm217, %v224, %v226
    %v232 = vadd.f32 %v198, %v220
    %v233 = vadd.f32 %v199, %v222
    %v234 = vadd.f32 %v200, %v225
    %v235 = vadd.f32 %v201, %v227
    %v236 = vstv %s203
    %v237 = vmul.f32 %v236, %v176
    %v238 = vmul.f32 %v236, %v177
    %v239 = vmul.f32 %v236, %v178
    %v240 = vmul.f32 %v236, %v179
    %v241 = vmul.f32 %v236, %v180
    %v242 = vmul.f32 %v236, %v181
    %v249 = vrot.slane %v237, 1
    %v250 = vrot.slane %v238, 1
    %v251 = vsel %vm217, %v249, %v250
    %v252 = vrot.slane %v239, 1
    %v253 = vsel %vm217, %v250, %v252
    %v254 = vrot.slane %v240, 1
    %v255 = vrot.slane %v241, 1
    %v256 = vsel %vm217, %v254, %v255
    %v257 = vrot.slane %v242, 1
    %v258 = vsel %vm217, %v255, %v257
    %v263 = vadd.f32 %v232, %v251
    %v264 = vadd.f32 %v233, %v253
    %v265 = vadd.f32 %v234, %v256
    %v266 = vadd.f32 %v235, %v258
    %s267 = sld [smem:[#allocation4 + $0xe]]
    %s268 = sld [smem:[#allocation4 + $0x3f]]
    %v269 = vstv %s267
    %v270 = vmul.f32 %v269, %v170
    %v271 = vmul.f32 %v269, %v171
    %v272 = vmul.f32 %v269, %v172
    %v273 = vmul.f32 %v269, %v173
    %v274 = vmul.f32 %v269, %v174
    %v275 = vmul.f32 %v269, %v175
    %vm282 = vcmask 1045504
    %v283 = vrot.slane %v270, 2
    %v284 = vrot.slane %v271, 2
    %v285 = vsel %vm282, %v283, %v284
    %v286 = vrot.slane %v272, 2
    %v287 = vsel %vm282, %v284, %v286
    %v288 = vrot.slane %v273, 2
    %v289 = vrot.slane %v274, 2
    %v290 = vsel %vm282, %v288, %v289
    %v291 = vrot.slane %v275, 2
    %v292 = vsel %vm282, %v289, %v291
    %v297 = vadd.f32 %v263, %v285
    %v298 = vadd.f32 %v264, %v287
    %v299 = vadd.f32 %v265, %v290
    %v300 = vadd.f32 %v266, %v292
    %v301 = vstv %s268
    %v302 = vmul.f32 %v301, %v176
    %v303 = vmul.f32 %v301, %v177
    %v304 = vmul.f32 %v301, %v178
    %v305 = vmul.f32 %v301, %v179
    %v306 = vmul.f32 %v301, %v180
    %v307 = vmul.f32 %v301, %v181
    %v314 = vrot.slane %v302, 2
    %v315 = vrot.slane %v303, 2
    %v316 = vsel %vm282, %v314, %v315
    %v317 = vrot.slane %v304, 2
    %v318 = vsel %vm282, %v315, %v317
    %v319 = vrot.slane %v305, 2
    %v320 = vrot.slane %v306, 2
    %v321 = vsel %vm282, %v319, %v320
    %v322 = vrot.slane %v307, 2
    %v323 = vsel %vm282, %v320, %v322
    %v328 = vadd.f32 %v297, %v316
    %v329 = vadd.f32 %v298, %v318
    %v330 = vadd.f32 %v299, %v321
    %v331 = vadd.f32 %v300, %v323
    %s332 = sld [smem:[#allocation4 + $0x15]]
    %s333 = sld [smem:[#allocation4 + $0x46]]
    %v334 = vstv %s332
    %v335 = vmul.f32 %v334, %v170
    %v336 = vmul.f32 %v334, %v171
    %v337 = vmul.f32 %v334, %v172
    %v338 = vmul.f32 %v334, %v173
    %v339 = vmul.f32 %v334, %v174
    %v340 = vmul.f32 %v334, %v175
    %vm347 = vcmask 1044480
    %v348 = vrot.slane %v335, 3
    %v349 = vrot.slane %v336, 3
    %v350 = vsel %vm347, %v348, %v349
    %v351 = vrot.slane %v337, 3
    %v352 = vsel %vm347, %v349, %v351
    %v353 = vrot.slane %v338, 3
    %v354 = vrot.slane %v339, 3
    %v355 = vsel %vm347, %v353, %v354
    %v356 = vrot.slane %v340, 3
    %v357 = vsel %vm347, %v354, %v356
    %v362 = vadd.f32 %v328, %v350
    %v363 = vadd.f32 %v329, %v352
    %v364 = vadd.f32 %v330, %v355
    %v365 = vadd.f32 %v331, %v357
    %v366 = vstv %s333
    %v367 = vmul.f32 %v366, %v176
    %v368 = vmul.f32 %v366, %v177
    %v369 = vmul.f32 %v366, %v178
    %v370 = vmul.f32 %v366, %v179
    %v371 = vmul.f32 %v366, %v180
    %v372 = vmul.f32 %v366, %v181
    %v379 = vrot.slane %v367, 3
    %v380 = vrot.slane %v368, 3
    %v381 = vsel %vm347, %v379, %v380
    %v382 = vrot.slane %v369, 3
    %v383 = vsel %vm347, %v380, %v382
    %v384 = vrot.slane %v370, 3
    %v385 = vrot.slane %v371, 3
    %v386 = vsel %vm347, %v384, %v385
    %v387 = vrot.slane %v372, 3
    %v388 = vsel %vm347, %v385, %v387
    %v393 = vadd.f32 %v362, %v381
    %v394 = vadd.f32 %v363, %v383
    %v395 = vadd.f32 %v364, %v386
    %v396 = vadd.f32 %v365, %v388
    %s397 = sld [smem:[#allocation4 + $0x1c]]
    %s398 = sld [smem:[#allocation4 + $0x4d]]
    %v399 = vstv %s397
    %v400 = vmul.f32 %v399, %v170
    %v401 = vmul.f32 %v399, %v171
    %v402 = vmul.f32 %v399, %v172
    %v403 = vmul.f32 %v399, %v173
    %v404 = vmul.f32 %v399, %v174
    %v405 = vmul.f32 %v399, %v175
    %vm412 = vcmask 1043456
    %v413 = vrot.slane %v400, 4
    %v414 = vrot.slane %v401, 4
    %v415 = vsel %vm412, %v413, %v414
    %v416 = vrot.slane %v402, 4
    %v417 = vsel %vm412, %v414, %v416
    %v418 = vrot.slane %v403, 4
    %v419 = vrot.slane %v404, 4
    %v420 = vsel %vm412, %v418, %v419
    %v421 = vrot.slane %v405, 4
    %v422 = vsel %vm412, %v419, %v421
    %v427 = vadd.f32 %v393, %v415
    %v428 = vadd.f32 %v394, %v417
    %v429 = vadd.f32 %v395, %v420
    %v430 = vadd.f32 %v396, %v422
    %v431 = vstv %s398
    %v432 = vmul.f32 %v431, %v176
    %v433 = vmul.f32 %v431, %v177
    %v434 = vmul.f32 %v431, %v178
    %v435 = vmul.f32 %v431, %v179
    %v436 = vmul.f32 %v431, %v180
    %v437 = vmul.f32 %v431, %v181
    %v444 = vrot.slane %v432, 4
    %v445 = vrot.slane %v433, 4
    %v446 = vsel %vm412, %v444, %v445
    %v447 = vrot.slane %v434, 4
    %v448 = vsel %vm412, %v445, %v447
    %v449 = vrot.slane %v435, 4
    %v450 = vrot.slane %v436, 4
    %v451 = vsel %vm412, %v449, %v450
    %v452 = vrot.slane %v437, 4
    %v453 = vsel %vm412, %v450, %v452
    %v458 = vadd.f32 %v427, %v446
    %v459 = vadd.f32 %v428, %v448
    %v460 = vadd.f32 %v429, %v451
    %v461 = vadd.f32 %v430, %v453
    %s462 = sld [smem:[#allocation4 + $0x23]]
    %s463 = sld [smem:[#allocation4 + $0x54]]
    %v464 = vstv %s462
    %v465 = vmul.f32 %v464, %v170
    %v466 = vmul.f32 %v464, %v171
    %v467 = vmul.f32 %v464, %v172
    %v468 = vmul.f32 %v464, %v173
    %v469 = vmul.f32 %v464, %v174
    %v470 = vmul.f32 %v464, %v175
    %vm477 = vcmask 1042432
    %v478 = vrot.slane %v465, 5
    %v479 = vrot.slane %v466, 5
    %v480 = vsel %vm477, %v478, %v479
    %v481 = vrot.slane %v467, 5
    %v482 = vsel %vm477, %v479, %v481
    %v483 = vrot.slane %v468, 5
    %v484 = vrot.slane %v469, 5
    %v485 = vsel %vm477, %v483, %v484
    %v486 = vrot.slane %v470, 5
    %v487 = vsel %vm477, %v484, %v486
    %v492 = vadd.f32 %v458, %v480
    %v493 = vadd.f32 %v459, %v482
    %v494 = vadd.f32 %v460, %v485
    %v495 = vadd.f32 %v461, %v487
    %v496 = vstv %s463
    %v497 = vmul.f32 %v496, %v176
    %v498 = vmul.f32 %v496, %v177
    %v499 = vmul.f32 %v496, %v178
    %v500 = vmul.f32 %v496, %v179
    %v501 = vmul.f32 %v496, %v180
    %v502 = vmul.f32 %v496, %v181
    %v509 = vrot.slane %v497, 5
    %v510 = vrot.slane %v498, 5
    %v511 = vsel %vm477, %v509, %v510
    %v512 = vrot.slane %v499, 5
    %v513 = vsel %vm477, %v510, %v512
    %v514 = vrot.slane %v500, 5
    %v515 = vrot.slane %v501, 5
    %v516 = vsel %vm477, %v514, %v515
    %v517 = vrot.slane %v502, 5
    %v518 = vsel %vm477, %v515, %v517
    %v523 = vadd.f32 %v492, %v511
    %v524 = vadd.f32 %v493, %v513
    %v525 = vadd.f32 %v494, %v516
    %v526 = vadd.f32 %v495, %v518
    %s527 = sld [smem:[#allocation4 + $0x2a]]
    %s528 = sld [smem:[#allocation4 + $0x5b]]
    %v529 = vstv %s527
    %v530 = vmul.f32 %v529, %v170
    %v531 = vmul.f32 %v529, %v171
    %v532 = vmul.f32 %v529, %v172
    %v533 = vmul.f32 %v529, %v173
    %v534 = vmul.f32 %v529, %v174
    %v535 = vmul.f32 %v529, %v175
    %vm542 = vcmask 1041408
    %v543 = vrot.slane %v530, 6
    %v544 = vrot.slane %v531, 6
    %v545 = vsel %vm542, %v543, %v544
    %v546 = vrot.slane %v532, 6
    %v547 = vsel %vm542, %v544, %v546
    %v548 = vrot.slane %v533, 6
    %v549 = vrot.slane %v534, 6
    %v550 = vsel %vm542, %v548, %v549
    %v551 = vrot.slane %v535, 6
    %v552 = vsel %vm542, %v549, %v551
    %v557 = vadd.f32 %v523, %v545
    %v558 = vadd.f32 %v524, %v547
    %v559 = vadd.f32 %v525, %v550
    %v560 = vadd.f32 %v526, %v552
    %v561 = vstv %s528
    %v562 = vmul.f32 %v561, %v176
    %v563 = vmul.f32 %v561, %v177
    %v564 = vmul.f32 %v561, %v178
    %v565 = vmul.f32 %v561, %v179
    %v566 = vmul.f32 %v561, %v180
    %v567 = vmul.f32 %v561, %v181
    %v574 = vrot.slane %v562, 6
    %v575 = vrot.slane %v563, 6
    %v576 = vsel %vm542, %v574, %v575
    %v577 = vrot.slane %v564, 6
    %v578 = vsel %vm542, %v575, %v577
    %v579 = vrot.slane %v565, 6
    %v580 = vrot.slane %v566, 6
    %v581 = vsel %vm542, %v579, %v580
    %v582 = vrot.slane %v567, 6
    %v583 = vsel %vm542, %v580, %v582
    %v588 = vadd.f32 %v557, %v576
    %v589 = vadd.f32 %v558, %v578
    %v590 = vadd.f32 %v559, %v581
    %v591 = vadd.f32 %v560, %v583
    %s592 = sld [smem:[#allocation4 + $0x1]]
    %s593 = sld [smem:[#allocation4 + $0x32]]
    %v594 = vstv %s592
    %v595 = vmul.f32 %v594, %v170
    %v596 = vmul.f32 %v594, %v171
    %v597 = vmul.f32 %v594, %v173
    %v598 = vmul.f32 %v594, %v174
    %603 = vrot.lane.b32.xlu0 %v595, 127
    %v604 = vpop.permute.xlu0 %603
    %605 = vrot.lane.b32.xlu0 %v596, 127
    %v606 = vpop.permute.xlu0 %605
    %607 = vrot.lane.b32.xlu0 %v597, 127
    %v608 = vpop.permute.xlu0 %607
    %609 = vrot.lane.b32.xlu0 %v598, 127
    %v610 = vpop.permute.xlu0 %609
    %v615 = vadd.f32 %v588, %v604
    %v616 = vadd.f32 %v589, %v606
    %v617 = vadd.f32 %v590, %v608
    %v618 = vadd.f32 %v591, %v610
    %v619 = vstv %s593
    %v620 = vmul.f32 %v619, %v176
    %v621 = vmul.f32 %v619, %v177
    %v622 = vmul.f32 %v619, %v179
    %v623 = vmul.f32 %v619, %v180
    %628 = vrot.lane.b32.xlu0 %v620, 127
    %v629 = vpop.permute.xlu0 %628
    %630 = vrot.lane.b32.xlu0 %v621, 127
    %v631 = vpop.permute.xlu0 %630
    %632 = vrot.lane.b32.xlu0 %v622, 127
    %v633 = vpop.permute.xlu0 %632
    %634 = vrot.lane.b32.xlu0 %v623, 127
    %v635 = vpop.permute.xlu0 %634
    %v640 = vadd.f32 %v615, %v629
    %v641 = vadd.f32 %v616, %v631
    %v642 = vadd.f32 %v617, %v633
    %v643 = vadd.f32 %v618, %v635
    %s644 = sld [smem:[#allocation4 + $0x8]]
    %s645 = sld [smem:[#allocation4 + $0x39]]
    %v646 = vstv %s644
    %v647 = vmul.f32 %v646, %v170
    %v648 = vmul.f32 %v646, %v171
    %v649 = vmul.f32 %v646, %v172
    %v650 = vmul.f32 %v646, %v173
    %v651 = vmul.f32 %v646, %v174
    %v652 = vmul.f32 %v646, %v175
    %v659 = vrot.slane %v647, 1
    %v660 = vrot.slane %v648, 1
    %v661 = vsel %vm217, %v659, %v660
    %v662 = vrot.slane %v649, 1
    %v663 = vsel %vm217, %v660, %v662
    %v664 = vrot.slane %v650, 1
    %v665 = vrot.slane %v651, 1
    %v666 = vsel %vm217, %v664, %v665
    %v667 = vrot.slane %v652, 1
    %v668 = vsel %vm217, %v665, %v667
    %669 = vrot.lane.b32.xlu0 %v661, 127
    %v670 = vpop.permute.xlu0 %669
    %671 = vrot.lane.b32.xlu0 %v663, 127
    %v672 = vpop.permute.xlu0 %671
    %673 = vrot.lane.b32.xlu0 %v666, 127
    %v674 = vpop.permute.xlu0 %673
    %675 = vrot.lane.b32.xlu0 %v668, 127
    %v676 = vpop.permute.xlu0 %675
    %v681 = vadd.f32 %v640, %v670
    %v682 = vadd.f32 %v641, %v672
    %v683 = vadd.f32 %v642, %v674
    %v684 = vadd.f32 %v643, %v676
    %v685 = vstv %s645
    %v686 = vmul.f32 %v685, %v176
    %v687 = vmul.f32 %v685, %v177
    %v688 = vmul.f32 %v685, %v178
    %v689 = vmul.f32 %v685, %v179
    %v690 = vmul.f32 %v685, %v180
    %v691 = vmul.f32 %v685, %v181
    %v698 = vrot.slane %v686, 1
    %v699 = vrot.slane %v687, 1
    %v700 = vsel %vm217, %v698, %v699
    %v701 = vrot.slane %v688, 1
    %v702 = vsel %vm217, %v699, %v701
    %v703 = vrot.slane %v689, 1
    %v704 = vrot.slane %v690, 1
    %v705 = vsel %vm217, %v703, %v704
    %v706 = vrot.slane %v691, 1
    %v707 = vsel %vm217, %v704, %v706
    %708 = vrot.lane.b32.xlu0 %v700, 127
    %v709 = vpop.permute.xlu0 %708
    %710 = vrot.lane.b32.xlu0 %v702, 127
    %v711 = vpop.permute.xlu0 %710
    %712 = vrot.lane.b32.xlu0 %v705, 127
    %v713 = vpop.permute.xlu0 %712
    %714 = vrot.lane.b32.xlu0 %v707, 127
    %v715 = vpop.permute.xlu0 %714
    %v720 = vadd.f32 %v681, %v709
    %v721 = vadd.f32 %v682, %v711
    %v722 = vadd.f32 %v683, %v713
    %v723 = vadd.f32 %v684, %v715
    %s724 = sld [smem:[#allocation4 + $0xf]]
    %s725 = sld [smem:[#allocation4 + $0x40]]
    %v726 = vstv %s724
    %v727 = vmul.f32 %v726, %v170
    %v728 = vmul.f32 %v726, %v171
    %v729 = vmul.f32 %v726, %v172
    %v730 = vmul.f32 %v726, %v173
    %v731 = vmul.f32 %v726, %v174
    %v732 = vmul.f32 %v726, %v175
    %v739 = vrot.slane %v727, 2
    %v740 = vrot.slane %v728, 2
    %v741 = vsel %vm282, %v739, %v740
    %v742 = vrot.slane %v729, 2
    %v743 = vsel %vm282, %v740, %v742
    %v744 = vrot.slane %v730, 2
    %v745 = vrot.slane %v731, 2
    %v746 = vsel %vm282, %v744, %v745
    %v747 = vrot.slane %v732, 2
    %v748 = vsel %vm282, %v745, %v747
    %749 = vrot.lane.b32.xlu0 %v741, 127
    %v750 = vpop.permute.xlu0 %749
    %751 = vrot.lane.b32.xlu0 %v743, 127
    %v752 = vpop.permute.xlu0 %751
    %753 = vrot.lane.b32.xlu0 %v746, 127
    %v754 = vpop.permute.xlu0 %753
    %755 = vrot.lane.b32.xlu0 %v748, 127
    %v756 = vpop.permute.xlu0 %755
    %v761 = vadd.f32 %v720, %v750
    %v762 = vadd.f32 %v721, %v752
    %v763 = vadd.f32 %v722, %v754
    %v764 = vadd.f32 %v723, %v756
    %v765 = vstv %s725
    %v766 = vmul.f32 %v765, %v176
    %v767 = vmul.f32 %v765, %v177
    %v768 = vmul.f32 %v765, %v178
    %v769 = vmul.f32 %v765, %v179
    %v770 = vmul.f32 %v765, %v180
    %v771 = vmul.f32 %v765, %v181
    %v778 = vrot.slane %v766, 2
    %v779 = vrot.slane %v767, 2
    %v780 = vsel %vm282, %v778, %v779
    %v781 = vrot.slane %v768, 2
    %v782 = vsel %vm282, %v779, %v781
    %v783 = vrot.slane %v769, 2
    %v784 = vrot.slane %v770, 2
    %v785 = vsel %vm282, %v783, %v784
    %v786 = vrot.slane %v771, 2
    %v787 = vsel %vm282, %v784, %v786
    %788 = vrot.lane.b32.xlu0 %v780, 127
    %v789 = vpop.permute.xlu0 %788
    %790 = vrot.lane.b32.xlu0 %v782, 127
    %v791 = vpop.permute.xlu0 %790
    %792 = vrot.lane.b32.xlu0 %v785, 127
    %v793 = vpop.permute.xlu0 %792
    %794 = vrot.lane.b32.xlu0 %v787, 127
    %v795 = vpop.permute.xlu0 %794
    %v800 = vadd.f32 %v761, %v789
    %v801 = vadd.f32 %v762, %v791
    %v802 = vadd.f32 %v763, %v793
    %v803 = vadd.f32 %v764, %v795
    %s804 = sld [smem:[#allocation4 + $0x16]]
    %s805 = sld [smem:[#allocation4 + $0x47]]
    %v806 = vstv %s804
    %v807 = vmul.f32 %v806, %v170
    %v808 = vmul.f32 %v806, %v171
    %v809 = vmul.f32 %v806, %v172
    %v810 = vmul.f32 %v806, %v173
    %v811 = vmul.f32 %v806, %v174
    %v812 = vmul.f32 %v806, %v175
    %v819 = vrot.slane %v807, 3
    %v820 = vrot.slane %v808, 3
    %v821 = vsel %vm347, %v819, %v820
    %v822 = vrot.slane %v809, 3
    %v823 = vsel %vm347, %v820, %v822
    %v824 = vrot.slane %v810, 3
    %v825 = vrot.slane %v811, 3
    %v826 = vsel %vm347, %v824, %v825
    %v827 = vrot.slane %v812, 3
    %v828 = vsel %vm347, %v825, %v827
    %829 = vrot.lane.b32.xlu0 %v821, 127
    %v830 = vpop.permute.xlu0 %829
    %831 = vrot.lane.b32.xlu0 %v823, 127
    %v832 = vpop.permute.xlu0 %831
    %833 = vrot.lane.b32.xlu0 %v826, 127
    %v834 = vpop.permute.xlu0 %833
    %835 = vrot.lane.b32.xlu0 %v828, 127
    %v836 = vpop.permute.xlu0 %835
    %v841 = vadd.f32 %v800, %v830
    %v842 = vadd.f32 %v801, %v832
    %v843 = vadd.f32 %v802, %v834
    %v844 = vadd.f32 %v803, %v836
    %v845 = vstv %s805
    %v846 = vmul.f32 %v845, %v176
    %v847 = vmul.f32 %v845, %v177
    %v848 = vmul.f32 %v845, %v178
    %v849 = vmul.f32 %v845, %v179
    %v850 = vmul.f32 %v845, %v180
    %v851 = vmul.f32 %v845, %v181
    %v858 = vrot.slane %v846, 3
    %v859 = vrot.slane %v847, 3
    %v860 = vsel %vm347, %v858, %v859
    %v861 = vrot.slane %v848, 3
    %v862 = vsel %vm347, %v859, %v861
    %v863 = vrot.slane %v849, 3
    %v864 = vrot.slane %v850, 3
    %v865 = vsel %vm347, %v863, %v864
    %v866 = vrot.slane %v851, 3
    %v867 = vsel %vm347, %v864, %v866
    %868 = vrot.lane.b32.xlu0 %v860, 127
    %v869 = vpop.permute.xlu0 %868
    %870 = vrot.lane.b32.xlu0 %v862, 127
    %v871 = vpop.permute.xlu0 %870
    %872 = vrot.lane.b32.xlu0 %v865, 127
    %v873 = vpop.permute.xlu0 %872
    %874 = vrot.lane.b32.xlu0 %v867, 127
    %v875 = vpop.permute.xlu0 %874
    %v880 = vadd.f32 %v841, %v869
    %v881 = vadd.f32 %v842, %v871
    %v882 = vadd.f32 %v843, %v873
    %v883 = vadd.f32 %v844, %v875
    %s884 = sld [smem:[#allocation4 + $0x1d]]
    %s885 = sld [smem:[#allocation4 + $0x4e]]
    %v886 = vstv %s884
    %v887 = vmul.f32 %v886, %v170
    %v888 = vmul.f32 %v886, %v171
    %v889 = vmul.f32 %v886, %v172
    %v890 = vmul.f32 %v886, %v173
    %v891 = vmul.f32 %v886, %v174
    %v892 = vmul.f32 %v886, %v175
    %v899 = vrot.slane %v887, 4
    %v900 = vrot.slane %v888, 4
    %v901 = vsel %vm412, %v899, %v900
    %v902 = vrot.slane %v889, 4
    %v903 = vsel %vm412, %v900, %v902
    %v904 = vrot.slane %v890, 4
    %v905 = vrot.slane %v891, 4
    %v906 = vsel %vm412, %v904, %v905
    %v907 = vrot.slane %v892, 4
    %v908 = vsel %vm412, %v905, %v907
    %909 = vrot.lane.b32.xlu0 %v901, 127
    %v910 = vpop.permute.xlu0 %909
    %911 = vrot.lane.b32.xlu0 %v903, 127
    %v912 = vpop.permute.xlu0 %911
    %913 = vrot.lane.b32.xlu0 %v906, 127
    %v914 = vpop.permute.xlu0 %913
    %915 = vrot.lane.b32.xlu0 %v908, 127
    %v916 = vpop.permute.xlu0 %915
    %v921 = vadd.f32 %v880, %v910
    %v922 = vadd.f32 %v881, %v912
    %v923 = vadd.f32 %v882, %v914
    %v924 = vadd.f32 %v883, %v916
    %v925 = vstv %s885
    %v926 = vmul.f32 %v925, %v176
    %v927 = vmul.f32 %v925, %v177
    %v928 = vmul.f32 %v925, %v178
    %v929 = vmul.f32 %v925, %v179
    %v930 = vmul.f32 %v925, %v180
    %v931 = vmul.f32 %v925, %v181
    %v938 = vrot.slane %v926, 4
    %v939 = vrot.slane %v927, 4
    %v940 = vsel %vm412, %v938, %v939
    %v941 = vrot.slane %v928, 4
    %v942 = vsel %vm412, %v939, %v941
    %v943 = vrot.slane %v929, 4
    %v944 = vrot.slane %v930, 4
    %v945 = vsel %vm412, %v943, %v944
    %v946 = vrot.slane %v931, 4
    %v947 = vsel %vm412, %v944, %v946
    %948 = vrot.lane.b32.xlu0 %v940, 127
    %v949 = vpop.permute.xlu0 %948
    %950 = vrot.lane.b32.xlu0 %v942, 127
    %v951 = vpop.permute.xlu0 %950
    %952 = vrot.lane.b32.xlu0 %v945, 127
    %v953 = vpop.permute.xlu0 %952
    %954 = vrot.lane.b32.xlu0 %v947, 127
    %v955 = vpop.permute.xlu0 %954
    %v960 = vadd.f32 %v921, %v949
    %v961 = vadd.f32 %v922, %v951
    %v962 = vadd.f32 %v923, %v953
    %v963 = vadd.f32 %v924, %v955
    %s964 = sld [smem:[#allocation4 + $0x24]]
    %s965 = sld [smem:[#allocation4 + $0x55]]
    %v966 = vstv %s964
    %v967 = vmul.f32 %v966, %v170
    %v968 = vmul.f32 %v966, %v171
    %v969 = vmul.f32 %v966, %v172
    %v970 = vmul.f32 %v966, %v173
    %v971 = vmul.f32 %v966, %v174
    %v972 = vmul.f32 %v966, %v175
    %v979 = vrot.slane %v967, 5
    %v980 = vrot.slane %v968, 5
    %v981 = vsel %vm477, %v979, %v980
    %v982 = vrot.slane %v969, 5
    %v983 = vsel %vm477, %v980, %v982
    %v984 = vrot.slane %v970, 5
    %v985 = vrot.slane %v971, 5
    %v986 = vsel %vm477, %v984, %v985
    %v987 = vrot.slane %v972, 5
    %v988 = vsel %vm477, %v985, %v987
    %989 = vrot.lane.b32.xlu0 %v981, 127
    %v990 = vpop.permute.xlu0 %989
    %991 = vrot.lane.b32.xlu0 %v983, 127
    %v992 = vpop.permute.xlu0 %991
    %993 = vrot.lane.b32.xlu0 %v986, 127
    %v994 = vpop.permute.xlu0 %993
    %995 = vrot.lane.b32.xlu0 %v988, 127
    %v996 = vpop.permute.xlu0 %995
    %v1001 = vadd.f32 %v960, %v990
    %v1002 = vadd.f32 %v961, %v992
    %v1003 = vadd.f32 %v962, %v994
    %v1004 = vadd.f32 %v963, %v996
    %v1005 = vstv %s965
    %v1006 = vmul.f32 %v1005, %v176
    %v1007 = vmul.f32 %v1005, %v177
    %v1008 = vmul.f32 %v1005, %v178
    %v1009 = vmul.f32 %v1005, %v179
    %v1010 = vmul.f32 %v1005, %v180
    %v1011 = vmul.f32 %v1005, %v181
    %v1018 = vrot.slane %v1006, 5
    %v1019 = vrot.slane %v1007, 5
    %v1020 = vsel %vm477, %v1018, %v1019
    %v1021 = vrot.slane %v1008, 5
    %v1022 = vsel %vm477, %v1019, %v1021
    %v1023 = vrot.slane %v1009, 5
    %v1024 = vrot.slane %v1010, 5
    %v1025 = vsel %vm477, %v1023, %v1024
    %v1026 = vrot.slane %v1011, 5
    %v1027 = vsel %vm477, %v1024, %v1026
    %1028 = vrot.lane.b32.xlu0 %v1020, 127
    %v1029 = vpop.permute.xlu0 %1028
    %1030 = vrot.lane.b32.xlu0 %v1022, 127
    %v1031 = vpop.permute.xlu0 %1030
    %1032 = vrot.lane.b32.xlu0 %v1025, 127
    %v1033 = vpop.permute.xlu0 %1032
    %1034 = vrot.lane.b32.xlu0 %v1027, 127
    %v1035 = vpop.permute.xlu0 %1034
    %v1040 = vadd.f32 %v1001, %v1029
    %v1041 = vadd.f32 %v1002, %v1031
    %v1042 = vadd.f32 %v1003, %v1033
    %v1043 = vadd.f32 %v1004, %v1035
    %s1044 = sld [smem:[#allocation4 + $0x2b]]
    %s1045 = sld [smem:[#allocation4 + $0x5c]]
    %v1046 = vstv %s1044
    %v1047 = vmul.f32 %v1046, %v170
    %v1048 = vmul.f32 %v1046, %v171
    %v1049 = vmul.f32 %v1046, %v172
    %v1050 = vmul.f32 %v1046, %v173
    %v1051 = vmul.f32 %v1046, %v174
    %v1052 = vmul.f32 %v1046, %v175
    %v1059 = vrot.slane %v1047, 6
    %v1060 = vrot.slane %v1048, 6
    %v1061 = vsel %vm542, %v1059, %v1060
    %v1062 = vrot.slane %v1049, 6
    %v1063 = vsel %vm542, %v1060, %v1062
    %v1064 = vrot.slane %v1050, 6
    %v1065 = vrot.slane %v1051, 6
    %v1066 = vsel %vm542, %v1064, %v1065
    %v1067 = vrot.slane %v1052, 6
    %v1068 = vsel %vm542, %v1065, %v1067
    %1069 = vrot.lane.b32.xlu0 %v1061, 127
    %v1070 = vpop.permute.xlu0 %1069
    %1071 = vrot.lane.b32.xlu0 %v1063, 127
    %v1072 = vpop.permute.xlu0 %1071
    %1073 = vrot.lane.b32.xlu0 %v1066, 127
    %v1074 = vpop.permute.xlu0 %1073
    %1075 = vrot.lane.b32.xlu0 %v1068, 127
    %v1076 = vpop.permute.xlu0 %1075
    %v1081 = vadd.f32 %v1040, %v1070
    %v1082 = vadd.f32 %v1041, %v1072
    %v1083 = vadd.f32 %v1042, %v1074
    %v1084 = vadd.f32 %v1043, %v1076
    %v1085 = vstv %s1045
    %v1086 = vmul.f32 %v1085, %v176
    %v1087 = vmul.f32 %v1085, %v177
    %v1088 = vmul.f32 %v1085, %v178
    %v1089 = vmul.f32 %v1085, %v179
    %v1090 = vmul.f32 %v1085, %v180
    %v1091 = vmul.f32 %v1085, %v181
    %v1098 = vrot.slane %v1086, 6
    %v1099 = vrot.slane %v1087, 6
    %v1100 = vsel %vm542, %v1098, %v1099
    %v1101 = vrot.slane %v1088, 6
    %v1102 = vsel %vm542, %v1099, %v1101
    %v1103 = vrot.slane %v1089, 6
    %v1104 = vrot.slane %v1090, 6
    %v1105 = vsel %vm542, %v1103, %v1104
    %v1106 = vrot.slane %v1091, 6
    %v1107 = vsel %vm542, %v1104, %v1106
    %1108 = vrot.lane.b32.xlu0 %v1100, 127
    %v1109 = vpop.permute.xlu0 %1108
    %1110 = vrot.lane.b32.xlu0 %v1102, 127
    %v1111 = vpop.permute.xlu0 %1110
    %1112 = vrot.lane.b32.xlu0 %v1105, 127
    %v1113 = vpop.permute.xlu0 %1112
    %1114 = vrot.lane.b32.xlu0 %v1107, 127
    %v1115 = vpop.permute.xlu0 %1114
    %v1120 = vadd.f32 %v1081, %v1109
    %v1121 = vadd.f32 %v1082, %v1111
    %v1122 = vadd.f32 %v1083, %v1113
    %v1123 = vadd.f32 %v1084, %v1115
    %s1124 = sld [smem:[#allocation4 + $0x2]]
    %s1125 = sld [smem:[#allocation4 + $0x33]]
    %v1126 = vstv %s1124
    %v1127 = vmul.f32 %v1126, %v170
    %v1128 = vmul.f32 %v1126, %v171
    %v1129 = vmul.f32 %v1126, %v173
    %v1130 = vmul.f32 %v1126, %v174
    %1135 = vrot.lane.b32.xlu0 %v1127, 126
    %v1136 = vpop.permute.xlu0 %1135
    %1137 = vrot.lane.b32.xlu0 %v1128, 126
    %v1138 = vpop.permute.xlu0 %1137
    %1139 = vrot.lane.b32.xlu0 %v1129, 126
    %v1140 = vpop.permute.xlu0 %1139
    %1141 = vrot.lane.b32.xlu0 %v1130, 126
    %v1142 = vpop.permute.xlu0 %1141
    %v1147 = vadd.f32 %v1120, %v1136
    %v1148 = vadd.f32 %v1121, %v1138
    %v1149 = vadd.f32 %v1122, %v1140
    %v1150 = vadd.f32 %v1123, %v1142
    %v1151 = vstv %s1125
    %v1152 = vmul.f32 %v1151, %v176
    %v1153 = vmul.f32 %v1151, %v177
    %v1154 = vmul.f32 %v1151, %v179
    %v1155 = vmul.f32 %v1151, %v180
    %1160 = vrot.lane.b32.xlu0 %v1152, 126
    %v1161 = vpop.permute.xlu0 %1160
    %1162 = vrot.lane.b32.xlu0 %v1153, 126
    %v1163 = vpop.permute.xlu0 %1162
    %1164 = vrot.lane.b32.xlu0 %v1154, 126
    %v1165 = vpop.permute.xlu0 %1164
    %1166 = vrot.lane.b32.xlu0 %v1155, 126
    %v1167 = vpop.permute.xlu0 %1166
    %v1172 = vadd.f32 %v1147, %v1161
    %v1173 = vadd.f32 %v1148, %v1163
    %v1174 = vadd.f32 %v1149, %v1165
    %v1175 = vadd.f32 %v1150, %v1167
    %s1176 = sld [smem:[#allocation4 + $0x9]]
    %s1177 = sld [smem:[#allocation4 + $0x3a]]
    %v1178 = vstv %s1176
    %v1179 = vmul.f32 %v1178, %v170
    %v1180 = vmul.f32 %v1178, %v171
    %v1181 = vmul.f32 %v1178, %v172
    %v1182 = vmul.f32 %v1178, %v173
    %v1183 = vmul.f32 %v1178, %v174
    %v1184 = vmul.f32 %v1178, %v175
    %v1191 = vrot.slane %v1179, 1
    %v1192 = vrot.slane %v1180, 1
    %v1193 = vsel %vm217, %v1191, %v1192
    %v1194 = vrot.slane %v1181, 1
    %v1195 = vsel %vm217, %v1192, %v1194
    %v1196 = vrot.slane %v1182, 1
    %v1197 = vrot.slane %v1183, 1
    %v1198 = vsel %vm217, %v1196, %v1197
    %v1199 = vrot.slane %v1184, 1
    %v1200 = vsel %vm217, %v1197, %v1199
    %1201 = vrot.lane.b32.xlu0 %v1193, 126
    %v1202 = vpop.permute.xlu0 %1201
    %1203 = vrot.lane.b32.xlu0 %v1195, 126
    %v1204 = vpop.permute.xlu0 %1203
    %1205 = vrot.lane.b32.xlu0 %v1198, 126
    %v1206 = vpop.permute.xlu0 %1205
    %1207 = vrot.lane.b32.xlu0 %v1200, 126
    %v1208 = vpop.permute.xlu0 %1207
    %v1213 = vadd.f32 %v1172, %v1202
    %v1214 = vadd.f32 %v1173, %v1204
    %v1215 = vadd.f32 %v1174, %v1206
    %v1216 = vadd.f32 %v1175, %v1208
    %v1217 = vstv %s1177
    %v1218 = vmul.f32 %v1217, %v176
    %v1219 = vmul.f32 %v1217, %v177
    %v1220 = vmul.f32 %v1217, %v178
    %v1221 = vmul.f32 %v1217, %v179
    %v1222 = vmul.f32 %v1217, %v180
    %v1223 = vmul.f32 %v1217, %v181
    %v1230 = vrot.slane %v1218, 1
    %v1231 = vrot.slane %v1219, 1
    %v1232 = vsel %vm217, %v1230, %v1231
    %v1233 = vrot.slane %v1220, 1
    %v1234 = vsel %vm217, %v1231, %v1233
    %v1235 = vrot.slane %v1221, 1
    %v1236 = vrot.slane %v1222, 1
    %v1237 = vsel %vm217, %v1235, %v1236
    %v1238 = vrot.slane %v1223, 1
    %v1239 = vsel %vm217, %v1236, %v1238
    %1240 = vrot.lane.b32.xlu0 %v1232, 126
    %v1241 = vpop.permute.xlu0 %1240
    %1242 = vrot.lane.b32.xlu0 %v1234, 126
    %v1243 = vpop.permute.xlu0 %1242
    %1244 = vrot.lane.b32.xlu0 %v1237, 126
    %v1245 = vpop.permute.xlu0 %1244
    %1246 = vrot.lane.b32.xlu0 %v1239, 126
    %v1247 = vpop.permute.xlu0 %1246
    %v1252 = vadd.f32 %v1213, %v1241
    %v1253 = vadd.f32 %v1214, %v1243
    %v1254 = vadd.f32 %v1215, %v1245
    %v1255 = vadd.f32 %v1216, %v1247
    %s1256 = sld [smem:[#allocation4 + $0x10]]
    %s1257 = sld [smem:[#allocation4 + $0x41]]
    %v1258 = vstv %s1256
    %v1259 = vmul.f32 %v1258, %v170
    %v1260 = vmul.f32 %v1258, %v171
    %v1261 = vmul.f32 %v1258, %v172
    %v1262 = vmul.f32 %v1258, %v173
    %v1263 = vmul.f32 %v1258, %v174
    %v1264 = vmul.f32 %v1258, %v175
    %v1271 = vrot.slane %v1259, 2
    %v1272 = vrot.slane %v1260, 2
    %v1273 = vsel %vm282, %v1271, %v1272
    %v1274 = vrot.slane %v1261, 2
    %v1275 = vsel %vm282, %v1272, %v1274
    %v1276 = vrot.slane %v1262, 2
    %v1277 = vrot.slane %v1263, 2
    %v1278 = vsel %vm282, %v1276, %v1277
    %v1279 = vrot.slane %v1264, 2
    %v1280 = vsel %vm282, %v1277, %v1279
    %1281 = vrot.lane.b32.xlu0 %v1273, 126
    %v1282 = vpop.permute.xlu0 %1281
    %1283 = vrot.lane.b32.xlu0 %v1275, 126
    %v1284 = vpop.permute.xlu0 %1283
    %1285 = vrot.lane.b32.xlu0 %v1278, 126
    %v1286 = vpop.permute.xlu0 %1285
    %1287 = vrot.lane.b32.xlu0 %v1280, 126
    %v1288 = vpop.permute.xlu0 %1287
    %v1293 = vadd.f32 %v1252, %v1282
    %v1294 = vadd.f32 %v1253, %v1284
    %v1295 = vadd.f32 %v1254, %v1286
    %v1296 = vadd.f32 %v1255, %v1288
    %v1297 = vstv %s1257
    %v1298 = vmul.f32 %v1297, %v176
    %v1299 = vmul.f32 %v1297, %v177
    %v1300 = vmul.f32 %v1297, %v178
    %v1301 = vmul.f32 %v1297, %v179
    %v1302 = vmul.f32 %v1297, %v180
    %v1303 = vmul.f32 %v1297, %v181
    %v1310 = vrot.slane %v1298, 2
    %v1311 = vrot.slane %v1299, 2
    %v1312 = vsel %vm282, %v1310, %v1311
    %v1313 = vrot.slane %v1300, 2
    %v1314 = vsel %vm282, %v1311, %v1313
    %v1315 = vrot.slane %v1301, 2
    %v1316 = vrot.slane %v1302, 2
    %v1317 = vsel %vm282, %v1315, %v1316
    %v1318 = vrot.slane %v1303, 2
    %v1319 = vsel %vm282, %v1316, %v1318
    %1320 = vrot.lane.b32.xlu0 %v1312, 126
    %v1321 = vpop.permute.xlu0 %1320
    %1322 = vrot.lane.b32.xlu0 %v1314, 126
    %v1323 = vpop.permute.xlu0 %1322
    %1324 = vrot.lane.b32.xlu0 %v1317, 126
    %v1325 = vpop.permute.xlu0 %1324
    %1326 = vrot.lane.b32.xlu0 %v1319, 126
    %v1327 = vpop.permute.xlu0 %1326
    %v1332 = vadd.f32 %v1293, %v1321
    %v1333 = vadd.f32 %v1294, %v1323
    %v1334 = vadd.f32 %v1295, %v1325
    %v1335 = vadd.f32 %v1296, %v1327
    %s1336 = sld [smem:[#allocation4 + $0x17]]
    %s1337 = sld [smem:[#allocation4 + $0x48]]
    %v1338 = vstv %s1336
    %v1339 = vmul.f32 %v1338, %v170
    %v1340 = vmul.f32 %v1338, %v171
    %v1341 = vmul.f32 %v1338, %v172
    %v1342 = vmul.f32 %v1338, %v173
    %v1343 = vmul.f32 %v1338, %v174
    %v1344 = vmul.f32 %v1338, %v175
    %v1351 = vrot.slane %v1339, 3
    %v1352 = vrot.slane %v1340, 3
    %v1353 = vsel %vm347, %v1351, %v1352
    %v1354 = vrot.slane %v1341, 3
    %v1355 = vsel %vm347, %v1352, %v1354
    %v1356 = vrot.slane %v1342, 3
    %v1357 = vrot.slane %v1343, 3
    %v1358 = vsel %vm347, %v1356, %v1357
    %v1359 = vrot.slane %v1344, 3
    %v1360 = vsel %vm347, %v1357, %v1359
    %1361 = vrot.lane.b32.xlu0 %v1353, 126
    %v1362 = vpop.permute.xlu0 %1361
    %1363 = vrot.lane.b32.xlu0 %v1355, 126
    %v1364 = vpop.permute.xlu0 %1363
    %1365 = vrot.lane.b32.xlu0 %v1358, 126
    %v1366 = vpop.permute.xlu0 %1365
    %1367 = vrot.lane.b32.xlu0 %v1360, 126
    %v1368 = vpop.permute.xlu0 %1367
    %v1373 = vadd.f32 %v1332, %v1362
    %v1374 = vadd.f32 %v1333, %v1364
    %v1375 = vadd.f32 %v1334, %v1366
    %v1376 = vadd.f32 %v1335, %v1368
    %v1377 = vstv %s1337
    %v1378 = vmul.f32 %v1377, %v176
    %v1379 = vmul.f32 %v1377, %v177
    %v1380 = vmul.f32 %v1377, %v178
    %v1381 = vmul.f32 %v1377, %v179
    %v1382 = vmul.f32 %v1377, %v180
    %v1383 = vmul.f32 %v1377, %v181
    %v1390 = vrot.slane %v1378, 3
    %v1391 = vrot.slane %v1379, 3
    %v1392 = vsel %vm347, %v1390, %v1391
    %v1393 = vrot.slane %v1380, 3
    %v1394 = vsel %vm347, %v1391, %v1393
    %v1395 = vrot.slane %v1381, 3
    %v1396 = vrot.slane %v1382, 3
    %v1397 = vsel %vm347, %v1395, %v1396
    %v1398 = vrot.slane %v1383, 3
    %v1399 = vsel %vm347, %v1396, %v1398
    %1400 = vrot.lane.b32.xlu0 %v1392, 126
    %v1401 = vpop.permute.xlu0 %1400
    %1402 = vrot.lane.b32.xlu0 %v1394, 126
    %v1403 = vpop.permute.xlu0 %1402
    %1404 = vrot.lane.b32.xlu0 %v1397, 126
    %v1405 = vpop.permute.xlu0 %1404
    %1406 = vrot.lane.b32.xlu0 %v1399, 126
    %v1407 = vpop.permute.xlu0 %1406
    %v1412 = vadd.f32 %v1373, %v1401
    %v1413 = vadd.f32 %v1374, %v1403
    %v1414 = vadd.f32 %v1375, %v1405
    %v1415 = vadd.f32 %v1376, %v1407
    %s1416 = sld [smem:[#allocation4 + $0x1e]]
    %s1417 = sld [smem:[#allocation4 + $0x4f]]
    %v1418 = vstv %s1416
    %v1419 = vmul.f32 %v1418, %v170
    %v1420 = vmul.f32 %v1418, %v171
    %v1421 = vmul.f32 %v1418, %v172
    %v1422 = vmul.f32 %v1418, %v173
    %v1423 = vmul.f32 %v1418, %v174
    %v1424 = vmul.f32 %v1418, %v175
    %v1431 = vrot.slane %v1419, 4
    %v1432 = vrot.slane %v1420, 4
    %v1433 = vsel %vm412, %v1431, %v1432
    %v1434 = vrot.slane %v1421, 4
    %v1435 = vsel %vm412, %v1432, %v1434
    %v1436 = vrot.slane %v1422, 4
    %v1437 = vrot.slane %v1423, 4
    %v1438 = vsel %vm412, %v1436, %v1437
    %v1439 = vrot.slane %v1424, 4
    %v1440 = vsel %vm412, %v1437, %v1439
    %1441 = vrot.lane.b32.xlu0 %v1433, 126
    %v1442 = vpop.permute.xlu0 %1441
    %1443 = vrot.lane.b32.xlu0 %v1435, 126
    %v1444 = vpop.permute.xlu0 %1443
    %1445 = vrot.lane.b32.xlu0 %v1438, 126
    %v1446 = vpop.permute.xlu0 %1445
    %1447 = vrot.lane.b32.xlu0 %v1440, 126
    %v1448 = vpop.permute.xlu0 %1447
    %v1453 = vadd.f32 %v1412, %v1442
    %v1454 = vadd.f32 %v1413, %v1444
    %v1455 = vadd.f32 %v1414, %v1446
    %v1456 = vadd.f32 %v1415, %v1448
    %v1457 = vstv %s1417
    %v1458 = vmul.f32 %v1457, %v176
    %v1459 = vmul.f32 %v1457, %v177
    %v1460 = vmul.f32 %v1457, %v178
    %v1461 = vmul.f32 %v1457, %v179
    %v1462 = vmul.f32 %v1457, %v180
    %v1463 = vmul.f32 %v1457, %v181
    %v1470 = vrot.slane %v1458, 4
    %v1471 = vrot.slane %v1459, 4
    %v1472 = vsel %vm412, %v1470, %v1471
    %v1473 = vrot.slane %v1460, 4
    %v1474 = vsel %vm412, %v1471, %v1473
    %v1475 = vrot.slane %v1461, 4
    %v1476 = vrot.slane %v1462, 4
    %v1477 = vsel %vm412, %v1475, %v1476
    %v1478 = vrot.slane %v1463, 4
    %v1479 = vsel %vm412, %v1476, %v1478
    %1480 = vrot.lane.b32.xlu0 %v1472, 126
    %v1481 = vpop.permute.xlu0 %1480
    %1482 = vrot.lane.b32.xlu0 %v1474, 126
    %v1483 = vpop.permute.xlu0 %1482
    %1484 = vrot.lane.b32.xlu0 %v1477, 126
    %v1485 = vpop.permute.xlu0 %1484
    %1486 = vrot.lane.b32.xlu0 %v1479, 126
    %v1487 = vpop.permute.xlu0 %1486
    %v1492 = vadd.f32 %v1453, %v1481
    %v1493 = vadd.f32 %v1454, %v1483
    %v1494 = vadd.f32 %v1455, %v1485
    %v1495 = vadd.f32 %v1456, %v1487
    %s1496 = sld [smem:[#allocation4 + $0x25]]
    %s1497 = sld [smem:[#allocation4 + $0x56]]
    %v1498 = vstv %s1496
    %v1499 = vmul.f32 %v1498, %v170
    %v1500 = vmul.f32 %v1498, %v171
    %v1501 = vmul.f32 %v1498, %v172
    %v1502 = vmul.f32 %v1498, %v173
    %v1503 = vmul.f32 %v1498, %v174
    %v1504 = vmul.f32 %v1498, %v175
    %v1511 = vrot.slane %v1499, 5
    %v1512 = vrot.slane %v1500, 5
    %v1513 = vsel %vm477, %v1511, %v1512
    %v1514 = vrot.slane %v1501, 5
    %v1515 = vsel %vm477, %v1512, %v1514
    %v1516 = vrot.slane %v1502, 5
    %v1517 = vrot.slane %v1503, 5
    %v1518 = vsel %vm477, %v1516, %v1517
    %v1519 = vrot.slane %v1504, 5
    %v1520 = vsel %vm477, %v1517, %v1519
    %1521 = vrot.lane.b32.xlu0 %v1513, 126
    %v1522 = vpop.permute.xlu0 %1521
    %1523 = vrot.lane.b32.xlu0 %v1515, 126
    %v1524 = vpop.permute.xlu0 %1523
    %1525 = vrot.lane.b32.xlu0 %v1518, 126
    %v1526 = vpop.permute.xlu0 %1525
    %1527 = vrot.lane.b32.xlu0 %v1520, 126
    %v1528 = vpop.permute.xlu0 %1527
    %v1533 = vadd.f32 %v1492, %v1522
    %v1534 = vadd.f32 %v1493, %v1524
    %v1535 = vadd.f32 %v1494, %v1526
    %v1536 = vadd.f32 %v1495, %v1528
    %v1537 = vstv %s1497
    %v1538 = vmul.f32 %v1537, %v176
    %v1539 = vmul.f32 %v1537, %v177
    %v1540 = vmul.f32 %v1537, %v178
    %v1541 = vmul.f32 %v1537, %v179
    %v1542 = vmul.f32 %v1537, %v180
    %v1543 = vmul.f32 %v1537, %v181
    %v1550 = vrot.slane %v1538, 5
    %v1551 = vrot.slane %v1539, 5
    %v1552 = vsel %vm477, %v1550, %v1551
    %v1553 = vrot.slane %v1540, 5
    %v1554 = vsel %vm477, %v1551, %v1553
    %v1555 = vrot.slane %v1541, 5
    %v1556 = vrot.slane %v1542, 5
    %v1557 = vsel %vm477, %v1555, %v1556
    %v1558 = vrot.slane %v1543, 5
    %v1559 = vsel %vm477, %v1556, %v1558
    %1560 = vrot.lane.b32.xlu0 %v1552, 126
    %v1561 = vpop.permute.xlu0 %1560
    %1562 = vrot.lane.b32.xlu0 %v1554, 126
    %v1563 = vpop.permute.xlu0 %1562
    %1564 = vrot.lane.b32.xlu0 %v1557, 126
    %v1565 = vpop.permute.xlu0 %1564
    %1566 = vrot.lane.b32.xlu0 %v1559, 126
    %v1567 = vpop.permute.xlu0 %1566
    %v1572 = vadd.f32 %v1533, %v1561
    %v1573 = vadd.f32 %v1534, %v1563
    %v1574 = vadd.f32 %v1535, %v1565
    %v1575 = vadd.f32 %v1536, %v1567
    %s1576 = sld [smem:[#allocation4 + $0x2c]]
    %s1577 = sld [smem:[#allocation4 + $0x5d]]
    %v1578 = vstv %s1576
    %v1579 = vmul.f32 %v1578, %v170
    %v1580 = vmul.f32 %v1578, %v171
    %v1581 = vmul.f32 %v1578, %v172
    %v1582 = vmul.f32 %v1578, %v173
    %v1583 = vmul.f32 %v1578, %v174
    %v1584 = vmul.f32 %v1578, %v175
    %v1591 = vrot.slane %v1579, 6
    %v1592 = vrot.slane %v1580, 6
    %v1593 = vsel %vm542, %v1591, %v1592
    %v1594 = vrot.slane %v1581, 6
    %v1595 = vsel %vm542, %v1592, %v1594
    %v1596 = vrot.slane %v1582, 6
    %v1597 = vrot.slane %v1583, 6
    %v1598 = vsel %vm542, %v1596, %v1597
    %v1599 = vrot.slane %v1584, 6
    %v1600 = vsel %vm542, %v1597, %v1599
    %1601 = vrot.lane.b32.xlu0 %v1593, 126
    %v1602 = vpop.permute.xlu0 %1601
    %1603 = vrot.lane.b32.xlu0 %v1595, 126
    %v1604 = vpop.permute.xlu0 %1603
    %1605 = vrot.lane.b32.xlu0 %v1598, 126
    %v1606 = vpop.permute.xlu0 %1605
    %1607 = vrot.lane.b32.xlu0 %v1600, 126
    %v1608 = vpop.permute.xlu0 %1607
    %v1613 = vadd.f32 %v1572, %v1602
    %v1614 = vadd.f32 %v1573, %v1604
    %v1615 = vadd.f32 %v1574, %v1606
    %v1616 = vadd.f32 %v1575, %v1608
    %v1617 = vstv %s1577
    %v1618 = vmul.f32 %v1617, %v176
    %v1619 = vmul.f32 %v1617, %v177
    %v1620 = vmul.f32 %v1617, %v178
    %v1621 = vmul.f32 %v1617, %v179
    %v1622 = vmul.f32 %v1617, %v180
    %v1623 = vmul.f32 %v1617, %v181
    %v1630 = vrot.slane %v1618, 6
    %v1631 = vrot.slane %v1619, 6
    %v1632 = vsel %vm542, %v1630, %v1631
    %v1633 = vrot.slane %v1620, 6
    %v1634 = vsel %vm542, %v1631, %v1633
    %v1635 = vrot.slane %v1621, 6
    %v1636 = vrot.slane %v1622, 6
    %v1637 = vsel %vm542, %v1635, %v1636
    %v1638 = vrot.slane %v1623, 6
    %v1639 = vsel %vm542, %v1636, %v1638
    %1640 = vrot.lane.b32.xlu0 %v1632, 126
    %v1641 = vpop.permute.xlu0 %1640
    %1642 = vrot.lane.b32.xlu0 %v1634, 126
    %v1643 = vpop.permute.xlu0 %1642
    %1644 = vrot.lane.b32.xlu0 %v1637, 126
    %v1645 = vpop.permute.xlu0 %1644
    %1646 = vrot.lane.b32.xlu0 %v1639, 126
    %v1647 = vpop.permute.xlu0 %1646
    %v1652 = vadd.f32 %v1613, %v1641
    %v1653 = vadd.f32 %v1614, %v1643
    %v1654 = vadd.f32 %v1615, %v1645
    %v1655 = vadd.f32 %v1616, %v1647
    %s1656 = sld [smem:[#allocation4 + $0x3]]
    %s1657 = sld [smem:[#allocation4 + $0x34]]
    %v1658 = vstv %s1656
    %v1659 = vmul.f32 %v1658, %v170
    %v1660 = vmul.f32 %v1658, %v171
    %v1661 = vmul.f32 %v1658, %v173
    %v1662 = vmul.f32 %v1658, %v174
    %1667 = vrot.lane.b32.xlu0 %v1659, 125
    %v1668 = vpop.permute.xlu0 %1667
    %1669 = vrot.lane.b32.xlu0 %v1660, 125
    %v1670 = vpop.permute.xlu0 %1669
    %1671 = vrot.lane.b32.xlu0 %v1661, 125
    %v1672 = vpop.permute.xlu0 %1671
    %1673 = vrot.lane.b32.xlu0 %v1662, 125
    %v1674 = vpop.permute.xlu0 %1673
    %v1679 = vadd.f32 %v1652, %v1668
    %v1680 = vadd.f32 %v1653, %v1670
    %v1681 = vadd.f32 %v1654, %v1672
    %v1682 = vadd.f32 %v1655, %v1674
    %v1683 = vstv %s1657
    %v1684 = vmul.f32 %v1683, %v176
    %v1685 = vmul.f32 %v1683, %v177
    %v1686 = vmul.f32 %v1683, %v179
    %v1687 = vmul.f32 %v1683, %v180
    %1692 = vrot.lane.b32.xlu0 %v1684, 125
    %v1693 = vpop.permute.xlu0 %1692
    %1694 = vrot.lane.b32.xlu0 %v1685, 125
    %v1695 = vpop.permute.xlu0 %1694
    %1696 = vrot.lane.b32.xlu0 %v1686, 125
    %v1697 = vpop.permute.xlu0 %1696
    %1698 = vrot.lane.b32.xlu0 %v1687, 125
    %v1699 = vpop.permute.xlu0 %1698
    %v1704 = vadd.f32 %v1679, %v1693
    %v1705 = vadd.f32 %v1680, %v1695
    %v1706 = vadd.f32 %v1681, %v1697
    %v1707 = vadd.f32 %v1682, %v1699
    %s1708 = sld [smem:[#allocation4 + $0xa]]
    %s1709 = sld [smem:[#allocation4 + $0x3b]]
    %v1710 = vstv %s1708
    %v1711 = vmul.f32 %v1710, %v170
    %v1712 = vmul.f32 %v1710, %v171
    %v1713 = vmul.f32 %v1710, %v172
    %v1714 = vmul.f32 %v1710, %v173
    %v1715 = vmul.f32 %v1710, %v174
    %v1716 = vmul.f32 %v1710, %v175
    %v1723 = vrot.slane %v1711, 1
    %v1724 = vrot.slane %v1712, 1
    %v1725 = vsel %vm217, %v1723, %v1724
    %v1726 = vrot.slane %v1713, 1
    %v1727 = vsel %vm217, %v1724, %v1726
    %v1728 = vrot.slane %v1714, 1
    %v1729 = vrot.slane %v1715, 1
    %v1730 = vsel %vm217, %v1728, %v1729
    %v1731 = vrot.slane %v1716, 1
    %v1732 = vsel %vm217, %v1729, %v1731
    %1733 = vrot.lane.b32.xlu0 %v1725, 125
    %v1734 = vpop.permute.xlu0 %1733
    %1735 = vrot.lane.b32.xlu0 %v1727, 125
    %v1736 = vpop.permute.xlu0 %1735
    %1737 = vrot.lane.b32.xlu0 %v1730, 125
    %v1738 = vpop.permute.xlu0 %1737
    %1739 = vrot.lane.b32.xlu0 %v1732, 125
    %v1740 = vpop.permute.xlu0 %1739
    %v1745 = vadd.f32 %v1704, %v1734
    %v1746 = vadd.f32 %v1705, %v1736
    %v1747 = vadd.f32 %v1706, %v1738
    %v1748 = vadd.f32 %v1707, %v1740
    %v1749 = vstv %s1709
    %v1750 = vmul.f32 %v1749, %v176
    %v1751 = vmul.f32 %v1749, %v177
    %v1752 = vmul.f32 %v1749, %v178
    %v1753 = vmul.f32 %v1749, %v179
    %v1754 = vmul.f32 %v1749, %v180
    %v1755 = vmul.f32 %v1749, %v181
    %v1762 = vrot.slane %v1750, 1
    %v1763 = vrot.slane %v1751, 1
    %v1764 = vsel %vm217, %v1762, %v1763
    %v1765 = vrot.slane %v1752, 1
    %v1766 = vsel %vm217, %v1763, %v1765
    %v1767 = vrot.slane %v1753, 1
    %v1768 = vrot.slane %v1754, 1
    %v1769 = vsel %vm217, %v1767, %v1768
    %v1770 = vrot.slane %v1755, 1
    %v1771 = vsel %vm217, %v1768, %v1770
    %1772 = vrot.lane.b32.xlu0 %v1764, 125
    %v1773 = vpop.permute.xlu0 %1772
    %1774 = vrot.lane.b32.xlu0 %v1766, 125
    %v1775 = vpop.permute.xlu0 %1774
    %1776 = vrot.lane.b32.xlu0 %v1769, 125
    %v1777 = vpop.permute.xlu0 %1776
    %1778 = vrot.lane.b32.xlu0 %v1771, 125
    %v1779 = vpop.permute.xlu0 %1778
    %v1784 = vadd.f32 %v1745, %v1773
    %v1785 = vadd.f32 %v1746, %v1775
    %v1786 = vadd.f32 %v1747, %v1777
    %v1787 = vadd.f32 %v1748, %v1779
    %s1788 = sld [smem:[#allocation4 + $0x11]]
    %s1789 = sld [smem:[#allocation4 + $0x42]]
    %v1790 = vstv %s1788
    %v1791 = vmul.f32 %v1790, %v170
    %v1792 = vmul.f32 %v1790, %v171
    %v1793 = vmul.f32 %v1790, %v172
    %v1794 = vmul.f32 %v1790, %v173
    %v1795 = vmul.f32 %v1790, %v174
    %v1796 = vmul.f32 %v1790, %v175
    %v1803 = vrot.slane %v1791, 2
    %v1804 = vrot.slane %v1792, 2
    %v1805 = vsel %vm282, %v1803, %v1804
    %v1806 = vrot.slane %v1793, 2
    %v1807 = vsel %vm282, %v1804, %v1806
    %v1808 = vrot.slane %v1794, 2
    %v1809 = vrot.slane %v1795, 2
    %v1810 = vsel %vm282, %v1808, %v1809
    %v1811 = vrot.slane %v1796, 2
    %v1812 = vsel %vm282, %v1809, %v1811
    %1813 = vrot.lane.b32.xlu0 %v1805, 125
    %v1814 = vpop.permute.xlu0 %1813
    %1815 = vrot.lane.b32.xlu0 %v1807, 125
    %v1816 = vpop.permute.xlu0 %1815
    %1817 = vrot.lane.b32.xlu0 %v1810, 125
    %v1818 = vpop.permute.xlu0 %1817
    %1819 = vrot.lane.b32.xlu0 %v1812, 125
    %v1820 = vpop.permute.xlu0 %1819
    %v1825 = vadd.f32 %v1784, %v1814
    %v1826 = vadd.f32 %v1785, %v1816
    %v1827 = vadd.f32 %v1786, %v1818
    %v1828 = vadd.f32 %v1787, %v1820
    %v1829 = vstv %s1789
    %v1830 = vmul.f32 %v1829, %v176
    %v1831 = vmul.f32 %v1829, %v177
    %v1832 = vmul.f32 %v1829, %v178
    %v1833 = vmul.f32 %v1829, %v179
    %v1834 = vmul.f32 %v1829, %v180
    %v1835 = vmul.f32 %v1829, %v181
    %v1842 = vrot.slane %v1830, 2
    %v1843 = vrot.slane %v1831, 2
    %v1844 = vsel %vm282, %v1842, %v1843
    %v1845 = vrot.slane %v1832, 2
    %v1846 = vsel %vm282, %v1843, %v1845
    %v1847 = vrot.slane %v1833, 2
    %v1848 = vrot.slane %v1834, 2
    %v1849 = vsel %vm282, %v1847, %v1848
    %v1850 = vrot.slane %v1835, 2
    %v1851 = vsel %vm282, %v1848, %v1850
    %1852 = vrot.lane.b32.xlu0 %v1844, 125
    %v1853 = vpop.permute.xlu0 %1852
    %1854 = vrot.lane.b32.xlu0 %v1846, 125
    %v1855 = vpop.permute.xlu0 %1854
    %1856 = vrot.lane.b32.xlu0 %v1849, 125
    %v1857 = vpop.permute.xlu0 %1856
    %1858 = vrot.lane.b32.xlu0 %v1851, 125
    %v1859 = vpop.permute.xlu0 %1858
    %v1864 = vadd.f32 %v1825, %v1853
    %v1865 = vadd.f32 %v1826, %v1855
    %v1866 = vadd.f32 %v1827, %v1857
    %v1867 = vadd.f32 %v1828, %v1859
    %s1868 = sld [smem:[#allocation4 + $0x18]]
    %s1869 = sld [smem:[#allocation4 + $0x49]]
    %v1870 = vstv %s1868
    %v1871 = vmul.f32 %v1870, %v170
    %v1872 = vmul.f32 %v1870, %v171
    %v1873 = vmul.f32 %v1870, %v172
    %v1874 = vmul.f32 %v1870, %v173
    %v1875 = vmul.f32 %v1870, %v174
    %v1876 = vmul.f32 %v1870, %v175
    %v1883 = vrot.slane %v1871, 3
    %v1884 = vrot.slane %v1872, 3
    %v1885 = vsel %vm347, %v1883, %v1884
    %v1886 = vrot.slane %v1873, 3
    %v1887 = vsel %vm347, %v1884, %v1886
    %v1888 = vrot.slane %v1874, 3
    %v1889 = vrot.slane %v1875, 3
    %v1890 = vsel %vm347, %v1888, %v1889
    %v1891 = vrot.slane %v1876, 3
    %v1892 = vsel %vm347, %v1889, %v1891
    %1893 = vrot.lane.b32.xlu0 %v1885, 125
    %v1894 = vpop.permute.xlu0 %1893
    %1895 = vrot.lane.b32.xlu0 %v1887, 125
    %v1896 = vpop.permute.xlu0 %1895
    %1897 = vrot.lane.b32.xlu0 %v1890, 125
    %v1898 = vpop.permute.xlu0 %1897
    %1899 = vrot.lane.b32.xlu0 %v1892, 125
    %v1900 = vpop.permute.xlu0 %1899
    %v1905 = vadd.f32 %v1864, %v1894
    %v1906 = vadd.f32 %v1865, %v1896
    %v1907 = vadd.f32 %v1866, %v1898
    %v1908 = vadd.f32 %v1867, %v1900
    %v1909 = vstv %s1869
    %v1910 = vmul.f32 %v1909, %v176
    %v1911 = vmul.f32 %v1909, %v177
    %v1912 = vmul.f32 %v1909, %v178
    %v1913 = vmul.f32 %v1909, %v179
    %v1914 = vmul.f32 %v1909, %v180
    %v1915 = vmul.f32 %v1909, %v181
    %v1922 = vrot.slane %v1910, 3
    %v1923 = vrot.slane %v1911, 3
    %v1924 = vsel %vm347, %v1922, %v1923
    %v1925 = vrot.slane %v1912, 3
    %v1926 = vsel %vm347, %v1923, %v1925
    %v1927 = vrot.slane %v1913, 3
    %v1928 = vrot.slane %v1914, 3
    %v1929 = vsel %vm347, %v1927, %v1928
    %v1930 = vrot.slane %v1915, 3
    %v1931 = vsel %vm347, %v1928, %v1930
    %1932 = vrot.lane.b32.xlu0 %v1924, 125
    %v1933 = vpop.permute.xlu0 %1932
    %1934 = vrot.lane.b32.xlu0 %v1926, 125
    %v1935 = vpop.permute.xlu0 %1934
    %1936 = vrot.lane.b32.xlu0 %v1929, 125
    %v1937 = vpop.permute.xlu0 %1936
    %1938 = vrot.lane.b32.xlu0 %v1931, 125
    %v1939 = vpop.permute.xlu0 %1938
    %v1944 = vadd.f32 %v1905, %v1933
    %v1945 = vadd.f32 %v1906, %v1935
    %v1946 = vadd.f32 %v1907, %v1937
    %v1947 = vadd.f32 %v1908, %v1939
    %s1948 = sld [smem:[#allocation4 + $0x1f]]
    %s1949 = sld [smem:[#allocation4 + $0x50]]
    %v1950 = vstv %s1948
    %v1951 = vmul.f32 %v1950, %v170
    %v1952 = vmul.f32 %v1950, %v171
    %v1953 = vmul.f32 %v1950, %v172
    %v1954 = vmul.f32 %v1950, %v173
    %v1955 = vmul.f32 %v1950, %v174
    %v1956 = vmul.f32 %v1950, %v175
    %v1963 = vrot.slane %v1951, 4
    %v1964 = vrot.slane %v1952, 4
    %v1965 = vsel %vm412, %v1963, %v1964
    %v1966 = vrot.slane %v1953, 4
    %v1967 = vsel %vm412, %v1964, %v1966
    %v1968 = vrot.slane %v1954, 4
    %v1969 = vrot.slane %v1955, 4
    %v1970 = vsel %vm412, %v1968, %v1969
    %v1971 = vrot.slane %v1956, 4
    %v1972 = vsel %vm412, %v1969, %v1971
    %1973 = vrot.lane.b32.xlu0 %v1965, 125
    %v1974 = vpop.permute.xlu0 %1973
    %1975 = vrot.lane.b32.xlu0 %v1967, 125
    %v1976 = vpop.permute.xlu0 %1975
    %1977 = vrot.lane.b32.xlu0 %v1970, 125
    %v1978 = vpop.permute.xlu0 %1977
    %1979 = vrot.lane.b32.xlu0 %v1972, 125
    %v1980 = vpop.permute.xlu0 %1979
    %v1985 = vadd.f32 %v1944, %v1974
    %v1986 = vadd.f32 %v1945, %v1976
    %v1987 = vadd.f32 %v1946, %v1978
    %v1988 = vadd.f32 %v1947, %v1980
    %v1989 = vstv %s1949
    %v1990 = vmul.f32 %v1989, %v176
    %v1991 = vmul.f32 %v1989, %v177
    %v1992 = vmul.f32 %v1989, %v178
    %v1993 = vmul.f32 %v1989, %v179
    %v1994 = vmul.f32 %v1989, %v180
    %v1995 = vmul.f32 %v1989, %v181
    %v2002 = vrot.slane %v1990, 4
    %v2003 = vrot.slane %v1991, 4
    %v2004 = vsel %vm412, %v2002, %v2003
    %v2005 = vrot.slane %v1992, 4
    %v2006 = vsel %vm412, %v2003, %v2005
    %v2007 = vrot.slane %v1993, 4
    %v2008 = vrot.slane %v1994, 4
    %v2009 = vsel %vm412, %v2007, %v2008
    %v2010 = vrot.slane %v1995, 4
    %v2011 = vsel %vm412, %v2008, %v2010
    %2012 = vrot.lane.b32.xlu0 %v2004, 125
    %v2013 = vpop.permute.xlu0 %2012
    %2014 = vrot.lane.b32.xlu0 %v2006, 125
    %v2015 = vpop.permute.xlu0 %2014
    %2016 = vrot.lane.b32.xlu0 %v2009, 125
    %v2017 = vpop.permute.xlu0 %2016
    %2018 = vrot.lane.b32.xlu0 %v2011, 125
    %v2019 = vpop.permute.xlu0 %2018
    %v2024 = vadd.f32 %v1985, %v2013
    %v2025 = vadd.f32 %v1986, %v2015
    %v2026 = vadd.f32 %v1987, %v2017
    %v2027 = vadd.f32 %v1988, %v2019
    %s2028 = sld [smem:[#allocation4 + $0x26]]
    %s2029 = sld [smem:[#allocation4 + $0x57]]
    %v2030 = vstv %s2028
    %v2031 = vmul.f32 %v2030, %v170
    %v2032 = vmul.f32 %v2030, %v171
    %v2033 = vmul.f32 %v2030, %v172
    %v2034 = vmul.f32 %v2030, %v173
    %v2035 = vmul.f32 %v2030, %v174
    %v2036 = vmul.f32 %v2030, %v175
    %v2043 = vrot.slane %v2031, 5
    %v2044 = vrot.slane %v2032, 5
    %v2045 = vsel %vm477, %v2043, %v2044
    %v2046 = vrot.slane %v2033, 5
    %v2047 = vsel %vm477, %v2044, %v2046
    %v2048 = vrot.slane %v2034, 5
    %v2049 = vrot.slane %v2035, 5
    %v2050 = vsel %vm477, %v2048, %v2049
    %v2051 = vrot.slane %v2036, 5
    %v2052 = vsel %vm477, %v2049, %v2051
    %2053 = vrot.lane.b32.xlu0 %v2045, 125
    %v2054 = vpop.permute.xlu0 %2053
    %2055 = vrot.lane.b32.xlu0 %v2047, 125
    %v2056 = vpop.permute.xlu0 %2055
    %2057 = vrot.lane.b32.xlu0 %v2050, 125
    %v2058 = vpop.permute.xlu0 %2057
    %2059 = vrot.lane.b32.xlu0 %v2052, 125
    %v2060 = vpop.permute.xlu0 %2059
    %v2065 = vadd.f32 %v2024, %v2054
    %v2066 = vadd.f32 %v2025, %v2056
    %v2067 = vadd.f32 %v2026, %v2058
    %v2068 = vadd.f32 %v2027, %v2060
    %v2069 = vstv %s2029
    %v2070 = vmul.f32 %v2069, %v176
    %v2071 = vmul.f32 %v2069, %v177
    %v2072 = vmul.f32 %v2069, %v178
    %v2073 = vmul.f32 %v2069, %v179
    %v2074 = vmul.f32 %v2069, %v180
    %v2075 = vmul.f32 %v2069, %v181
    %v2082 = vrot.slane %v2070, 5
    %v2083 = vrot.slane %v2071, 5
    %v2084 = vsel %vm477, %v2082, %v2083
    %v2085 = vrot.slane %v2072, 5
    %v2086 = vsel %vm477, %v2083, %v2085
    %v2087 = vrot.slane %v2073, 5
    %v2088 = vrot.slane %v2074, 5
    %v2089 = vsel %vm477, %v2087, %v2088
    %v2090 = vrot.slane %v2075, 5
    %v2091 = vsel %vm477, %v2088, %v2090
    %2092 = vrot.lane.b32.xlu0 %v2084, 125
    %v2093 = vpop.permute.xlu0 %2092
    %2094 = vrot.lane.b32.xlu0 %v2086, 125
    %v2095 = vpop.permute.xlu0 %2094
    %2096 = vrot.lane.b32.xlu0 %v2089, 125
    %v2097 = vpop.permute.xlu0 %2096
    %2098 = vrot.lane.b32.xlu0 %v2091, 125
    %v2099 = vpop.permute.xlu0 %2098
    %v2104 = vadd.f32 %v2065, %v2093
    %v2105 = vadd.f32 %v2066, %v2095
    %v2106 = vadd.f32 %v2067, %v2097
    %v2107 = vadd.f32 %v2068, %v2099
    %s2108 = sld [smem:[#allocation4 + $0x2d]]
    %s2109 = sld [smem:[#allocation4 + $0x5e]]
    %v2110 = vstv %s2108
    %v2111 = vmul.f32 %v2110, %v170
    %v2112 = vmul.f32 %v2110, %v171
    %v2113 = vmul.f32 %v2110, %v172
    %v2114 = vmul.f32 %v2110, %v173
    %v2115 = vmul.f32 %v2110, %v174
    %v2116 = vmul.f32 %v2110, %v175
    %v2123 = vrot.slane %v2111, 6
    %v2124 = vrot.slane %v2112, 6
    %v2125 = vsel %vm542, %v2123, %v2124
    %v2126 = vrot.slane %v2113, 6
    %v2127 = vsel %vm542, %v2124, %v2126
    %v2128 = vrot.slane %v2114, 6
    %v2129 = vrot.slane %v2115, 6
    %v2130 = vsel %vm542, %v2128, %v2129
    %v2131 = vrot.slane %v2116, 6
    %v2132 = vsel %vm542, %v2129, %v2131
    %2133 = vrot.lane.b32.xlu0 %v2125, 125
    %v2134 = vpop.permute.xlu0 %2133
    %2135 = vrot.lane.b32.xlu0 %v2127, 125
    %v2136 = vpop.permute.xlu0 %2135
    %2137 = vrot.lane.b32.xlu0 %v2130, 125
    %v2138 = vpop.permute.xlu0 %2137
    %2139 = vrot.lane.b32.xlu0 %v2132, 125
    %v2140 = vpop.permute.xlu0 %2139
    %v2145 = vadd.f32 %v2104, %v2134
    %v2146 = vadd.f32 %v2105, %v2136
    %v2147 = vadd.f32 %v2106, %v2138
    %v2148 = vadd.f32 %v2107, %v2140
    %v2149 = vstv %s2109
    %v2150 = vmul.f32 %v2149, %v176
    %v2151 = vmul.f32 %v2149, %v177
    %v2152 = vmul.f32 %v2149, %v178
    %v2153 = vmul.f32 %v2149, %v179
    %v2154 = vmul.f32 %v2149, %v180
    %v2155 = vmul.f32 %v2149, %v181
    %v2162 = vrot.slane %v2150, 6
    %v2163 = vrot.slane %v2151, 6
    %v2164 = vsel %vm542, %v2162, %v2163
    %v2165 = vrot.slane %v2152, 6
    %v2166 = vsel %vm542, %v2163, %v2165
    %v2167 = vrot.slane %v2153, 6
    %v2168 = vrot.slane %v2154, 6
    %v2169 = vsel %vm542, %v2167, %v2168
    %v2170 = vrot.slane %v2155, 6
    %v2171 = vsel %vm542, %v2168, %v2170
    %2172 = vrot.lane.b32.xlu0 %v2164, 125
    %v2173 = vpop.permute.xlu0 %2172
    %2174 = vrot.lane.b32.xlu0 %v2166, 125
    %v2175 = vpop.permute.xlu0 %2174
    %2176 = vrot.lane.b32.xlu0 %v2169, 125
    %v2177 = vpop.permute.xlu0 %2176
    %2178 = vrot.lane.b32.xlu0 %v2171, 125
    %v2179 = vpop.permute.xlu0 %2178
    %v2184 = vadd.f32 %v2145, %v2173
    %v2185 = vadd.f32 %v2146, %v2175
    %v2186 = vadd.f32 %v2147, %v2177
    %v2187 = vadd.f32 %v2148, %v2179
    %s2188 = sld [smem:[#allocation4 + $0x4]]
    %s2189 = sld [smem:[#allocation4 + $0x35]]
    %v2190 = vstv %s2188
    %v2191 = vmul.f32 %v2190, %v170
    %v2192 = vmul.f32 %v2190, %v171
    %v2193 = vmul.f32 %v2190, %v173
    %v2194 = vmul.f32 %v2190, %v174
    %2199 = vrot.lane.b32.xlu0 %v2191, 124
    %v2200 = vpop.permute.xlu0 %2199
    %2201 = vrot.lane.b32.xlu0 %v2192, 124
    %v2202 = vpop.permute.xlu0 %2201
    %2203 = vrot.lane.b32.xlu0 %v2193, 124
    %v2204 = vpop.permute.xlu0 %2203
    %2205 = vrot.lane.b32.xlu0 %v2194, 124
    %v2206 = vpop.permute.xlu0 %2205
    %v2211 = vadd.f32 %v2184, %v2200
    %v2212 = vadd.f32 %v2185, %v2202
    %v2213 = vadd.f32 %v2186, %v2204
    %v2214 = vadd.f32 %v2187, %v2206
    %v2215 = vstv %s2189
    %v2216 = vmul.f32 %v2215, %v176
    %v2217 = vmul.f32 %v2215, %v177
    %v2218 = vmul.f32 %v2215, %v179
    %v2219 = vmul.f32 %v2215, %v180
    %2224 = vrot.lane.b32.xlu0 %v2216, 124
    %v2225 = vpop.permute.xlu0 %2224
    %2226 = vrot.lane.b32.xlu0 %v2217, 124
    %v2227 = vpop.permute.xlu0 %2226
    %2228 = vrot.lane.b32.xlu0 %v2218, 124
    %v2229 = vpop.permute.xlu0 %2228
    %2230 = vrot.lane.b32.xlu0 %v2219, 124
    %v2231 = vpop.permute.xlu0 %2230
    %v2236 = vadd.f32 %v2211, %v2225
    %v2237 = vadd.f32 %v2212, %v2227
    %v2238 = vadd.f32 %v2213, %v2229
    %v2239 = vadd.f32 %v2214, %v2231
    %s2240 = sld [smem:[#allocation4 + $0xb]]
    %s2241 = sld [smem:[#allocation4 + $0x3c]]
    %v2242 = vstv %s2240
    %v2243 = vmul.f32 %v2242, %v170
    %v2244 = vmul.f32 %v2242, %v171
    %v2245 = vmul.f32 %v2242, %v172
    %v2246 = vmul.f32 %v2242, %v173
    %v2247 = vmul.f32 %v2242, %v174
    %v2248 = vmul.f32 %v2242, %v175
    %v2255 = vrot.slane %v2243, 1
    %v2256 = vrot.slane %v2244, 1
    %v2257 = vsel %vm217, %v2255, %v2256
    %v2258 = vrot.slane %v2245, 1
    %v2259 = vsel %vm217, %v2256, %v2258
    %v2260 = vrot.slane %v2246, 1
    %v2261 = vrot.slane %v2247, 1
    %v2262 = vsel %vm217, %v2260, %v2261
    %v2263 = vrot.slane %v2248, 1
    %v2264 = vsel %vm217, %v2261, %v2263
    %2265 = vrot.lane.b32.xlu0 %v2257, 124
    %v2266 = vpop.permute.xlu0 %2265
    %2267 = vrot.lane.b32.xlu0 %v2259, 124
    %v2268 = vpop.permute.xlu0 %2267
    %2269 = vrot.lane.b32.xlu0 %v2262, 124
    %v2270 = vpop.permute.xlu0 %2269
    %2271 = vrot.lane.b32.xlu0 %v2264, 124
    %v2272 = vpop.permute.xlu0 %2271
    %v2277 = vadd.f32 %v2236, %v2266
    %v2278 = vadd.f32 %v2237, %v2268
    %v2279 = vadd.f32 %v2238, %v2270
    %v2280 = vadd.f32 %v2239, %v2272
    %v2281 = vstv %s2241
    %v2282 = vmul.f32 %v2281, %v176
    %v2283 = vmul.f32 %v2281, %v177
    %v2284 = vmul.f32 %v2281, %v178
    %v2285 = vmul.f32 %v2281, %v179
    %v2286 = vmul.f32 %v2281, %v180
    %v2287 = vmul.f32 %v2281, %v181
    %v2294 = vrot.slane %v2282, 1
    %v2295 = vrot.slane %v2283, 1
    %v2296 = vsel %vm217, %v2294, %v2295
    %v2297 = vrot.slane %v2284, 1
    %v2298 = vsel %vm217, %v2295, %v2297
    %v2299 = vrot.slane %v2285, 1
    %v2300 = vrot.slane %v2286, 1
    %v2301 = vsel %vm217, %v2299, %v2300
    %v2302 = vrot.slane %v2287, 1
    %v2303 = vsel %vm217, %v2300, %v2302
    %2304 = vrot.lane.b32.xlu0 %v2296, 124
    %v2305 = vpop.permute.xlu0 %2304
    %2306 = vrot.lane.b32.xlu0 %v2298, 124
    %v2307 = vpop.permute.xlu0 %2306
    %2308 = vrot.lane.b32.xlu0 %v2301, 124
    %v2309 = vpop.permute.xlu0 %2308
    %2310 = vrot.lane.b32.xlu0 %v2303, 124
    %v2311 = vpop.permute.xlu0 %2310
    %v2316 = vadd.f32 %v2277, %v2305
    %v2317 = vadd.f32 %v2278, %v2307
    %v2318 = vadd.f32 %v2279, %v2309
    %v2319 = vadd.f32 %v2280, %v2311
    %s2320 = sld [smem:[#allocation4 + $0x12]]
    %s2321 = sld [smem:[#allocation4 + $0x43]]
    %v2322 = vstv %s2320
    %v2323 = vmul.f32 %v2322, %v170
    %v2324 = vmul.f32 %v2322, %v171
    %v2325 = vmul.f32 %v2322, %v172
    %v2326 = vmul.f32 %v2322, %v173
    %v2327 = vmul.f32 %v2322, %v174
    %v2328 = vmul.f32 %v2322, %v175
    %v2335 = vrot.slane %v2323, 2
    %v2336 = vrot.slane %v2324, 2
    %v2337 = vsel %vm282, %v2335, %v2336
    %v2338 = vrot.slane %v2325, 2
    %v2339 = vsel %vm282, %v2336, %v2338
    %v2340 = vrot.slane %v2326, 2
    %v2341 = vrot.slane %v2327, 2
    %v2342 = vsel %vm282, %v2340, %v2341
    %v2343 = vrot.slane %v2328, 2
    %v2344 = vsel %vm282, %v2341, %v2343
    %2345 = vrot.lane.b32.xlu0 %v2337, 124
    %v2346 = vpop.permute.xlu0 %2345
    %2347 = vrot.lane.b32.xlu0 %v2339, 124
    %v2348 = vpop.permute.xlu0 %2347
    %2349 = vrot.lane.b32.xlu0 %v2342, 124
    %v2350 = vpop.permute.xlu0 %2349
    %2351 = vrot.lane.b32.xlu0 %v2344, 124
    %v2352 = vpop.permute.xlu0 %2351
    %v2357 = vadd.f32 %v2316, %v2346
    %v2358 = vadd.f32 %v2317, %v2348
    %v2359 = vadd.f32 %v2318, %v2350
    %v2360 = vadd.f32 %v2319, %v2352
    %v2361 = vstv %s2321
    %v2362 = vmul.f32 %v2361, %v176
    %v2363 = vmul.f32 %v2361, %v177
    %v2364 = vmul.f32 %v2361, %v178
    %v2365 = vmul.f32 %v2361, %v179
    %v2366 = vmul.f32 %v2361, %v180
    %v2367 = vmul.f32 %v2361, %v181
    %v2374 = vrot.slane %v2362, 2
    %v2375 = vrot.slane %v2363, 2
    %v2376 = vsel %vm282, %v2374, %v2375
    %v2377 = vrot.slane %v2364, 2
    %v2378 = vsel %vm282, %v2375, %v2377
    %v2379 = vrot.slane %v2365, 2
    %v2380 = vrot.slane %v2366, 2
    %v2381 = vsel %vm282, %v2379, %v2380
    %v2382 = vrot.slane %v2367, 2
    %v2383 = vsel %vm282, %v2380, %v2382
    %2384 = vrot.lane.b32.xlu0 %v2376, 124
    %v2385 = vpop.permute.xlu0 %2384
    %2386 = vrot.lane.b32.xlu0 %v2378, 124
    %v2387 = vpop.permute.xlu0 %2386
    %2388 = vrot.lane.b32.xlu0 %v2381, 124
    %v2389 = vpop.permute.xlu0 %2388
    %2390 = vrot.lane.b32.xlu0 %v2383, 124
    %v2391 = vpop.permute.xlu0 %2390
    %v2396 = vadd.f32 %v2357, %v2385
    %v2397 = vadd.f32 %v2358, %v2387
    %v2398 = vadd.f32 %v2359, %v2389
    %v2399 = vadd.f32 %v2360, %v2391
    %s2400 = sld [smem:[#allocation4 + $0x19]]
    %s2401 = sld [smem:[#allocation4 + $0x4a]]
    %v2402 = vstv %s2400
    %v2403 = vmul.f32 %v2402, %v170
    %v2404 = vmul.f32 %v2402, %v171
    %v2405 = vmul.f32 %v2402, %v172
    %v2406 = vmul.f32 %v2402, %v173
    %v2407 = vmul.f32 %v2402, %v174
    %v2408 = vmul.f32 %v2402, %v175
    %v2415 = vrot.slane %v2403, 3
    %v2416 = vrot.slane %v2404, 3
    %v2417 = vsel %vm347, %v2415, %v2416
    %v2418 = vrot.slane %v2405, 3
    %v2419 = vsel %vm347, %v2416, %v2418
    %v2420 = vrot.slane %v2406, 3
    %v2421 = vrot.slane %v2407, 3
    %v2422 = vsel %vm347, %v2420, %v2421
    %v2423 = vrot.slane %v2408, 3
    %v2424 = vsel %vm347, %v2421, %v2423
    %2425 = vrot.lane.b32.xlu0 %v2417, 124
    %v2426 = vpop.permute.xlu0 %2425
    %2427 = vrot.lane.b32.xlu0 %v2419, 124
    %v2428 = vpop.permute.xlu0 %2427
    %2429 = vrot.lane.b32.xlu0 %v2422, 124
    %v2430 = vpop.permute.xlu0 %2429
    %2431 = vrot.lane.b32.xlu0 %v2424, 124
    %v2432 = vpop.permute.xlu0 %2431
    %v2437 = vadd.f32 %v2396, %v2426
    %v2438 = vadd.f32 %v2397, %v2428
    %v2439 = vadd.f32 %v2398, %v2430
    %v2440 = vadd.f32 %v2399, %v2432
    %v2441 = vstv %s2401
    %v2442 = vmul.f32 %v2441, %v176
    %v2443 = vmul.f32 %v2441, %v177
    %v2444 = vmul.f32 %v2441, %v178
    %v2445 = vmul.f32 %v2441, %v179
    %v2446 = vmul.f32 %v2441, %v180
    %v2447 = vmul.f32 %v2441, %v181
    %v2454 = vrot.slane %v2442, 3
    %v2455 = vrot.slane %v2443, 3
    %v2456 = vsel %vm347, %v2454, %v2455
    %v2457 = vrot.slane %v2444, 3
    %v2458 = vsel %vm347, %v2455, %v2457
    %v2459 = vrot.slane %v2445, 3
    %v2460 = vrot.slane %v2446, 3
    %v2461 = vsel %vm347, %v2459, %v2460
    %v2462 = vrot.slane %v2447, 3
    %v2463 = vsel %vm347, %v2460, %v2462
    %2464 = vrot.lane.b32.xlu0 %v2456, 124
    %v2465 = vpop.permute.xlu0 %2464
    %2466 = vrot.lane.b32.xlu0 %v2458, 124
    %v2467 = vpop.permute.xlu0 %2466
    %2468 = vrot.lane.b32.xlu0 %v2461, 124
    %v2469 = vpop.permute.xlu0 %2468
    %2470 = vrot.lane.b32.xlu0 %v2463, 124
    %v2471 = vpop.permute.xlu0 %2470
    %v2476 = vadd.f32 %v2437, %v2465
    %v2477 = vadd.f32 %v2438, %v2467
    %v2478 = vadd.f32 %v2439, %v2469
    %v2479 = vadd.f32 %v2440, %v2471
    %s2480 = sld [smem:[#allocation4 + $0x20]]
    %s2481 = sld [smem:[#allocation4 + $0x51]]
    %v2482 = vstv %s2480
    %v2483 = vmul.f32 %v2482, %v170
    %v2484 = vmul.f32 %v2482, %v171
    %v2485 = vmul.f32 %v2482, %v172
    %v2486 = vmul.f32 %v2482, %v173
    %v2487 = vmul.f32 %v2482, %v174
    %v2488 = vmul.f32 %v2482, %v175
    %v2495 = vrot.slane %v2483, 4
    %v2496 = vrot.slane %v2484, 4
    %v2497 = vsel %vm412, %v2495, %v2496
    %v2498 = vrot.slane %v2485, 4
    %v2499 = vsel %vm412, %v2496, %v2498
    %v2500 = vrot.slane %v2486, 4
    %v2501 = vrot.slane %v2487, 4
    %v2502 = vsel %vm412, %v2500, %v2501
    %v2503 = vrot.slane %v2488, 4
    %v2504 = vsel %vm412, %v2501, %v2503
    %2505 = vrot.lane.b32.xlu0 %v2497, 124
    %v2506 = vpop.permute.xlu0 %2505
    %2507 = vrot.lane.b32.xlu0 %v2499, 124
    %v2508 = vpop.permute.xlu0 %2507
    %2509 = vrot.lane.b32.xlu0 %v2502, 124
    %v2510 = vpop.permute.xlu0 %2509
    %2511 = vrot.lane.b32.xlu0 %v2504, 124
    %v2512 = vpop.permute.xlu0 %2511
    %v2517 = vadd.f32 %v2476, %v2506
    %v2518 = vadd.f32 %v2477, %v2508
    %v2519 = vadd.f32 %v2478, %v2510
    %v2520 = vadd.f32 %v2479, %v2512
    %v2521 = vstv %s2481
    %v2522 = vmul.f32 %v2521, %v176
    %v2523 = vmul.f32 %v2521, %v177
    %v2524 = vmul.f32 %v2521, %v178
    %v2525 = vmul.f32 %v2521, %v179
    %v2526 = vmul.f32 %v2521, %v180
    %v2527 = vmul.f32 %v2521, %v181
    %v2534 = vrot.slane %v2522, 4
    %v2535 = vrot.slane %v2523, 4
    %v2536 = vsel %vm412, %v2534, %v2535
    %v2537 = vrot.slane %v2524, 4
    %v2538 = vsel %vm412, %v2535, %v2537
    %v2539 = vrot.slane %v2525, 4
    %v2540 = vrot.slane %v2526, 4
    %v2541 = vsel %vm412, %v2539, %v2540
    %v2542 = vrot.slane %v2527, 4
    %v2543 = vsel %vm412, %v2540, %v2542
    %2544 = vrot.lane.b32.xlu0 %v2536, 124
    %v2545 = vpop.permute.xlu0 %2544
    %2546 = vrot.lane.b32.xlu0 %v2538, 124
    %v2547 = vpop.permute.xlu0 %2546
    %2548 = vrot.lane.b32.xlu0 %v2541, 124
    %v2549 = vpop.permute.xlu0 %2548
    %2550 = vrot.lane.b32.xlu0 %v2543, 124
    %v2551 = vpop.permute.xlu0 %2550
    %v2556 = vadd.f32 %v2517, %v2545
    %v2557 = vadd.f32 %v2518, %v2547
    %v2558 = vadd.f32 %v2519, %v2549
    %v2559 = vadd.f32 %v2520, %v2551
    %s2560 = sld [smem:[#allocation4 + $0x27]]
    %s2561 = sld [smem:[#allocation4 + $0x58]]
    %v2562 = vstv %s2560
    %v2563 = vmul.f32 %v2562, %v170
    %v2564 = vmul.f32 %v2562, %v171
    %v2565 = vmul.f32 %v2562, %v172
    %v2566 = vmul.f32 %v2562, %v173
    %v2567 = vmul.f32 %v2562, %v174
    %v2568 = vmul.f32 %v2562, %v175
    %v2575 = vrot.slane %v2563, 5
    %v2576 = vrot.slane %v2564, 5
    %v2577 = vsel %vm477, %v2575, %v2576
    %v2578 = vrot.slane %v2565, 5
    %v2579 = vsel %vm477, %v2576, %v2578
    %v2580 = vrot.slane %v2566, 5
    %v2581 = vrot.slane %v2567, 5
    %v2582 = vsel %vm477, %v2580, %v2581
    %v2583 = vrot.slane %v2568, 5
    %v2584 = vsel %vm477, %v2581, %v2583
    %2585 = vrot.lane.b32.xlu0 %v2577, 124
    %v2586 = vpop.permute.xlu0 %2585
    %2587 = vrot.lane.b32.xlu0 %v2579, 124
    %v2588 = vpop.permute.xlu0 %2587
    %2589 = vrot.lane.b32.xlu0 %v2582, 124
    %v2590 = vpop.permute.xlu0 %2589
    %2591 = vrot.lane.b32.xlu0 %v2584, 124
    %v2592 = vpop.permute.xlu0 %2591
    %v2597 = vadd.f32 %v2556, %v2586
    %v2598 = vadd.f32 %v2557, %v2588
    %v2599 = vadd.f32 %v2558, %v2590
    %v2600 = vadd.f32 %v2559, %v2592
    %v2601 = vstv %s2561
    %v2602 = vmul.f32 %v2601, %v176
    %v2603 = vmul.f32 %v2601, %v177
    %v2604 = vmul.f32 %v2601, %v178
    %v2605 = vmul.f32 %v2601, %v179
    %v2606 = vmul.f32 %v2601, %v180
    %v2607 = vmul.f32 %v2601, %v181
    %v2614 = vrot.slane %v2602, 5
    %v2615 = vrot.slane %v2603, 5
    %v2616 = vsel %vm477, %v2614, %v2615
    %v2617 = vrot.slane %v2604, 5
    %v2618 = vsel %vm477, %v2615, %v2617
    %v2619 = vrot.slane %v2605, 5
    %v2620 = vrot.slane %v2606, 5
    %v2621 = vsel %vm477, %v2619, %v2620
    %v2622 = vrot.slane %v2607, 5
    %v2623 = vsel %vm477, %v2620, %v2622
    %2624 = vrot.lane.b32.xlu0 %v2616, 124
    %v2625 = vpop.permute.xlu0 %2624
    %2626 = vrot.lane.b32.xlu0 %v2618, 124
    %v2627 = vpop.permute.xlu0 %2626
    %2628 = vrot.lane.b32.xlu0 %v2621, 124
    %v2629 = vpop.permute.xlu0 %2628
    %2630 = vrot.lane.b32.xlu0 %v2623, 124
    %v2631 = vpop.permute.xlu0 %2630
    %v2636 = vadd.f32 %v2597, %v2625
    %v2637 = vadd.f32 %v2598, %v2627
    %v2638 = vadd.f32 %v2599, %v2629
    %v2639 = vadd.f32 %v2600, %v2631
    %s2640 = sld [smem:[#allocation4 + $0x2e]]
    %s2641 = sld [smem:[#allocation4 + $0x5f]]
    %v2642 = vstv %s2640
    %v2643 = vmul.f32 %v2642, %v170
    %v2644 = vmul.f32 %v2642, %v171
    %v2645 = vmul.f32 %v2642, %v172
    %v2646 = vmul.f32 %v2642, %v173
    %v2647 = vmul.f32 %v2642, %v174
    %v2648 = vmul.f32 %v2642, %v175
    %v2655 = vrot.slane %v2643, 6
    %v2656 = vrot.slane %v2644, 6
    %v2657 = vsel %vm542, %v2655, %v2656
    %v2658 = vrot.slane %v2645, 6
    %v2659 = vsel %vm542, %v2656, %v2658
    %v2660 = vrot.slane %v2646, 6
    %v2661 = vrot.slane %v2647, 6
    %v2662 = vsel %vm542, %v2660, %v2661
    %v2663 = vrot.slane %v2648, 6
    %v2664 = vsel %vm542, %v2661, %v2663
    %2665 = vrot.lane.b32.xlu0 %v2657, 124
    %v2666 = vpop.permute.xlu0 %2665
    %2667 = vrot.lane.b32.xlu0 %v2659, 124
    %v2668 = vpop.permute.xlu0 %2667
    %2669 = vrot.lane.b32.xlu0 %v2662, 124
    %v2670 = vpop.permute.xlu0 %2669
    %2671 = vrot.lane.b32.xlu0 %v2664, 124
    %v2672 = vpop.permute.xlu0 %2671
    %v2677 = vadd.f32 %v2636, %v2666
    %v2678 = vadd.f32 %v2637, %v2668
    %v2679 = vadd.f32 %v2638, %v2670
    %v2680 = vadd.f32 %v2639, %v2672
    %v2681 = vstv %s2641
    %v2682 = vmul.f32 %v2681, %v176
    %v2683 = vmul.f32 %v2681, %v177
    %v2684 = vmul.f32 %v2681, %v178
    %v2685 = vmul.f32 %v2681, %v179
    %v2686 = vmul.f32 %v2681, %v180
    %v2687 = vmul.f32 %v2681, %v181
    %v2694 = vrot.slane %v2682, 6
    %v2695 = vrot.slane %v2683, 6
    %v2696 = vsel %vm542, %v2694, %v2695
    %v2697 = vrot.slane %v2684, 6
    %v2698 = vsel %vm542, %v2695, %v2697
    %v2699 = vrot.slane %v2685, 6
    %v2700 = vrot.slane %v2686, 6
    %v2701 = vsel %vm542, %v2699, %v2700
    %v2702 = vrot.slane %v2687, 6
    %v2703 = vsel %vm542, %v2700, %v2702
    %2704 = vrot.lane.b32.xlu0 %v2696, 124
    %v2705 = vpop.permute.xlu0 %2704
    %2706 = vrot.lane.b32.xlu0 %v2698, 124
    %v2707 = vpop.permute.xlu0 %2706
    %2708 = vrot.lane.b32.xlu0 %v2701, 124
    %v2709 = vpop.permute.xlu0 %2708
    %2710 = vrot.lane.b32.xlu0 %v2703, 124
    %v2711 = vpop.permute.xlu0 %2710
    %v2716 = vadd.f32 %v2677, %v2705
    %v2717 = vadd.f32 %v2678, %v2707
    %v2718 = vadd.f32 %v2679, %v2709
    %v2719 = vadd.f32 %v2680, %v2711
    %s2720 = sld [smem:[#allocation4 + $0x5]]
    %s2721 = sld [smem:[#allocation4 + $0x36]]
    %v2722 = vstv %s2720
    %v2723 = vmul.f32 %v2722, %v170
    %v2724 = vmul.f32 %v2722, %v171
    %v2725 = vmul.f32 %v2722, %v173
    %v2726 = vmul.f32 %v2722, %v174
    %2731 = vrot.lane.b32.xlu0 %v2723, 123
    %v2732 = vpop.permute.xlu0 %2731
    %2733 = vrot.lane.b32.xlu0 %v2724, 123
    %v2734 = vpop.permute.xlu0 %2733
    %2735 = vrot.lane.b32.xlu0 %v2725, 123
    %v2736 = vpop.permute.xlu0 %2735
    %2737 = vrot.lane.b32.xlu0 %v2726, 123
    %v2738 = vpop.permute.xlu0 %2737
    %v2743 = vadd.f32 %v2716, %v2732
    %v2744 = vadd.f32 %v2717, %v2734
    %v2745 = vadd.f32 %v2718, %v2736
    %v2746 = vadd.f32 %v2719, %v2738
    %v2747 = vstv %s2721
    %v2748 = vmul.f32 %v2747, %v176
    %v2749 = vmul.f32 %v2747, %v177
    %v2750 = vmul.f32 %v2747, %v179
    %v2751 = vmul.f32 %v2747, %v180
    %2756 = vrot.lane.b32.xlu0 %v2748, 123
    %v2757 = vpop.permute.xlu0 %2756
    %2758 = vrot.lane.b32.xlu0 %v2749, 123
    %v2759 = vpop.permute.xlu0 %2758
    %2760 = vrot.lane.b32.xlu0 %v2750, 123
    %v2761 = vpop.permute.xlu0 %2760
    %2762 = vrot.lane.b32.xlu0 %v2751, 123
    %v2763 = vpop.permute.xlu0 %2762
    %v2768 = vadd.f32 %v2743, %v2757
    %v2769 = vadd.f32 %v2744, %v2759
    %v2770 = vadd.f32 %v2745, %v2761
    %v2771 = vadd.f32 %v2746, %v2763
    %s2772 = sld [smem:[#allocation4 + $0xc]]
    %s2773 = sld [smem:[#allocation4 + $0x3d]]
    %v2774 = vstv %s2772
    %v2775 = vmul.f32 %v2774, %v170
    %v2776 = vmul.f32 %v2774, %v171
    %v2777 = vmul.f32 %v2774, %v172
    %v2778 = vmul.f32 %v2774, %v173
    %v2779 = vmul.f32 %v2774, %v174
    %v2780 = vmul.f32 %v2774, %v175
    %v2787 = vrot.slane %v2775, 1
    %v2788 = vrot.slane %v2776, 1
    %v2789 = vsel %vm217, %v2787, %v2788
    %v2790 = vrot.slane %v2777, 1
    %v2791 = vsel %vm217, %v2788, %v2790
    %v2792 = vrot.slane %v2778, 1
    %v2793 = vrot.slane %v2779, 1
    %v2794 = vsel %vm217, %v2792, %v2793
    %v2795 = vrot.slane %v2780, 1
    %v2796 = vsel %vm217, %v2793, %v2795
    %2797 = vrot.lane.b32.xlu0 %v2789, 123
    %v2798 = vpop.permute.xlu0 %2797
    %2799 = vrot.lane.b32.xlu0 %v2791, 123
    %v2800 = vpop.permute.xlu0 %2799
    %2801 = vrot.lane.b32.xlu0 %v2794, 123
    %v2802 = vpop.permute.xlu0 %2801
    %2803 = vrot.lane.b32.xlu0 %v2796, 123
    %v2804 = vpop.permute.xlu0 %2803
    %v2809 = vadd.f32 %v2768, %v2798
    %v2810 = vadd.f32 %v2769, %v2800
    %v2811 = vadd.f32 %v2770, %v2802
    %v2812 = vadd.f32 %v2771, %v2804
    %v2813 = vstv %s2773
    %v2814 = vmul.f32 %v2813, %v176
    %v2815 = vmul.f32 %v2813, %v177
    %v2816 = vmul.f32 %v2813, %v178
    %v2817 = vmul.f32 %v2813, %v179
    %v2818 = vmul.f32 %v2813, %v180
    %v2819 = vmul.f32 %v2813, %v181
    %v2826 = vrot.slane %v2814, 1
    %v2827 = vrot.slane %v2815, 1
    %v2828 = vsel %vm217, %v2826, %v2827
    %v2829 = vrot.slane %v2816, 1
    %v2830 = vsel %vm217, %v2827, %v2829
    %v2831 = vrot.slane %v2817, 1
    %v2832 = vrot.slane %v2818, 1
    %v2833 = vsel %vm217, %v2831, %v2832
    %v2834 = vrot.slane %v2819, 1
    %v2835 = vsel %vm217, %v2832, %v2834
    %2836 = vrot.lane.b32.xlu0 %v2828, 123
    %v2837 = vpop.permute.xlu0 %2836
    %2838 = vrot.lane.b32.xlu0 %v2830, 123
    %v2839 = vpop.permute.xlu0 %2838
    %2840 = vrot.lane.b32.xlu0 %v2833, 123
    %v2841 = vpop.permute.xlu0 %2840
    %2842 = vrot.lane.b32.xlu0 %v2835, 123
    %v2843 = vpop.permute.xlu0 %2842
    %v2848 = vadd.f32 %v2809, %v2837
    %v2849 = vadd.f32 %v2810, %v2839
    %v2850 = vadd.f32 %v2811, %v2841
    %v2851 = vadd.f32 %v2812, %v2843
    %s2852 = sld [smem:[#allocation4 + $0x13]]
    %s2853 = sld [smem:[#allocation4 + $0x44]]
    %v2854 = vstv %s2852
    %v2855 = vmul.f32 %v2854, %v170
    %v2856 = vmul.f32 %v2854, %v171
    %v2857 = vmul.f32 %v2854, %v172
    %v2858 = vmul.f32 %v2854, %v173
    %v2859 = vmul.f32 %v2854, %v174
    %v2860 = vmul.f32 %v2854, %v175
    %v2867 = vrot.slane %v2855, 2
    %v2868 = vrot.slane %v2856, 2
    %v2869 = vsel %vm282, %v2867, %v2868
    %v2870 = vrot.slane %v2857, 2
    %v2871 = vsel %vm282, %v2868, %v2870
    %v2872 = vrot.slane %v2858, 2
    %v2873 = vrot.slane %v2859, 2
    %v2874 = vsel %vm282, %v2872, %v2873
    %v2875 = vrot.slane %v2860, 2
    %v2876 = vsel %vm282, %v2873, %v2875
    %2877 = vrot.lane.b32.xlu0 %v2869, 123
    %v2878 = vpop.permute.xlu0 %2877
    %2879 = vrot.lane.b32.xlu0 %v2871, 123
    %v2880 = vpop.permute.xlu0 %2879
    %2881 = vrot.lane.b32.xlu0 %v2874, 123
    %v2882 = vpop.permute.xlu0 %2881
    %2883 = vrot.lane.b32.xlu0 %v2876, 123
    %v2884 = vpop.permute.xlu0 %2883
    %v2889 = vadd.f32 %v2848, %v2878
    %v2890 = vadd.f32 %v2849, %v2880
    %v2891 = vadd.f32 %v2850, %v2882
    %v2892 = vadd.f32 %v2851, %v2884
    %v2893 = vstv %s2853
    %v2894 = vmul.f32 %v2893, %v176
    %v2895 = vmul.f32 %v2893, %v177
    %v2896 = vmul.f32 %v2893, %v178
    %v2897 = vmul.f32 %v2893, %v179
    %v2898 = vmul.f32 %v2893, %v180
    %v2899 = vmul.f32 %v2893, %v181
    %v2906 = vrot.slane %v2894, 2
    %v2907 = vrot.slane %v2895, 2
    %v2908 = vsel %vm282, %v2906, %v2907
    %v2909 = vrot.slane %v2896, 2
    %v2910 = vsel %vm282, %v2907, %v2909
    %v2911 = vrot.slane %v2897, 2
    %v2912 = vrot.slane %v2898, 2
    %v2913 = vsel %vm282, %v2911, %v2912
    %v2914 = vrot.slane %v2899, 2
    %v2915 = vsel %vm282, %v2912, %v2914
    %2916 = vrot.lane.b32.xlu0 %v2908, 123
    %v2917 = vpop.permute.xlu0 %2916
    %2918 = vrot.lane.b32.xlu0 %v2910, 123
    %v2919 = vpop.permute.xlu0 %2918
    %2920 = vrot.lane.b32.xlu0 %v2913, 123
    %v2921 = vpop.permute.xlu0 %2920
    %2922 = vrot.lane.b32.xlu0 %v2915, 123
    %v2923 = vpop.permute.xlu0 %2922
    %v2928 = vadd.f32 %v2889, %v2917
    %v2929 = vadd.f32 %v2890, %v2919
    %v2930 = vadd.f32 %v2891, %v2921
    %v2931 = vadd.f32 %v2892, %v2923
    %s2932 = sld [smem:[#allocation4 + $0x1a]]
    %s2933 = sld [smem:[#allocation4 + $0x4b]]
    %v2934 = vstv %s2932
    %v2935 = vmul.f32 %v2934, %v170
    %v2936 = vmul.f32 %v2934, %v171
    %v2937 = vmul.f32 %v2934, %v172
    %v2938 = vmul.f32 %v2934, %v173
    %v2939 = vmul.f32 %v2934, %v174
    %v2940 = vmul.f32 %v2934, %v175
    %v2947 = vrot.slane %v2935, 3
    %v2948 = vrot.slane %v2936, 3
    %v2949 = vsel %vm347, %v2947, %v2948
    %v2950 = vrot.slane %v2937, 3
    %v2951 = vsel %vm347, %v2948, %v2950
    %v2952 = vrot.slane %v2938, 3
    %v2953 = vrot.slane %v2939, 3
    %v2954 = vsel %vm347, %v2952, %v2953
    %v2955 = vrot.slane %v2940, 3
    %v2956 = vsel %vm347, %v2953, %v2955
    %2957 = vrot.lane.b32.xlu0 %v2949, 123
    %v2958 = vpop.permute.xlu0 %2957
    %2959 = vrot.lane.b32.xlu0 %v2951, 123
    %v2960 = vpop.permute.xlu0 %2959
    %2961 = vrot.lane.b32.xlu0 %v2954, 123
    %v2962 = vpop.permute.xlu0 %2961
    %2963 = vrot.lane.b32.xlu0 %v2956, 123
    %v2964 = vpop.permute.xlu0 %2963
    %v2969 = vadd.f32 %v2928, %v2958
    %v2970 = vadd.f32 %v2929, %v2960
    %v2971 = vadd.f32 %v2930, %v2962
    %v2972 = vadd.f32 %v2931, %v2964
    %v2973 = vstv %s2933
    %v2974 = vmul.f32 %v2973, %v176
    %v2975 = vmul.f32 %v2973, %v177
    %v2976 = vmul.f32 %v2973, %v178
    %v2977 = vmul.f32 %v2973, %v179
    %v2978 = vmul.f32 %v2973, %v180
    %v2979 = vmul.f32 %v2973, %v181
    %v2986 = vrot.slane %v2974, 3
    %v2987 = vrot.slane %v2975, 3
    %v2988 = vsel %vm347, %v2986, %v2987
    %v2989 = vrot.slane %v2976, 3
    %v2990 = vsel %vm347, %v2987, %v2989
    %v2991 = vrot.slane %v2977, 3
    %v2992 = vrot.slane %v2978, 3
    %v2993 = vsel %vm347, %v2991, %v2992
    %v2994 = vrot.slane %v2979, 3
    %v2995 = vsel %vm347, %v2992, %v2994
    %2996 = vrot.lane.b32.xlu0 %v2988, 123
    %v2997 = vpop.permute.xlu0 %2996
    %2998 = vrot.lane.b32.xlu0 %v2990, 123
    %v2999 = vpop.permute.xlu0 %2998
    %3000 = vrot.lane.b32.xlu0 %v2993, 123
    %v3001 = vpop.permute.xlu0 %3000
    %3002 = vrot.lane.b32.xlu0 %v2995, 123
    %v3003 = vpop.permute.xlu0 %3002
    %v3008 = vadd.f32 %v2969, %v2997
    %v3009 = vadd.f32 %v2970, %v2999
    %v3010 = vadd.f32 %v2971, %v3001
    %v3011 = vadd.f32 %v2972, %v3003
    %s3012 = sld [smem:[#allocation4 + $0x21]]
    %s3013 = sld [smem:[#allocation4 + $0x52]]
    %v3014 = vstv %s3012
    %v3015 = vmul.f32 %v3014, %v170
    %v3016 = vmul.f32 %v3014, %v171
    %v3017 = vmul.f32 %v3014, %v172
    %v3018 = vmul.f32 %v3014, %v173
    %v3019 = vmul.f32 %v3014, %v174
    %v3020 = vmul.f32 %v3014, %v175
    %v3027 = vrot.slane %v3015, 4
    %v3028 = vrot.slane %v3016, 4
    %v3029 = vsel %vm412, %v3027, %v3028
    %v3030 = vrot.slane %v3017, 4
    %v3031 = vsel %vm412, %v3028, %v3030
    %v3032 = vrot.slane %v3018, 4
    %v3033 = vrot.slane %v3019, 4
    %v3034 = vsel %vm412, %v3032, %v3033
    %v3035 = vrot.slane %v3020, 4
    %v3036 = vsel %vm412, %v3033, %v3035
    %3037 = vrot.lane.b32.xlu0 %v3029, 123
    %v3038 = vpop.permute.xlu0 %3037
    %3039 = vrot.lane.b32.xlu0 %v3031, 123
    %v3040 = vpop.permute.xlu0 %3039
    %3041 = vrot.lane.b32.xlu0 %v3034, 123
    %v3042 = vpop.permute.xlu0 %3041
    %3043 = vrot.lane.b32.xlu0 %v3036, 123
    %v3044 = vpop.permute.xlu0 %3043
    %v3049 = vadd.f32 %v3008, %v3038
    %v3050 = vadd.f32 %v3009, %v3040
    %v3051 = vadd.f32 %v3010, %v3042
    %v3052 = vadd.f32 %v3011, %v3044
    %v3053 = vstv %s3013
    %v3054 = vmul.f32 %v3053, %v176
    %v3055 = vmul.f32 %v3053, %v177
    %v3056 = vmul.f32 %v3053, %v178
    %v3057 = vmul.f32 %v3053, %v179
    %v3058 = vmul.f32 %v3053, %v180
    %v3059 = vmul.f32 %v3053, %v181
    %v3066 = vrot.slane %v3054, 4
    %v3067 = vrot.slane %v3055, 4
    %v3068 = vsel %vm412, %v3066, %v3067
    %v3069 = vrot.slane %v3056, 4
    %v3070 = vsel %vm412, %v3067, %v3069
    %v3071 = vrot.slane %v3057, 4
    %v3072 = vrot.slane %v3058, 4
    %v3073 = vsel %vm412, %v3071, %v3072
    %v3074 = vrot.slane %v3059, 4
    %v3075 = vsel %vm412, %v3072, %v3074
    %3076 = vrot.lane.b32.xlu0 %v3068, 123
    %v3077 = vpop.permute.xlu0 %3076
    %3078 = vrot.lane.b32.xlu0 %v3070, 123
    %v3079 = vpop.permute.xlu0 %3078
    %3080 = vrot.lane.b32.xlu0 %v3073, 123
    %v3081 = vpop.permute.xlu0 %3080
    %3082 = vrot.lane.b32.xlu0 %v3075, 123
    %v3083 = vpop.permute.xlu0 %3082
    %v3088 = vadd.f32 %v3049, %v3077
    %v3089 = vadd.f32 %v3050, %v3079
    %v3090 = vadd.f32 %v3051, %v3081
    %v3091 = vadd.f32 %v3052, %v3083
    %s3092 = sld [smem:[#allocation4 + $0x28]]
    %s3093 = sld [smem:[#allocation4 + $0x59]]
    %v3094 = vstv %s3092
    %v3095 = vmul.f32 %v3094, %v170
    %v3096 = vmul.f32 %v3094, %v171
    %v3097 = vmul.f32 %v3094, %v172
    %v3098 = vmul.f32 %v3094, %v173
    %v3099 = vmul.f32 %v3094, %v174
    %v3100 = vmul.f32 %v3094, %v175
    %v3107 = vrot.slane %v3095, 5
    %v3108 = vrot.slane %v3096, 5
    %v3109 = vsel %vm477, %v3107, %v3108
    %v3110 = vrot.slane %v3097, 5
    %v3111 = vsel %vm477, %v3108, %v3110
    %v3112 = vrot.slane %v3098, 5
    %v3113 = vrot.slane %v3099, 5
    %v3114 = vsel %vm477, %v3112, %v3113
    %v3115 = vrot.slane %v3100, 5
    %v3116 = vsel %vm477, %v3113, %v3115
    %3117 = vrot.lane.b32.xlu0 %v3109, 123
    %v3118 = vpop.permute.xlu0 %3117
    %3119 = vrot.lane.b32.xlu0 %v3111, 123
    %v3120 = vpop.permute.xlu0 %3119
    %3121 = vrot.lane.b32.xlu0 %v3114, 123
    %v3122 = vpop.permute.xlu0 %3121
    %3123 = vrot.lane.b32.xlu0 %v3116, 123
    %v3124 = vpop.permute.xlu0 %3123
    %v3129 = vadd.f32 %v3088, %v3118
    %v3130 = vadd.f32 %v3089, %v3120
    %v3131 = vadd.f32 %v3090, %v3122
    %v3132 = vadd.f32 %v3091, %v3124
    %v3133 = vstv %s3093
    %v3134 = vmul.f32 %v3133, %v176
    %v3135 = vmul.f32 %v3133, %v177
    %v3136 = vmul.f32 %v3133, %v178
    %v3137 = vmul.f32 %v3133, %v179
    %v3138 = vmul.f32 %v3133, %v180
    %v3139 = vmul.f32 %v3133, %v181
    %v3146 = vrot.slane %v3134, 5
    %v3147 = vrot.slane %v3135, 5
    %v3148 = vsel %vm477, %v3146, %v3147
    %v3149 = vrot.slane %v3136, 5
    %v3150 = vsel %vm477, %v3147, %v3149
    %v3151 = vrot.slane %v3137, 5
    %v3152 = vrot.slane %v3138, 5
    %v3153 = vsel %vm477, %v3151, %v3152
    %v3154 = vrot.slane %v3139, 5
    %v3155 = vsel %vm477, %v3152, %v3154
    %3156 = vrot.lane.b32.xlu0 %v3148, 123
    %v3157 = vpop.permute.xlu0 %3156
    %3158 = vrot.lane.b32.xlu0 %v3150, 123
    %v3159 = vpop.permute.xlu0 %3158
    %3160 = vrot.lane.b32.xlu0 %v3153, 123
    %v3161 = vpop.permute.xlu0 %3160
    %3162 = vrot.lane.b32.xlu0 %v3155, 123
    %v3163 = vpop.permute.xlu0 %3162
    %v3168 = vadd.f32 %v3129, %v3157
    %v3169 = vadd.f32 %v3130, %v3159
    %v3170 = vadd.f32 %v3131, %v3161
    %v3171 = vadd.f32 %v3132, %v3163
    %s3172 = sld [smem:[#allocation4 + $0x2f]]
    %s3173 = sld [smem:[#allocation4 + $0x60]]
    %v3174 = vstv %s3172
    %v3175 = vmul.f32 %v3174, %v170
    %v3176 = vmul.f32 %v3174, %v171
    %v3177 = vmul.f32 %v3174, %v172
    %v3178 = vmul.f32 %v3174, %v173
    %v3179 = vmul.f32 %v3174, %v174
    %v3180 = vmul.f32 %v3174, %v175
    %v3187 = vrot.slane %v3175, 6
    %v3188 = vrot.slane %v3176, 6
    %v3189 = vsel %vm542, %v3187, %v3188
    %v3190 = vrot.slane %v3177, 6
    %v3191 = vsel %vm542, %v3188, %v3190
    %v3192 = vrot.slane %v3178, 6
    %v3193 = vrot.slane %v3179, 6
    %v3194 = vsel %vm542, %v3192, %v3193
    %v3195 = vrot.slane %v3180, 6
    %v3196 = vsel %vm542, %v3193, %v3195
    %3197 = vrot.lane.b32.xlu0 %v3189, 123
    %v3198 = vpop.permute.xlu0 %3197
    %3199 = vrot.lane.b32.xlu0 %v3191, 123
    %v3200 = vpop.permute.xlu0 %3199
    %3201 = vrot.lane.b32.xlu0 %v3194, 123
    %v3202 = vpop.permute.xlu0 %3201
    %3203 = vrot.lane.b32.xlu0 %v3196, 123
    %v3204 = vpop.permute.xlu0 %3203
    %v3209 = vadd.f32 %v3168, %v3198
    %v3210 = vadd.f32 %v3169, %v3200
    %v3211 = vadd.f32 %v3170, %v3202
    %v3212 = vadd.f32 %v3171, %v3204
    %v3213 = vstv %s3173
    %v3214 = vmul.f32 %v3213, %v176
    %v3215 = vmul.f32 %v3213, %v177
    %v3216 = vmul.f32 %v3213, %v178
    %v3217 = vmul.f32 %v3213, %v179
    %v3218 = vmul.f32 %v3213, %v180
    %v3219 = vmul.f32 %v3213, %v181
    %v3226 = vrot.slane %v3214, 6
    %v3227 = vrot.slane %v3215, 6
    %v3228 = vsel %vm542, %v3226, %v3227
    %v3229 = vrot.slane %v3216, 6
    %v3230 = vsel %vm542, %v3227, %v3229
    %v3231 = vrot.slane %v3217, 6
    %v3232 = vrot.slane %v3218, 6
    %v3233 = vsel %vm542, %v3231, %v3232
    %v3234 = vrot.slane %v3219, 6
    %v3235 = vsel %vm542, %v3232, %v3234
    %3236 = vrot.lane.b32.xlu0 %v3228, 123
    %v3237 = vpop.permute.xlu0 %3236
    %3238 = vrot.lane.b32.xlu0 %v3230, 123
    %v3239 = vpop.permute.xlu0 %3238
    %3240 = vrot.lane.b32.xlu0 %v3233, 123
    %v3241 = vpop.permute.xlu0 %3240
    %3242 = vrot.lane.b32.xlu0 %v3235, 123
    %v3243 = vpop.permute.xlu0 %3242
    %v3248 = vadd.f32 %v3209, %v3237
    %v3249 = vadd.f32 %v3210, %v3239
    %v3250 = vadd.f32 %v3211, %v3241
    %v3251 = vadd.f32 %v3212, %v3243
    %s3252 = sld [smem:[#allocation4 + $0x6]]
    %s3253 = sld [smem:[#allocation4 + $0x37]]
    %v3254 = vstv %s3252
    %v3255 = vmul.f32 %v3254, %v170
    %v3256 = vmul.f32 %v3254, %v171
    %v3257 = vmul.f32 %v3254, %v173
    %v3258 = vmul.f32 %v3254, %v174
    %3263 = vrot.lane.b32.xlu0 %v3255, 122
    %v3264 = vpop.permute.xlu0 %3263
    %3265 = vrot.lane.b32.xlu0 %v3256, 122
    %v3266 = vpop.permute.xlu0 %3265
    %3267 = vrot.lane.b32.xlu0 %v3257, 122
    %v3268 = vpop.permute.xlu0 %3267
    %3269 = vrot.lane.b32.xlu0 %v3258, 122
    %v3270 = vpop.permute.xlu0 %3269
    %v3275 = vadd.f32 %v3248, %v3264
    %v3276 = vadd.f32 %v3249, %v3266
    %v3277 = vadd.f32 %v3250, %v3268
    %v3278 = vadd.f32 %v3251, %v3270
    %v3279 = vstv %s3253
    %v3280 = vmul.f32 %v3279, %v176
    %v3281 = vmul.f32 %v3279, %v177
    %v3282 = vmul.f32 %v3279, %v179
    %v3283 = vmul.f32 %v3279, %v180
    %3288 = vrot.lane.b32.xlu0 %v3280, 122
    %v3289 = vpop.permute.xlu0 %3288
    %3290 = vrot.lane.b32.xlu0 %v3281, 122
    %v3291 = vpop.permute.xlu0 %3290
    %3292 = vrot.lane.b32.xlu0 %v3282, 122
    %v3293 = vpop.permute.xlu0 %3292
    %3294 = vrot.lane.b32.xlu0 %v3283, 122
    %v3295 = vpop.permute.xlu0 %3294
    %v3300 = vadd.f32 %v3275, %v3289
    %v3301 = vadd.f32 %v3276, %v3291
    %v3302 = vadd.f32 %v3277, %v3293
    %v3303 = vadd.f32 %v3278, %v3295
    %s3304 = sld [smem:[#allocation4 + $0xd]]
    %s3305 = sld [smem:[#allocation4 + $0x3e]]
    %v3306 = vstv %s3304
    %v3307 = vmul.f32 %v3306, %v170
    %v3308 = vmul.f32 %v3306, %v171
    %v3309 = vmul.f32 %v3306, %v172
    %v3310 = vmul.f32 %v3306, %v173
    %v3311 = vmul.f32 %v3306, %v174
    %v3312 = vmul.f32 %v3306, %v175
    %v3319 = vrot.slane %v3307, 1
    %v3320 = vrot.slane %v3308, 1
    %v3321 = vsel %vm217, %v3319, %v3320
    %v3322 = vrot.slane %v3309, 1
    %v3323 = vsel %vm217, %v3320, %v3322
    %v3324 = vrot.slane %v3310, 1
    %v3325 = vrot.slane %v3311, 1
    %v3326 = vsel %vm217, %v3324, %v3325
    %v3327 = vrot.slane %v3312, 1
    %v3328 = vsel %vm217, %v3325, %v3327
    %3329 = vrot.lane.b32.xlu0 %v3321, 122
    %v3330 = vpop.permute.xlu0 %3329
    %3331 = vrot.lane.b32.xlu0 %v3323, 122
    %v3332 = vpop.permute.xlu0 %3331
    %3333 = vrot.lane.b32.xlu0 %v3326, 122
    %v3334 = vpop.permute.xlu0 %3333
    %3335 = vrot.lane.b32.xlu0 %v3328, 122
    %v3336 = vpop.permute.xlu0 %3335
    %v3341 = vadd.f32 %v3300, %v3330
    %v3342 = vadd.f32 %v3301, %v3332
    %v3343 = vadd.f32 %v3302, %v3334
    %v3344 = vadd.f32 %v3303, %v3336
    %v3345 = vstv %s3305
    %v3346 = vmul.f32 %v3345, %v176
    %v3347 = vmul.f32 %v3345, %v177
    %v3348 = vmul.f32 %v3345, %v178
    %v3349 = vmul.f32 %v3345, %v179
    %v3350 = vmul.f32 %v3345, %v180
    %v3351 = vmul.f32 %v3345, %v181
    %v3358 = vrot.slane %v3346, 1
    %v3359 = vrot.slane %v3347, 1
    %v3360 = vsel %vm217, %v3358, %v3359
    %v3361 = vrot.slane %v3348, 1
    %v3362 = vsel %vm217, %v3359, %v3361
    %v3363 = vrot.slane %v3349, 1
    %v3364 = vrot.slane %v3350, 1
    %v3365 = vsel %vm217, %v3363, %v3364
    %v3366 = vrot.slane %v3351, 1
    %v3367 = vsel %vm217, %v3364, %v3366
    %3368 = vrot.lane.b32.xlu0 %v3360, 122
    %v3369 = vpop.permute.xlu0 %3368
    %3370 = vrot.lane.b32.xlu0 %v3362, 122
    %v3371 = vpop.permute.xlu0 %3370
    %3372 = vrot.lane.b32.xlu0 %v3365, 122
    %v3373 = vpop.permute.xlu0 %3372
    %3374 = vrot.lane.b32.xlu0 %v3367, 122
    %v3375 = vpop.permute.xlu0 %3374
    %v3380 = vadd.f32 %v3341, %v3369
    %v3381 = vadd.f32 %v3342, %v3371
    %v3382 = vadd.f32 %v3343, %v3373
    %v3383 = vadd.f32 %v3344, %v3375
    %s3384 = sld [smem:[#allocation4 + $0x14]]
    %s3385 = sld [smem:[#allocation4 + $0x45]]
    %v3386 = vstv %s3384
    %v3387 = vmul.f32 %v3386, %v170
    %v3388 = vmul.f32 %v3386, %v171
    %v3389 = vmul.f32 %v3386, %v172
    %v3390 = vmul.f32 %v3386, %v173
    %v3391 = vmul.f32 %v3386, %v174
    %v3392 = vmul.f32 %v3386, %v175
    %v3399 = vrot.slane %v3387, 2
    %v3400 = vrot.slane %v3388, 2
    %v3401 = vsel %vm282, %v3399, %v3400
    %v3402 = vrot.slane %v3389, 2
    %v3403 = vsel %vm282, %v3400, %v3402
    %v3404 = vrot.slane %v3390, 2
    %v3405 = vrot.slane %v3391, 2
    %v3406 = vsel %vm282, %v3404, %v3405
    %v3407 = vrot.slane %v3392, 2
    %v3408 = vsel %vm282, %v3405, %v3407
    %3409 = vrot.lane.b32.xlu0 %v3401, 122
    %v3410 = vpop.permute.xlu0 %3409
    %3411 = vrot.lane.b32.xlu0 %v3403, 122
    %v3412 = vpop.permute.xlu0 %3411
    %3413 = vrot.lane.b32.xlu0 %v3406, 122
    %v3414 = vpop.permute.xlu0 %3413
    %3415 = vrot.lane.b32.xlu0 %v3408, 122
    %v3416 = vpop.permute.xlu0 %3415
    %v3421 = vadd.f32 %v3380, %v3410
    %v3422 = vadd.f32 %v3381, %v3412
    %v3423 = vadd.f32 %v3382, %v3414
    %v3424 = vadd.f32 %v3383, %v3416
    %v3425 = vstv %s3385
    %v3426 = vmul.f32 %v3425, %v176
    %v3427 = vmul.f32 %v3425, %v177
    %v3428 = vmul.f32 %v3425, %v178
    %v3429 = vmul.f32 %v3425, %v179
    %v3430 = vmul.f32 %v3425, %v180
    %v3431 = vmul.f32 %v3425, %v181
    %v3438 = vrot.slane %v3426, 2
    %v3439 = vrot.slane %v3427, 2
    %v3440 = vsel %vm282, %v3438, %v3439
    %v3441 = vrot.slane %v3428, 2
    %v3442 = vsel %vm282, %v3439, %v3441
    %v3443 = vrot.slane %v3429, 2
    %v3444 = vrot.slane %v3430, 2
    %v3445 = vsel %vm282, %v3443, %v3444
    %v3446 = vrot.slane %v3431, 2
    %v3447 = vsel %vm282, %v3444, %v3446
    %3448 = vrot.lane.b32.xlu0 %v3440, 122
    %v3449 = vpop.permute.xlu0 %3448
    %3450 = vrot.lane.b32.xlu0 %v3442, 122
    %v3451 = vpop.permute.xlu0 %3450
    %3452 = vrot.lane.b32.xlu0 %v3445, 122
    %v3453 = vpop.permute.xlu0 %3452
    %3454 = vrot.lane.b32.xlu0 %v3447, 122
    %v3455 = vpop.permute.xlu0 %3454
    %v3460 = vadd.f32 %v3421, %v3449
    %v3461 = vadd.f32 %v3422, %v3451
    %v3462 = vadd.f32 %v3423, %v3453
    %v3463 = vadd.f32 %v3424, %v3455
    %s3464 = sld [smem:[#allocation4 + $0x1b]]
    %s3465 = sld [smem:[#allocation4 + $0x4c]]
    %v3466 = vstv %s3464
    %v3467 = vmul.f32 %v3466, %v170
    %v3468 = vmul.f32 %v3466, %v171
    %v3469 = vmul.f32 %v3466, %v172
    %v3470 = vmul.f32 %v3466, %v173
    %v3471 = vmul.f32 %v3466, %v174
    %v3472 = vmul.f32 %v3466, %v175
    %v3479 = vrot.slane %v3467, 3
    %v3480 = vrot.slane %v3468, 3
    %v3481 = vsel %vm347, %v3479, %v3480
    %v3482 = vrot.slane %v3469, 3
    %v3483 = vsel %vm347, %v3480, %v3482
    %v3484 = vrot.slane %v3470, 3
    %v3485 = vrot.slane %v3471, 3
    %v3486 = vsel %vm347, %v3484, %v3485
    %v3487 = vrot.slane %v3472, 3
    %v3488 = vsel %vm347, %v3485, %v3487
    %3489 = vrot.lane.b32.xlu0 %v3481, 122
    %v3490 = vpop.permute.xlu0 %3489
    %3491 = vrot.lane.b32.xlu0 %v3483, 122
    %v3492 = vpop.permute.xlu0 %3491
    %3493 = vrot.lane.b32.xlu0 %v3486, 122
    %v3494 = vpop.permute.xlu0 %3493
    %3495 = vrot.lane.b32.xlu0 %v3488, 122
    %v3496 = vpop.permute.xlu0 %3495
    %v3501 = vadd.f32 %v3460, %v3490
    %v3502 = vadd.f32 %v3461, %v3492
    %v3503 = vadd.f32 %v3462, %v3494
    %v3504 = vadd.f32 %v3463, %v3496
    %v3505 = vstv %s3465
    %v3506 = vmul.f32 %v3505, %v176
    %v3507 = vmul.f32 %v3505, %v177
    %v3508 = vmul.f32 %v3505, %v178
    %v3509 = vmul.f32 %v3505, %v179
    %v3510 = vmul.f32 %v3505, %v180
    %v3511 = vmul.f32 %v3505, %v181
    %v3518 = vrot.slane %v3506, 3
    %v3519 = vrot.slane %v3507, 3
    %v3520 = vsel %vm347, %v3518, %v3519
    %v3521 = vrot.slane %v3508, 3
    %v3522 = vsel %vm347, %v3519, %v3521
    %v3523 = vrot.slane %v3509, 3
    %v3524 = vrot.slane %v3510, 3
    %v3525 = vsel %vm347, %v3523, %v3524
    %v3526 = vrot.slane %v3511, 3
    %v3527 = vsel %vm347, %v3524, %v3526
    %3528 = vrot.lane.b32.xlu0 %v3520, 122
    %v3529 = vpop.permute.xlu0 %3528
    %3530 = vrot.lane.b32.xlu0 %v3522, 122
    %v3531 = vpop.permute.xlu0 %3530
    %3532 = vrot.lane.b32.xlu0 %v3525, 122
    %v3533 = vpop.permute.xlu0 %3532
    %3534 = vrot.lane.b32.xlu0 %v3527, 122
    %v3535 = vpop.permute.xlu0 %3534
    %v3540 = vadd.f32 %v3501, %v3529
    %v3541 = vadd.f32 %v3502, %v3531
    %v3542 = vadd.f32 %v3503, %v3533
    %v3543 = vadd.f32 %v3504, %v3535
    %s3544 = sld [smem:[#allocation4 + $0x22]]
    %s3545 = sld [smem:[#allocation4 + $0x53]]
    %v3546 = vstv %s3544
    %v3547 = vmul.f32 %v3546, %v170
    %v3548 = vmul.f32 %v3546, %v171
    %v3549 = vmul.f32 %v3546, %v172
    %v3550 = vmul.f32 %v3546, %v173
    %v3551 = vmul.f32 %v3546, %v174
    %v3552 = vmul.f32 %v3546, %v175
    %v3559 = vrot.slane %v3547, 4
    %v3560 = vrot.slane %v3548, 4
    %v3561 = vsel %vm412, %v3559, %v3560
    %v3562 = vrot.slane %v3549, 4
    %v3563 = vsel %vm412, %v3560, %v3562
    %v3564 = vrot.slane %v3550, 4
    %v3565 = vrot.slane %v3551, 4
    %v3566 = vsel %vm412, %v3564, %v3565
    %v3567 = vrot.slane %v3552, 4
    %v3568 = vsel %vm412, %v3565, %v3567
    %3569 = vrot.lane.b32.xlu0 %v3561, 122
    %v3570 = vpop.permute.xlu0 %3569
    %3571 = vrot.lane.b32.xlu0 %v3563, 122
    %v3572 = vpop.permute.xlu0 %3571
    %3573 = vrot.lane.b32.xlu0 %v3566, 122
    %v3574 = vpop.permute.xlu0 %3573
    %3575 = vrot.lane.b32.xlu0 %v3568, 122
    %v3576 = vpop.permute.xlu0 %3575
    %v3581 = vadd.f32 %v3540, %v3570
    %v3582 = vadd.f32 %v3541, %v3572
    %v3583 = vadd.f32 %v3542, %v3574
    %v3584 = vadd.f32 %v3543, %v3576
    %v3585 = vstv %s3545
    %v3586 = vmul.f32 %v3585, %v176
    %v3587 = vmul.f32 %v3585, %v177
    %v3588 = vmul.f32 %v3585, %v178
    %v3589 = vmul.f32 %v3585, %v179
    %v3590 = vmul.f32 %v3585, %v180
    %v3591 = vmul.f32 %v3585, %v181
    %v3598 = vrot.slane %v3586, 4
    %v3599 = vrot.slane %v3587, 4
    %v3600 = vsel %vm412, %v3598, %v3599
    %v3601 = vrot.slane %v3588, 4
    %v3602 = vsel %vm412, %v3599, %v3601
    %v3603 = vrot.slane %v3589, 4
    %v3604 = vrot.slane %v3590, 4
    %v3605 = vsel %vm412, %v3603, %v3604
    %v3606 = vrot.slane %v3591, 4
    %v3607 = vsel %vm412, %v3604, %v3606
    %3608 = vrot.lane.b32.xlu0 %v3600, 122
    %v3609 = vpop.permute.xlu0 %3608
    %3610 = vrot.lane.b32.xlu0 %v3602, 122
    %v3611 = vpop.permute.xlu0 %3610
    %3612 = vrot.lane.b32.xlu0 %v3605, 122
    %v3613 = vpop.permute.xlu0 %3612
    %3614 = vrot.lane.b32.xlu0 %v3607, 122
    %v3615 = vpop.permute.xlu0 %3614
    %v3620 = vadd.f32 %v3581, %v3609
    %v3621 = vadd.f32 %v3582, %v3611
    %v3622 = vadd.f32 %v3583, %v3613
    %v3623 = vadd.f32 %v3584, %v3615
    %s3624 = sld [smem:[#allocation4 + $0x29]]
    %s3625 = sld [smem:[#allocation4 + $0x5a]]
    %v3626 = vstv %s3624
    %v3627 = vmul.f32 %v3626, %v170
    %v3628 = vmul.f32 %v3626, %v171
    %v3629 = vmul.f32 %v3626, %v172
    %v3630 = vmul.f32 %v3626, %v173
    %v3631 = vmul.f32 %v3626, %v174
    %v3632 = vmul.f32 %v3626, %v175
    %v3639 = vrot.slane %v3627, 5
    %v3640 = vrot.slane %v3628, 5
    %v3641 = vsel %vm477, %v3639, %v3640
    %v3642 = vrot.slane %v3629, 5
    %v3643 = vsel %vm477, %v3640, %v3642
    %v3644 = vrot.slane %v3630, 5
    %v3645 = vrot.slane %v3631, 5
    %v3646 = vsel %vm477, %v3644, %v3645
    %v3647 = vrot.slane %v3632, 5
    %v3648 = vsel %vm477, %v3645, %v3647
    %3649 = vrot.lane.b32.xlu0 %v3641, 122
    %v3650 = vpop.permute.xlu0 %3649
    %3651 = vrot.lane.b32.xlu0 %v3643, 122
    %v3652 = vpop.permute.xlu0 %3651
    %3653 = vrot.lane.b32.xlu0 %v3646, 122
    %v3654 = vpop.permute.xlu0 %3653
    %3655 = vrot.lane.b32.xlu0 %v3648, 122
    %v3656 = vpop.permute.xlu0 %3655
    %v3661 = vadd.f32 %v3620, %v3650
    %v3662 = vadd.f32 %v3621, %v3652
    %v3663 = vadd.f32 %v3622, %v3654
    %v3664 = vadd.f32 %v3623, %v3656
    %v3665 = vstv %s3625
    %v3666 = vmul.f32 %v3665, %v176
    %v3667 = vmul.f32 %v3665, %v177
    %v3668 = vmul.f32 %v3665, %v178
    %v3669 = vmul.f32 %v3665, %v179
    %v3670 = vmul.f32 %v3665, %v180
    %v3671 = vmul.f32 %v3665, %v181
    %v3678 = vrot.slane %v3666, 5
    %v3679 = vrot.slane %v3667, 5
    %v3680 = vsel %vm477, %v3678, %v3679
    %v3681 = vrot.slane %v3668, 5
    %v3682 = vsel %vm477, %v3679, %v3681
    %v3683 = vrot.slane %v3669, 5
    %v3684 = vrot.slane %v3670, 5
    %v3685 = vsel %vm477, %v3683, %v3684
    %v3686 = vrot.slane %v3671, 5
    %v3687 = vsel %vm477, %v3684, %v3686
    %3688 = vrot.lane.b32.xlu0 %v3680, 122
    %v3689 = vpop.permute.xlu0 %3688
    %3690 = vrot.lane.b32.xlu0 %v3682, 122
    %v3691 = vpop.permute.xlu0 %3690
    %3692 = vrot.lane.b32.xlu0 %v3685, 122
    %v3693 = vpop.permute.xlu0 %3692
    %3694 = vrot.lane.b32.xlu0 %v3687, 122
    %v3695 = vpop.permute.xlu0 %3694
    %v3700 = vadd.f32 %v3661, %v3689
    %v3701 = vadd.f32 %v3662, %v3691
    %v3702 = vadd.f32 %v3663, %v3693
    %v3703 = vadd.f32 %v3664, %v3695
    %s3704 = sld [smem:[#allocation4 + $0x30]]
    %s3705 = sld [smem:[#allocation4 + $0x61]]
    %v3706 = vstv %s3704
    %v3707 = vmul.f32 %v3706, %v170
    %v3708 = vmul.f32 %v3706, %v171
    %v3709 = vmul.f32 %v3706, %v172
    %v3710 = vmul.f32 %v3706, %v173
    %v3711 = vmul.f32 %v3706, %v174
    %v3712 = vmul.f32 %v3706, %v175
    %v3719 = vrot.slane %v3707, 6
    %v3720 = vrot.slane %v3708, 6
    %v3721 = vsel %vm542, %v3719, %v3720
    %v3722 = vrot.slane %v3709, 6
    %v3723 = vsel %vm542, %v3720, %v3722
    %v3724 = vrot.slane %v3710, 6
    %v3725 = vrot.slane %v3711, 6
    %v3726 = vsel %vm542, %v3724, %v3725
    %v3727 = vrot.slane %v3712, 6
    %v3728 = vsel %vm542, %v3725, %v3727
    %3729 = vrot.lane.b32.xlu0 %v3721, 122
    %v3730 = vpop.permute.xlu0 %3729
    %3731 = vrot.lane.b32.xlu0 %v3723, 122
    %v3732 = vpop.permute.xlu0 %3731
    %3733 = vrot.lane.b32.xlu0 %v3726, 122
    %v3734 = vpop.permute.xlu0 %3733
    %3735 = vrot.lane.b32.xlu0 %v3728, 122
    %v3736 = vpop.permute.xlu0 %3735
    %v3741 = vadd.f32 %v3700, %v3730
    %v3742 = vadd.f32 %v3701, %v3732
    %v3743 = vadd.f32 %v3702, %v3734
    %v3744 = vadd.f32 %v3703, %v3736
    %v3745 = vstv %s3705
    %v3746 = vmul.f32 %v3745, %v176
    %v3747 = vmul.f32 %v3745, %v177
    %v3748 = vmul.f32 %v3745, %v178
    %v3749 = vmul.f32 %v3745, %v179
    %v3750 = vmul.f32 %v3745, %v180
    %v3751 = vmul.f32 %v3745, %v181
    %v3758 = vrot.slane %v3746, 6
    %v3759 = vrot.slane %v3747, 6
    %v3760 = vsel %vm542, %v3758, %v3759
    %v3761 = vrot.slane %v3748, 6
    %v3762 = vsel %vm542, %v3759, %v3761
    %v3763 = vrot.slane %v3749, 6
    %v3764 = vrot.slane %v3750, 6
    %v3765 = vsel %vm542, %v3763, %v3764
    %v3766 = vrot.slane %v3751, 6
    %v3767 = vsel %vm542, %v3764, %v3766
    %3768 = vrot.lane.b32.xlu0 %v3760, 122
    %v3769 = vpop.permute.xlu0 %3768
    %3770 = vrot.lane.b32.xlu0 %v3762, 122
    %v3771 = vpop.permute.xlu0 %3770
    %3772 = vrot.lane.b32.xlu0 %v3765, 122
    %v3773 = vpop.permute.xlu0 %3772
    %3774 = vrot.lane.b32.xlu0 %v3767, 122
    %v3775 = vpop.permute.xlu0 %3774
    %v3780 = vadd.f32 %v3741, %v3769
    %v3781 = vadd.f32 %v3742, %v3771
    %v3782 = vadd.f32 %v3743, %v3773
    %v3783 = vadd.f32 %v3744, %v3775
    %v3784 = vxor.u32 %v3780, 2147483648
    %v3785 = vxor.u32 %v3781, 2147483648
    %v3786 = vxor.u32 %v3782, 2147483648
    %v3787 = vxor.u32 %v3783, 2147483648
    %v3788 = vmul.f32 %v3784, 1.442695
    %v3789 = vpow.pop %v3788
    %v3790 = vmul.f32 %v3785, 1.442695
    %v3791 = vpow.pop %v3790
    %v3792 = vmul.f32 %v3786, 1.442695
    %v3793 = vpow.pop %v3792
    %v3794 = vmul.f32 %v3787, 1.442695
    %v3795 = vpow.pop %v3794
    %v3796 = vadd.f32 %v3789, 1.0
    %v3797 = vadd.f32 %v3791, 1.0
    %v3798 = vadd.f32 %v3793, 1.0
    %v3799 = vadd.f32 %v3795, 1.0
    %v3800 = vrcp.pop %v3796
    %v3801 = vmul.f32 1.0, %v3800
    %v3802 = vrcp.pop %v3797
    %v3803 = vmul.f32 1.0, %v3802
    %v3804 = vrcp.pop %v3798
    %v3805 = vmul.f32 1.0, %v3804
    %v3806 = vrcp.pop %v3799
    %v3807 = vmul.f32 1.0, %v3806
    %3808 = vst.msk [vmem:[#allocation9] sm:$0xff] %vm53, %v3801
    %3809 = vst.msk [vmem:[#allocation9 + $0x8] sm:$0xff] %vm53, %v3803
    %3810 = vst.msk [vmem:[#allocation9 + $0x10] sm:$0xff] %vm53, %v3805
    %3811 = vst.msk [vmem:[#allocation9 + $0x18] sm:$0xff] %vm53, %v3807
    // Predicated region
    $region18: #{tpu_custom_call.1} parent=1 // pred_check
      _
    $region19: #{tpu_custom_call.1} parent=1 // pred_check_branch
      %3813 = sbr.rel (0) target = $region21
    $region20: #{tpu_custom_call.1} parent=1 // pred_region
      %s3815 = ssub.s32 512, 512
      %3816 = vsyncadd [#allocation6], %s3815
      %s3817 = sshll.u32 [#allocation9], 4
      %s3818 = int_to_ptr.vmem [resolvable:$true] %s3817
      %3823 = dma.vmem_to_hbm [thread:$0]  %s3818, 512, %s2, [#allocation6], 128, 128, 8
    $region21: #{tpu_custom_call.1} parent=1 // pred_fallthru
      _
    // Predicated region
    $region22: #{tpu_custom_call.1} parent=1 // pred_check
      _
    $region23: #{tpu_custom_call.1} parent=1 // pred_check_branch
      %3825 = sbr.rel (0) target = $region25
    $region24: #{tpu_custom_call.1} parent=1 // pred_region
      %3826 = dma.done [#allocation6], 512
    $region25: #{tpu_custom_call.1} parent=1 // pred_fallthru
      _
    %3827 = vsyncpa [#allocation5], 1
    %3828 = vsyncpa [#allocation6], 1
    %3829 = vsyncpa [#allocation7], 1

</llo_original>
